<compile_context>
chip_gen: v7x
topology: tpu7x:2x2x1
jax: 0.10.0
libtpu: 0.0.40
codegen_flags: <defaults>
</compile_context>

<pallas_src>
import jax
import jax.numpy as jnp
from jax.experimental import pallas as pl
from jax.experimental.pallas import tpu as pltpu


# ---------------------------------------------------------------------------
# Model config (input_dim == hidden_dim so stacked per-layer weights share a
# single (L, H, 4H) shape).
# ---------------------------------------------------------------------------
INPUT_DIM = 32
HIDDEN_DIM = 32
NUM_LAYERS = 2
DROPOUT = 0.5          # inactive in eval mode
TEMPERATURE = 2.0
BATCH = 32             # total batch; processed in blocks of BATCH_BLK on a parallel grid
SEQ = 8
BATCH_BLK = 8          # rows per grid step (one sublane group)
LANES = 128
BN_EPS = 1e-5


def _resident_spec(arr):
    """Full-array block whose block index never changes -> weight stays VMEM-resident."""
    zeros = (0,) * arr.ndim
    return pl.BlockSpec(arr.shape, lambda i, z=zeros: z)


# ---------------------------------------------------------------------------
# Fused kernel: 2-layer LSTM (wavefront over time) + MLP head, per batch block.
#
#   x_ref    : (1, T*B, D)  bf16, time-major rows (row = t*B + b)
#   wih_ref  : (L, D, 4H)   bf16, pre-transposed W_ih, i/f/o columns pre-scaled by 0.5
#   whh_ref  : (L, H, 4H)   bf16, pre-transposed W_hh, same column scaling
#   blstm_ref: (L, 1, 4H)   f32,  (b_ih + b_hh) with same column scaling
#   w1..w4   : bf16 fc weights with BN(eval) affine / 1/temperature folded in;
#              w4 has its single column replicated across 128 lanes
#   b1..b4   : f32 fc biases (b4 lane-replicated)
#   out_ref  : (1, B, 128)  f32, all 128 lanes carry the same value
# ---------------------------------------------------------------------------
def fused_kernel(x_ref, wih_ref, whh_ref, blstm_ref,
                 w1_ref, b1_ref, w2_ref, b2_ref, w3_ref, b3_ref,
                 w4_ref, b4_ref, out_ref):
    B = out_ref.shape[1]
    T = x_ref.shape[1] // B
    L, H, _ = whh_ref.shape
    f32, bf16 = jnp.float32, jnp.bfloat16

    # ---- Layer-0 input projection hoisted off the serial chain ------------
    # One (T*B, D) x (D, 4H) bf16 matmul (single MXU pass) instead of T tiny ones.
    xp0 = (jnp.dot(x_ref[0], wih_ref[0], preferred_element_type=f32)
           + blstm_ref[0])                                   # (T*B, 4H) f32

    def lstm_cell(gates, c_prev):
        # i/f/o pre-activations were halved at fold time, so ONE full-vreg
        # native tanh gives all four gates:  sigmoid(a) = 0.5*tanh(a/2) + 0.5.
        # Elementwise math stays f32 (v5e VPU/EUP have no bf16).
        t = jnp.tanh(gates)
        i = 0.5 * t[:, 0 * H:1 * H] + 0.5
        f = 0.5 * t[:, 1 * H:2 * H] + 0.5
        g = t[:, 2 * H:3 * H]
        o = 0.5 * t[:, 3 * H:4 * H] + 0.5
        c_new = f * c_prev + i * g
        h_new = o * jnp.tanh(c_new)
        return h_new, c_new

    h = [jnp.zeros((B, H), f32) for _ in range(L)]
    c = [jnp.zeros((B, H), f32) for _ in range(L)]

    # ---- Wavefront: layer l step t runs right after layer l-1 step t -------
    # Serial chain ~T+L-1 steps instead of T*L; static unroll (T=8, L=2) gives
    # the scheduler one flat block with static indices.
    for t in range(T):
        for l in range(L):
            if l == 0:
                pre = xp0[t * B:(t + 1) * B, :]
            else:
                # Per-step input projection on the fresh hidden of the layer below.
                pre = (jnp.dot(h[l - 1].astype(bf16), wih_ref[l],
                               preferred_element_type=f32) + blstm_ref[l])
            # bf16 operands -> single-pass MXU; the "+ pre" can fold into the
            # MXU result buffer (MRB accumulate) on v7x.
            gates = (jnp.dot(h[l].astype(bf16), whh_ref[l],
                             preferred_element_type=f32) + pre)
            h[l], c[l] = lstm_cell(gates, c[l])
    # TODO(synk): nn.LSTM inter-layer dropout is identity in eval mode.

    # ---- MLP head (BN eval affine + 1/temperature folded into weights) -----
    # Dropout1/2/3 are identity in eval mode.
    z = h[L - 1]
    z = jnp.maximum(jnp.dot(z.astype(bf16), w1_ref[...],
                            preferred_element_type=f32) + b1_ref[...], 0.0)
    z = jnp.maximum(jnp.dot(z.astype(bf16), w2_ref[...],
                            preferred_element_type=f32) + b2_ref[...], 0.0)
    z = jnp.maximum(jnp.dot(z.astype(bf16), w3_ref[...],
                            preferred_element_type=f32) + b3_ref[...], 0.0)
    # fc4 column replicated to 128 lanes at fold time -> lane-dense, unmasked
    # store; the wrapper reads lane 0.
    z = (jnp.dot(z.astype(bf16), w4_ref[...],
                 preferred_element_type=f32) + b4_ref[...])
    out_ref[0] = jax.nn.sigmoid(z)


# ---------------------------------------------------------------------------
# Parameter init (deterministic, PyTorch-like uniform(-1/sqrt(fan_in), ...))
# ---------------------------------------------------------------------------
def init_params(key, input_dim, hidden_dim, num_layers):
    assert input_dim == hidden_dim, "stacked LSTM weights assume D == H"
    keys = iter(jax.random.split(key, 64))

    def unif(shape, fan_in):
        k = 1.0 / jnp.sqrt(jnp.float32(fan_in))
        return jax.random.uniform(next(keys), shape, jnp.float32, -k, k)

    H, L = hidden_dim, num_layers
    p = {
        "w_ih": unif((L, 4 * H, hidden_dim), H),   # (L, 4H, D)
        "w_hh": unif((L, 4 * H, hidden_dim), H),   # (L, 4H, H)
        "b_ih": unif((L, 4 * H), H),
        "b_hh": unif((L, 4 * H), H),
    }
    dims = [(hidden_dim, 256), (256, 128), (128, 64), (64, 1)]
    for idx, (fin, fout) in enumerate(dims, start=1):
        p[f"w{idx}"] = unif((fout, fin), fin)      # PyTorch Linear: (out, in)
        p[f"b{idx}"] = unif((fout,), fin)
    for idx, ch in zip((1, 2, 3), (256, 128, 64)):
        p[f"bn{idx}_g"] = jax.random.uniform(next(keys), (ch,), jnp.float32, 0.5, 1.5)
        p[f"bn{idx}_b"] = jax.random.uniform(next(keys), (ch,), jnp.float32, -0.5, 0.5)
        p[f"bn{idx}_m"] = jax.random.uniform(next(keys), (ch,), jnp.float32, -0.5, 0.5)
        p[f"bn{idx}_v"] = jax.random.uniform(next(keys), (ch,), jnp.float32, 0.5, 1.5)
    return p


# ---------------------------------------------------------------------------
# One-time weight preparation (call ONCE, reuse across forwards):
#   * transposes + b_ih+b_hh folding
#   * i/f/o gate columns scaled by 0.5 (sigmoid-as-tanh rewrite; exact in bf16)
#   * BN(eval) affine folded into fc1..fc3, 1/temperature into fc4
#   * fc4 column replicated to 128 lanes for a lane-dense store
#   * matmul weight operands cast to bf16 once here
# ---------------------------------------------------------------------------
def fold_params(params, temperature=TEMPERATURE):
    H = HIDDEN_DIM
    gate_scale = jnp.concatenate([jnp.full((H,), 0.5, jnp.float32),   # i
                                  jnp.full((H,), 0.5, jnp.float32),   # f
                                  jnp.ones((H,), jnp.float32),        # g (tanh)
                                  jnp.full((H,), 0.5, jnp.float32)])  # o

    wih_t = jnp.transpose(params["w_ih"], (0, 2, 1)) * gate_scale     # (L, D, 4H)
    whh_t = jnp.transpose(params["w_hh"], (0, 2, 1)) * gate_scale     # (L, H, 4H)
    b = (params["b_ih"] + params["b_hh"]) * gate_scale                # (L, 4H)

    folded = {
        "wih_t": wih_t.astype(jnp.bfloat16),
        "whh_t": whh_t.astype(jnp.bfloat16),
        "b": b[:, None, :].astype(jnp.float32),                       # (L, 1, 4H)
    }
    for i in (1, 2, 3):
        scale = params[f"bn{i}_g"] / jnp.sqrt(params[f"bn{i}_v"] + BN_EPS)
        shift = params[f"bn{i}_b"] - params[f"bn{i}_m"] * scale
        folded[f"w{i}"] = (params[f"w{i}"].T * scale[None, :]).astype(jnp.bfloat16)
        folded[f"b{i}"] = ((params[f"b{i}"] * scale + shift)[None, :]).astype(jnp.float32)
    inv_t = 1.0 / float(temperature)
    w4 = params["w4"].T * inv_t                                       # (64, 1)
    b4 = (params["b4"] * inv_t)[None, :]                              # (1, 1)
    folded["w4"] = jnp.tile(w4, (1, LANES)).astype(jnp.bfloat16)      # (64, 128)
    folded["b4"] = jnp.tile(b4, (1, LANES)).astype(jnp.float32)       # (1, 128)
    return folded


# ---------------------------------------------------------------------------
# Forward wrapper: one pallas_call with a 'parallel' grid over batch blocks.
# Weights are VMEM-resident across grid steps (constant block index); the grid
# axis amortizes launch/DMA overhead and lights up v7x's second TensorCore.
# ---------------------------------------------------------------------------
@jax.jit
def bayesian_lstm_forward(x, folded):
    btotal, T, D = x.shape
    assert btotal % BATCH_BLK == 0, "pad the batch to a multiple of BATCH_BLK"
    nblk = btotal // BATCH_BLK
    # (Btotal, T, D) -> (nblk, T*BATCH_BLK, D): time-major within each block,
    # cast once to bf16 (single-pass MXU operands, half the input DMA bytes).
    xb = (x.reshape(nblk, BATCH_BLK, T, D)
            .transpose(0, 2, 1, 3)
            .reshape(nblk, T * BATCH_BLK, D)
            .astype(jnp.bfloat16))

    weights = (folded["wih_t"], folded["whh_t"], folded["b"],
               folded["w1"], folded["b1"], folded["w2"], folded["b2"],
               folded["w3"], folded["b3"], folded["w4"], folded["b4"])

    out = pl.pallas_call(
        fused_kernel,
        out_shape=jax.ShapeDtypeStruct((nblk, BATCH_BLK, LANES), jnp.float32),
        grid=(nblk,),
        in_specs=[pl.BlockSpec((1, T * BATCH_BLK, D), lambda i: (i, 0, 0))]
                 + [_resident_spec(w) for w in weights],
        out_specs=pl.BlockSpec((1, BATCH_BLK, LANES), lambda i: (i, 0, 0)),
        compiler_params=pltpu.CompilerParams(
            dimension_semantics=("parallel",)),   # shards blocks across v7x's 2 TCs
    )(xb, *weights)
    return out[:, :, 0].reshape(btotal, 1)


# ---------------------------------------------------------------------------
# Pure-JAX f32 reference of the PyTorch module in eval mode (for validation).
# ---------------------------------------------------------------------------
def reference_forward(x, params, temperature=TEMPERATURE):
    hp = jax.lax.Precision.HIGHEST
    B, T, _ = x.shape
    H, L = HIDDEN_DIM, NUM_LAYERS
    layer_in = x
    for l in range(L):
        w_ih, w_hh = params["w_ih"][l], params["w_hh"][l]
        b = params["b_ih"][l] + params["b_hh"][l]
        h = jnp.zeros((B, H), jnp.float32)
        c = jnp.zeros((B, H), jnp.float32)
        outs = []
        for t in range(T):
            a = (jnp.dot(layer_in[:, t, :], w_ih.T, precision=hp)
                 + jnp.dot(h, w_hh.T, precision=hp) + b)
            i = jax.nn.sigmoid(a[:, 0:H])
            f = jax.nn.sigmoid(a[:, H:2 * H])
            g = jnp.tanh(a[:, 2 * H:3 * H])
            o = jax.nn.sigmoid(a[:, 3 * H:4 * H])
            c = f * c + i * g
            h = o * jnp.tanh(c)
            outs.append(h)
        layer_in = jnp.stack(outs, axis=1)
    z = layer_in[:, -1, :]
    for idx in (1, 2, 3):
        z = jnp.dot(z, params[f"w{idx}"].T, precision=hp) + params[f"b{idx}"]
        z = ((z - params[f"bn{idx}_m"])
             / jnp.sqrt(params[f"bn{idx}_v"] + BN_EPS) * params[f"bn{idx}_g"]
             + params[f"bn{idx}_b"])
        z = jnp.maximum(z, 0.0)
    z = jnp.dot(z, params["w4"].T, precision=hp) + params["b4"]
    return jax.nn.sigmoid(z / temperature)


if __name__ == "__main__":
    key = jax.random.PRNGKey(0)
    k_param, k_x = jax.random.split(key)
    params = init_params(k_param, INPUT_DIM, HIDDEN_DIM, NUM_LAYERS)
    folded = fold_params(params, TEMPERATURE)   # one-time prep, reused across calls
    x = jax.random.normal(k_x, (BATCH, SEQ, INPUT_DIM), jnp.float32)

    y = jax.block_until_ready(bayesian_lstm_forward(x, folded))
    assert y.shape == (BATCH, 1)
    assert bool(jnp.all(jnp.isfinite(y)))
    assert bool(jnp.all((y >= 0.0) & (y <= 1.0)))

    # Loose-tolerance check vs the f32 reference (kernel uses bf16 MXU operands).
    y_ref = reference_forward(x, params, TEMPERATURE)
    max_err = float(jnp.max(jnp.abs(y - y_ref)))
    assert max_err < 5e-2, f"kernel deviates from f32 reference: max_err={max_err}"
    print("KERNEL_OK")
</pallas_src>

<mosaic_0001>
module attributes {stable_mosaic.version = 11 : i64} {
  func.func @fused_kernel(%arg0: i32, %arg1: memref<1x64x32xbf16, #tpu.memory_space<vmem>>, %arg2: memref<2x32x128xbf16, #tpu.memory_space<vmem>>, %arg3: memref<2x32x128xbf16, #tpu.memory_space<vmem>>, %arg4: memref<2x1x128xf32, #tpu.memory_space<vmem>>, %arg5: memref<32x256xbf16, #tpu.memory_space<vmem>>, %arg6: memref<1x256xf32, #tpu.memory_space<vmem>>, %arg7: memref<256x128xbf16, #tpu.memory_space<vmem>>, %arg8: memref<1x128xf32, #tpu.memory_space<vmem>>, %arg9: memref<128x64xbf16, #tpu.memory_space<vmem>>, %arg10: memref<1x64xf32, #tpu.memory_space<vmem>>, %arg11: memref<64x128xbf16, #tpu.memory_space<vmem>>, %arg12: memref<1x128xf32, #tpu.memory_space<vmem>>, %arg13: memref<1x8x128xf32, #tpu.memory_space<vmem>>) attributes {dimension_semantics = [#tpu.dimension_semantics<parallel>], iteration_bounds = array<i64: 4>, scalar_prefetch = 0 : i64, scratch_operands = 0 : i64, tpu.core_type = #tpu.core_type<tc>, window_params = [{transform_indices = @transform_0, window_bounds = array<i64: 1, 64, 32>}, {pipeline_mode = #tpu.pipeline_mode<synchronous>, transform_indices = @transform_1, window_bounds = array<i64: 2, 32, 128>}, {pipeline_mode = #tpu.pipeline_mode<synchronous>, transform_indices = @transform_2, window_bounds = array<i64: 2, 32, 128>}, {pipeline_mode = #tpu.pipeline_mode<synchronous>, transform_indices = @transform_3, window_bounds = array<i64: 2, 1, 128>}, {pipeline_mode = #tpu.pipeline_mode<synchronous>, transform_indices = @transform_4, window_bounds = array<i64: 32, 256>}, {pipeline_mode = #tpu.pipeline_mode<synchronous>, transform_indices = @transform_5, window_bounds = array<i64: 1, 256>}, {pipeline_mode = #tpu.pipeline_mode<synchronous>, transform_indices = @transform_6, window_bounds = array<i64: 256, 128>}, {pipeline_mode = #tpu.pipeline_mode<synchronous>, transform_indices = @transform_7, window_bounds = array<i64: 1, 128>}, {pipeline_mode = #tpu.pipeline_mode<synchronous>, transform_indices = @transform_8, window_bounds = array<i64: 128, 64>}, {pipeline_mode = #tpu.pipeline_mode<synchronous>, transform_indices = @transform_9, window_bounds = array<i64: 1, 64>}, {pipeline_mode = #tpu.pipeline_mode<synchronous>, transform_indices = @transform_10, window_bounds = array<i64: 64, 128>}, {pipeline_mode = #tpu.pipeline_mode<synchronous>, transform_indices = @transform_11, window_bounds = array<i64: 1, 128>}, {transform_indices = @transform_12, window_bounds = array<i64: 1, 8, 128>}]} {
    %c0 = arith.constant 0 : index
    %c0_0 = arith.constant 0 : index
    %c0_1 = arith.constant 0 : index
    %0 = vector.load %arg1[%c0, %c0_0, %c0_1] : memref<1x64x32xbf16, #tpu.memory_space<vmem>>, vector<1x64x32xbf16>
    %1 = vector.shape_cast %0 : vector<1x64x32xbf16> to vector<64x32xbf16>
    %c0_2 = arith.constant 0 : index
    %c0_3 = arith.constant 0 : index
    %c0_4 = arith.constant 0 : index
    %2 = vector.load %arg2[%c0_2, %c0_3, %c0_4] : memref<2x32x128xbf16, #tpu.memory_space<vmem>>, vector<1x32x128xbf16>
    %3 = vector.shape_cast %2 : vector<1x32x128xbf16> to vector<32x128xbf16>
    %cst = arith.constant dense<0.000000e+00> : vector<64x128xf32>
    %4 = tpu.matmul %1, %3, %cst {dimension_numbers = #tpu.dot_dimension_numbers<[1], [0], [0], [1], [0, 0, 1, 1], [], []>} : vector<64x32xbf16>, vector<32x128xbf16>, vector<64x128xf32> -> vector<64x128xf32>
    %c0_5 = arith.constant 0 : index
    %c0_6 = arith.constant 0 : index
    %c0_7 = arith.constant 0 : index
    %5 = vector.load %arg4[%c0_5, %c0_6, %c0_7] : memref<2x1x128xf32, #tpu.memory_space<vmem>>, vector<1x1x128xf32>
    %6 = vector.shape_cast %5 : vector<1x1x128xf32> to vector<1x128xf32>
    %7 = vector.broadcast %6 : vector<1x128xf32> to vector<64x128xf32>
    %8 = arith.addf %4, %7 : vector<64x128xf32>
    %cst_8 = arith.constant 0.000000e+00 : f32
    %9 = vector.broadcast %cst_8 : f32 to vector<8x32xf32>
    %cst_9 = arith.constant 0.000000e+00 : f32
    %10 = vector.broadcast %cst_9 : f32 to vector<8x32xf32>
    %cst_10 = arith.constant 0.000000e+00 : f32
    %11 = vector.broadcast %cst_10 : f32 to vector<8x32xf32>
    %cst_11 = arith.constant 0.000000e+00 : f32
    %12 = vector.broadcast %cst_11 : f32 to vector<8x32xf32>
    %13 = vector.extract_strided_slice %8 {offsets = [0, 0], sizes = [8, 128], strides = [1, 1]} : vector<64x128xf32> to vector<8x128xf32>
    %14 = arith.truncf %9 : vector<8x32xf32> to vector<8x32xbf16>
    %c0_12 = arith.constant 0 : index
    %c0_13 = arith.constant 0 : index
    %c0_14 = arith.constant 0 : index
    %15 = vector.load %arg3[%c0_12, %c0_13, %c0_14] : memref<2x32x128xbf16, #tpu.memory_space<vmem>>, vector<1x32x128xbf16>
    %16 = vector.shape_cast %15 : vector<1x32x128xbf16> to vector<32x128xbf16>
    %cst_15 = arith.constant dense<0.000000e+00> : vector<8x128xf32>
    %17 = tpu.matmul %14, %16, %cst_15 {dimension_numbers = #tpu.dot_dimension_numbers<[1], [0], [0], [1], [0, 0, 1, 1], [], []>} : vector<8x32xbf16>, vector<32x128xbf16>, vector<8x128xf32> -> vector<8x128xf32>
    %18 = arith.addf %17, %13 : vector<8x128xf32>
    %19 = math.tanh %18 : vector<8x128xf32>
    %20 = vector.extract_strided_slice %19 {offsets = [0, 0], sizes = [8, 32], strides = [1, 1]} : vector<8x128xf32> to vector<8x32xf32>
    %cst_16 = arith.constant 5.000000e-01 : f32
    %21 = vector.broadcast %cst_16 : f32 to vector<8x32xf32>
    %22 = arith.mulf %21, %20 : vector<8x32xf32>
    %cst_17 = arith.constant 5.000000e-01 : f32
    %23 = vector.broadcast %cst_17 : f32 to vector<8x32xf32>
    %24 = arith.addf %22, %23 : vector<8x32xf32>
    %25 = vector.extract_strided_slice %19 {offsets = [0, 32], sizes = [8, 32], strides = [1, 1]} : vector<8x128xf32> to vector<8x32xf32>
    %cst_18 = arith.constant 5.000000e-01 : f32
    %26 = vector.broadcast %cst_18 : f32 to vector<8x32xf32>
    %27 = arith.mulf %26, %25 : vector<8x32xf32>
    %cst_19 = arith.constant 5.000000e-01 : f32
    %28 = vector.broadcast %cst_19 : f32 to vector<8x32xf32>
    %29 = arith.addf %27, %28 : vector<8x32xf32>
    %30 = vector.extract_strided_slice %19 {offsets = [0, 64], sizes = [8, 32], strides = [1, 1]} : vector<8x128xf32> to vector<8x32xf32>
    %31 = vector.extract_strided_slice %19 {offsets = [0, 96], sizes = [8, 32], strides = [1, 1]} : vector<8x128xf32> to vector<8x32xf32>
    %cst_20 = arith.constant 5.000000e-01 : f32
    %32 = vector.broadcast %cst_20 : f32 to vector<8x32xf32>
    %33 = arith.mulf %32, %31 : vector<8x32xf32>
    %cst_21 = arith.constant 5.000000e-01 : f32
    %34 = vector.broadcast %cst_21 : f32 to vector<8x32xf32>
    %35 = arith.addf %33, %34 : vector<8x32xf32>
    %36 = arith.mulf %29, %11 : vector<8x32xf32>
    %37 = arith.mulf %24, %30 : vector<8x32xf32>
    %38 = arith.addf %36, %37 : vector<8x32xf32>
    %39 = math.tanh %38 : vector<8x32xf32>
    %40 = arith.mulf %35, %39 : vector<8x32xf32>
    %41 = arith.truncf %40 : vector<8x32xf32> to vector<8x32xbf16>
    %c1 = arith.constant 1 : index
    %c0_22 = arith.constant 0 : index
    %c0_23 = arith.constant 0 : index
    %42 = vector.load %arg2[%c1, %c0_22, %c0_23] : memref<2x32x128xbf16, #tpu.memory_space<vmem>>, vector<1x32x128xbf16>
    %43 = vector.shape_cast %42 : vector<1x32x128xbf16> to vector<32x128xbf16>
    %cst_24 = arith.constant dense<0.000000e+00> : vector<8x128xf32>
    %44 = tpu.matmul %41, %43, %cst_24 {dimension_numbers = #tpu.dot_dimension_numbers<[1], [0], [0], [1], [0, 0, 1, 1], [], []>} : vector<8x32xbf16>, vector<32x128xbf16>, vector<8x128xf32> -> vector<8x128xf32>
    %c1_25 = arith.constant 1 : index
    %c0_26 = arith.constant 0 : index
    %c0_27 = arith.constant 0 : index
    %45 = vector.load %arg4[%c1_25, %c0_26, %c0_27] : memref<2x1x128xf32, #tpu.memory_space<vmem>>, vector<1x1x128xf32>
    %46 = vector.shape_cast %45 : vector<1x1x128xf32> to vector<1x128xf32>
    %47 = vector.broadcast %46 : vector<1x128xf32> to vector<8x128xf32>
    %48 = arith.addf %44, %47 : vector<8x128xf32>
    %49 = arith.truncf %10 : vector<8x32xf32> to vector<8x32xbf16>
    %c1_28 = arith.constant 1 : index
    %c0_29 = arith.constant 0 : index
    %c0_30 = arith.constant 0 : index
    %50 = vector.load %arg3[%c1_28, %c0_29, %c0_30] : memref<2x32x128xbf16, #tpu.memory_space<vmem>>, vector<1x32x128xbf16>
    %51 = vector.shape_cast %50 : vector<1x32x128xbf16> to vector<32x128xbf16>
    %cst_31 = arith.constant dense<0.000000e+00> : vector<8x128xf32>
    %52 = tpu.matmul %49, %51, %cst_31 {dimension_numbers = #tpu.dot_dimension_numbers<[1], [0], [0], [1], [0, 0, 1, 1], [], []>} : vector<8x32xbf16>, vector<32x128xbf16>, vector<8x128xf32> -> vector<8x128xf32>
    %53 = arith.addf %52, %48 : vector<8x128xf32>
    %54 = math.tanh %53 : vector<8x128xf32>
    %55 = vector.extract_strided_slice %54 {offsets = [0, 0], sizes = [8, 32], strides = [1, 1]} : vector<8x128xf32> to vector<8x32xf32>
    %cst_32 = arith.constant 5.000000e-01 : f32
    %56 = vector.broadcast %cst_32 : f32 to vector<8x32xf32>
    %57 = arith.mulf %56, %55 : vector<8x32xf32>
    %cst_33 = arith.constant 5.000000e-01 : f32
    %58 = vector.broadcast %cst_33 : f32 to vector<8x32xf32>
    %59 = arith.addf %57, %58 : vector<8x32xf32>
    %60 = vector.extract_strided_slice %54 {offsets = [0, 32], sizes = [8, 32], strides = [1, 1]} : vector<8x128xf32> to vector<8x32xf32>
    %cst_34 = arith.constant 5.000000e-01 : f32
    %61 = vector.broadcast %cst_34 : f32 to vector<8x32xf32>
    %62 = arith.mulf %61, %60 : vector<8x32xf32>
    %cst_35 = arith.constant 5.000000e-01 : f32
    %63 = vector.broadcast %cst_35 : f32 to vector<8x32xf32>
    %64 = arith.addf %62, %63 : vector<8x32xf32>
    %65 = vector.extract_strided_slice %54 {offsets = [0, 64], sizes = [8, 32], strides = [1, 1]} : vector<8x128xf32> to vector<8x32xf32>
    %66 = vector.extract_strided_slice %54 {offsets = [0, 96], sizes = [8, 32], strides = [1, 1]} : vector<8x128xf32> to vector<8x32xf32>
    %cst_36 = arith.constant 5.000000e-01 : f32
    %67 = vector.broadcast %cst_36 : f32 to vector<8x32xf32>
    %68 = arith.mulf %67, %66 : vector<8x32xf32>
    %cst_37 = arith.constant 5.000000e-01 : f32
    %69 = vector.broadcast %cst_37 : f32 to vector<8x32xf32>
    %70 = arith.addf %68, %69 : vector<8x32xf32>
    %71 = arith.mulf %64, %12 : vector<8x32xf32>
    %72 = arith.mulf %59, %65 : vector<8x32xf32>
    %73 = arith.addf %71, %72 : vector<8x32xf32>
    %74 = math.tanh %73 : vector<8x32xf32>
    %75 = arith.mulf %70, %74 : vector<8x32xf32>
    %76 = vector.extract_strided_slice %8 {offsets = [8, 0], sizes = [8, 128], strides = [1, 1]} : vector<64x128xf32> to vector<8x128xf32>
    %77 = arith.truncf %40 : vector<8x32xf32> to vector<8x32xbf16>
    %c0_38 = arith.constant 0 : index
    %c0_39 = arith.constant 0 : index
    %c0_40 = arith.constant 0 : index
    %78 = vector.load %arg3[%c0_38, %c0_39, %c0_40] : memref<2x32x128xbf16, #tpu.memory_space<vmem>>, vector<1x32x128xbf16>
    %79 = vector.shape_cast %78 : vector<1x32x128xbf16> to vector<32x128xbf16>
    %cst_41 = arith.constant dense<0.000000e+00> : vector<8x128xf32>
    %80 = tpu.matmul %77, %79, %cst_41 {dimension_numbers = #tpu.dot_dimension_numbers<[1], [0], [0], [1], [0, 0, 1, 1], [], []>} : vector<8x32xbf16>, vector<32x128xbf16>, vector<8x128xf32> -> vector<8x128xf32>
    %81 = arith.addf %80, %76 : vector<8x128xf32>
    %82 = math.tanh %81 : vector<8x128xf32>
    %83 = vector.extract_strided_slice %82 {offsets = [0, 0], sizes = [8, 32], strides = [1, 1]} : vector<8x128xf32> to vector<8x32xf32>
    %cst_42 = arith.constant 5.000000e-01 : f32
    %84 = vector.broadcast %cst_42 : f32 to vector<8x32xf32>
    %85 = arith.mulf %84, %83 : vector<8x32xf32>
    %cst_43 = arith.constant 5.000000e-01 : f32
    %86 = vector.broadcast %cst_43 : f32 to vector<8x32xf32>
    %87 = arith.addf %85, %86 : vector<8x32xf32>
    %88 = vector.extract_strided_slice %82 {offsets = [0, 32], sizes = [8, 32], strides = [1, 1]} : vector<8x128xf32> to vector<8x32xf32>
    %cst_44 = arith.constant 5.000000e-01 : f32
    %89 = vector.broadcast %cst_44 : f32 to vector<8x32xf32>
    %90 = arith.mulf %89, %88 : vector<8x32xf32>
    %cst_45 = arith.constant 5.000000e-01 : f32
    %91 = vector.broadcast %cst_45 : f32 to vector<8x32xf32>
    %92 = arith.addf %90, %91 : vector<8x32xf32>
    %93 = vector.extract_strided_slice %82 {offsets = [0, 64], sizes = [8, 32], strides = [1, 1]} : vector<8x128xf32> to vector<8x32xf32>
    %94 = vector.extract_strided_slice %82 {offsets = [0, 96], sizes = [8, 32], strides = [1, 1]} : vector<8x128xf32> to vector<8x32xf32>
    %cst_46 = arith.constant 5.000000e-01 : f32
    %95 = vector.broadcast %cst_46 : f32 to vector<8x32xf32>
    %96 = arith.mulf %95, %94 : vector<8x32xf32>
    %cst_47 = arith.constant 5.000000e-01 : f32
    %97 = vector.broadcast %cst_47 : f32 to vector<8x32xf32>
    %98 = arith.addf %96, %97 : vector<8x32xf32>
    %99 = arith.mulf %92, %38 : vector<8x32xf32>
    %100 = arith.mulf %87, %93 : vector<8x32xf32>
    %101 = arith.addf %99, %100 : vector<8x32xf32>
    %102 = math.tanh %101 : vector<8x32xf32>
    %103 = arith.mulf %98, %102 : vector<8x32xf32>
    %104 = arith.truncf %103 : vector<8x32xf32> to vector<8x32xbf16>
    %c1_48 = arith.constant 1 : index
    %c0_49 = arith.constant 0 : index
    %c0_50 = arith.constant 0 : index
    %105 = vector.load %arg2[%c1_48, %c0_49, %c0_50] : memref<2x32x128xbf16, #tpu.memory_space<vmem>>, vector<1x32x128xbf16>
    %106 = vector.shape_cast %105 : vector<1x32x128xbf16> to vector<32x128xbf16>
    %cst_51 = arith.constant dense<0.000000e+00> : vector<8x128xf32>
    %107 = tpu.matmul %104, %106, %cst_51 {dimension_numbers = #tpu.dot_dimension_numbers<[1], [0], [0], [1], [0, 0, 1, 1], [], []>} : vector<8x32xbf16>, vector<32x128xbf16>, vector<8x128xf32> -> vector<8x128xf32>
    %c1_52 = arith.constant 1 : index
    %c0_53 = arith.constant 0 : index
    %c0_54 = arith.constant 0 : index
    %108 = vector.load %arg4[%c1_52, %c0_53, %c0_54] : memref<2x1x128xf32, #tpu.memory_space<vmem>>, vector<1x1x128xf32>
    %109 = vector.shape_cast %108 : vector<1x1x128xf32> to vector<1x128xf32>
    %110 = vector.broadcast %109 : vector<1x128xf32> to vector<8x128xf32>
    %111 = arith.addf %107, %110 : vector<8x128xf32>
    %112 = arith.truncf %75 : vector<8x32xf32> to vector<8x32xbf16>
    %c1_55 = arith.constant 1 : index
    %c0_56 = arith.constant 0 : index
    %c0_57 = arith.constant 0 : index
    %113 = vector.load %arg3[%c1_55, %c0_56, %c0_57] : memref<2x32x128xbf16, #tpu.memory_space<vmem>>, vector<1x32x128xbf16>
    %114 = vector.shape_cast %113 : vector<1x32x128xbf16> to vector<32x128xbf16>
    %cst_58 = arith.constant dense<0.000000e+00> : vector<8x128xf32>
    %115 = tpu.matmul %112, %114, %cst_58 {dimension_numbers = #tpu.dot_dimension_numbers<[1], [0], [0], [1], [0, 0, 1, 1], [], []>} : vector<8x32xbf16>, vector<32x128xbf16>, vector<8x128xf32> -> vector<8x128xf32>
    %116 = arith.addf %115, %111 : vector<8x128xf32>
    %117 = math.tanh %116 : vector<8x128xf32>
    %118 = vector.extract_strided_slice %117 {offsets = [0, 0], sizes = [8, 32], strides = [1, 1]} : vector<8x128xf32> to vector<8x32xf32>
    %cst_59 = arith.constant 5.000000e-01 : f32
    %119 = vector.broadcast %cst_59 : f32 to vector<8x32xf32>
    %120 = arith.mulf %119, %118 : vector<8x32xf32>
    %cst_60 = arith.constant 5.000000e-01 : f32
    %121 = vector.broadcast %cst_60 : f32 to vector<8x32xf32>
    %122 = arith.addf %120, %121 : vector<8x32xf32>
    %123 = vector.extract_strided_slice %117 {offsets = [0, 32], sizes = [8, 32], strides = [1, 1]} : vector<8x128xf32> to vector<8x32xf32>
    %cst_61 = arith.constant 5.000000e-01 : f32
    %124 = vector.broadcast %cst_61 : f32 to vector<8x32xf32>
    %125 = arith.mulf %124, %123 : vector<8x32xf32>
    %cst_62 = arith.constant 5.000000e-01 : f32
    %126 = vector.broadcast %cst_62 : f32 to vector<8x32xf32>
    %127 = arith.addf %125, %126 : vector<8x32xf32>
    %128 = vector.extract_strided_slice %117 {offsets = [0, 64], sizes = [8, 32], strides = [1, 1]} : vector<8x128xf32> to vector<8x32xf32>
    %129 = vector.extract_strided_slice %117 {offsets = [0, 96], sizes = [8, 32], strides = [1, 1]} : vector<8x128xf32> to vector<8x32xf32>
    %cst_63 = arith.constant 5.000000e-01 : f32
    %130 = vector.broadcast %cst_63 : f32 to vector<8x32xf32>
    %131 = arith.mulf %130, %129 : vector<8x32xf32>
    %cst_64 = arith.constant 5.000000e-01 : f32
    %132 = vector.broadcast %cst_64 : f32 to vector<8x32xf32>
    %133 = arith.addf %131, %132 : vector<8x32xf32>
    %134 = arith.mulf %127, %73 : vector<8x32xf32>
    %135 = arith.mulf %122, %128 : vector<8x32xf32>
    %136 = arith.addf %134, %135 : vector<8x32xf32>
    %137 = math.tanh %136 : vector<8x32xf32>
    %138 = arith.mulf %133, %137 : vector<8x32xf32>
    %139 = vector.extract_strided_slice %8 {offsets = [16, 0], sizes = [8, 128], strides = [1, 1]} : vector<64x128xf32> to vector<8x128xf32>
    %140 = arith.truncf %103 : vector<8x32xf32> to vector<8x32xbf16>
    %c0_65 = arith.constant 0 : index
    %c0_66 = arith.constant 0 : index
    %c0_67 = arith.constant 0 : index
    %141 = vector.load %arg3[%c0_65, %c0_66, %c0_67] : memref<2x32x128xbf16, #tpu.memory_space<vmem>>, vector<1x32x128xbf16>
    %142 = vector.shape_cast %141 : vector<1x32x128xbf16> to vector<32x128xbf16>
    %cst_68 = arith.constant dense<0.000000e+00> : vector<8x128xf32>
    %143 = tpu.matmul %140, %142, %cst_68 {dimension_numbers = #tpu.dot_dimension_numbers<[1], [0], [0], [1], [0, 0, 1, 1], [], []>} : vector<8x32xbf16>, vector<32x128xbf16>, vector<8x128xf32> -> vector<8x128xf32>
    %144 = arith.addf %143, %139 : vector<8x128xf32>
    %145 = math.tanh %144 : vector<8x128xf32>
    %146 = vector.extract_strided_slice %145 {offsets = [0, 0], sizes = [8, 32], strides = [1, 1]} : vector<8x128xf32> to vector<8x32xf32>
    %cst_69 = arith.constant 5.000000e-01 : f32
    %147 = vector.broadcast %cst_69 : f32 to vector<8x32xf32>
    %148 = arith.mulf %147, %146 : vector<8x32xf32>
    %cst_70 = arith.constant 5.000000e-01 : f32
    %149 = vector.broadcast %cst_70 : f32 to vector<8x32xf32>
    %150 = arith.addf %148, %149 : vector<8x32xf32>
    %151 = vector.extract_strided_slice %145 {offsets = [0, 32], sizes = [8, 32], strides = [1, 1]} : vector<8x128xf32> to vector<8x32xf32>
    %cst_71 = arith.constant 5.000000e-01 : f32
    %152 = vector.broadcast %cst_71 : f32 to vector<8x32xf32>
    %153 = arith.mulf %152, %151 : vector<8x32xf32>
    %cst_72 = arith.constant 5.000000e-01 : f32
    %154 = vector.broadcast %cst_72 : f32 to vector<8x32xf32>
    %155 = arith.addf %153, %154 : vector<8x32xf32>
    %156 = vector.extract_strided_slice %145 {offsets = [0, 64], sizes = [8, 32], strides = [1, 1]} : vector<8x128xf32> to vector<8x32xf32>
    %157 = vector.extract_strided_slice %145 {offsets = [0, 96], sizes = [8, 32], strides = [1, 1]} : vector<8x128xf32> to vector<8x32xf32>
    %cst_73 = arith.constant 5.000000e-01 : f32
    %158 = vector.broadcast %cst_73 : f32 to vector<8x32xf32>
    %159 = arith.mulf %158, %157 : vector<8x32xf32>
    %cst_74 = arith.constant 5.000000e-01 : f32
    %160 = vector.broadcast %cst_74 : f32 to vector<8x32xf32>
    %161 = arith.addf %159, %160 : vector<8x32xf32>
    %162 = arith.mulf %155, %101 : vector<8x32xf32>
    %163 = arith.mulf %150, %156 : vector<8x32xf32>
    %164 = arith.addf %162, %163 : vector<8x32xf32>
    %165 = math.tanh %164 : vector<8x32xf32>
    %166 = arith.mulf %161, %165 : vector<8x32xf32>
    %167 = arith.truncf %166 : vector<8x32xf32> to vector<8x32xbf16>
    %c1_75 = arith.constant 1 : index
    %c0_76 = arith.constant 0 : index
    %c0_77 = arith.constant 0 : index
    %168 = vector.load %arg2[%c1_75, %c0_76, %c0_77] : memref<2x32x128xbf16, #tpu.memory_space<vmem>>, vector<1x32x128xbf16>
    %169 = vector.shape_cast %168 : vector<1x32x128xbf16> to vector<32x128xbf16>
    %cst_78 = arith.constant dense<0.000000e+00> : vector<8x128xf32>
    %170 = tpu.matmul %167, %169, %cst_78 {dimension_numbers = #tpu.dot_dimension_numbers<[1], [0], [0], [1], [0, 0, 1, 1], [], []>} : vector<8x32xbf16>, vector<32x128xbf16>, vector<8x128xf32> -> vector<8x128xf32>
    %c1_79 = arith.constant 1 : index
    %c0_80 = arith.constant 0 : index
    %c0_81 = arith.constant 0 : index
    %171 = vector.load %arg4[%c1_79, %c0_80, %c0_81] : memref<2x1x128xf32, #tpu.memory_space<vmem>>, vector<1x1x128xf32>
    %172 = vector.shape_cast %171 : vector<1x1x128xf32> to vector<1x128xf32>
    %173 = vector.broadcast %172 : vector<1x128xf32> to vector<8x128xf32>
    %174 = arith.addf %170, %173 : vector<8x128xf32>
    %175 = arith.truncf %138 : vector<8x32xf32> to vector<8x32xbf16>
    %c1_82 = arith.constant 1 : index
    %c0_83 = arith.constant 0 : index
    %c0_84 = arith.constant 0 : index
    %176 = vector.load %arg3[%c1_82, %c0_83, %c0_84] : memref<2x32x128xbf16, #tpu.memory_space<vmem>>, vector<1x32x128xbf16>
    %177 = vector.shape_cast %176 : vector<1x32x128xbf16> to vector<32x128xbf16>
    %cst_85 = arith.constant dense<0.000000e+00> : vector<8x128xf32>
    %178 = tpu.matmul %175, %177, %cst_85 {dimension_numbers = #tpu.dot_dimension_numbers<[1], [0], [0], [1], [0, 0, 1, 1], [], []>} : vector<8x32xbf16>, vector<32x128xbf16>, vector<8x128xf32> -> vector<8x128xf32>
    %179 = arith.addf %178, %174 : vector<8x128xf32>
    %180 = math.tanh %179 : vector<8x128xf32>
    %181 = vector.extract_strided_slice %180 {offsets = [0, 0], sizes = [8, 32], strides = [1, 1]} : vector<8x128xf32> to vector<8x32xf32>
    %cst_86 = arith.constant 5.000000e-01 : f32
    %182 = vector.broadcast %cst_86 : f32 to vector<8x32xf32>
    %183 = arith.mulf %182, %181 : vector<8x32xf32>
    %cst_87 = arith.constant 5.000000e-01 : f32
    %184 = vector.broadcast %cst_87 : f32 to vector<8x32xf32>
    %185 = arith.addf %183, %184 : vector<8x32xf32>
    %186 = vector.extract_strided_slice %180 {offsets = [0, 32], sizes = [8, 32], strides = [1, 1]} : vector<8x128xf32> to vector<8x32xf32>
    %cst_88 = arith.constant 5.000000e-01 : f32
    %187 = vector.broadcast %cst_88 : f32 to vector<8x32xf32>
    %188 = arith.mulf %187, %186 : vector<8x32xf32>
    %cst_89 = arith.constant 5.000000e-01 : f32
    %189 = vector.broadcast %cst_89 : f32 to vector<8x32xf32>
    %190 = arith.addf %188, %189 : vector<8x32xf32>
    %191 = vector.extract_strided_slice %180 {offsets = [0, 64], sizes = [8, 32], strides = [1, 1]} : vector<8x128xf32> to vector<8x32xf32>
    %192 = vector.extract_strided_slice %180 {offsets = [0, 96], sizes = [8, 32], strides = [1, 1]} : vector<8x128xf32> to vector<8x32xf32>
    %cst_90 = arith.constant 5.000000e-01 : f32
    %193 = vector.broadcast %cst_90 : f32 to vector<8x32xf32>
    %194 = arith.mulf %193, %192 : vector<8x32xf32>
    %cst_91 = arith.constant 5.000000e-01 : f32
    %195 = vector.broadcast %cst_91 : f32 to vector<8x32xf32>
    %196 = arith.addf %194, %195 : vector<8x32xf32>
    %197 = arith.mulf %190, %136 : vector<8x32xf32>
    %198 = arith.mulf %185, %191 : vector<8x32xf32>
    %199 = arith.addf %197, %198 : vector<8x32xf32>
    %200 = math.tanh %199 : vector<8x32xf32>
    %201 = arith.mulf %196, %200 : vector<8x32xf32>
    %202 = vector.extract_strided_slice %8 {offsets = [24, 0], sizes = [8, 128], strides = [1, 1]} : vector<64x128xf32> to vector<8x128xf32>
    %203 = arith.truncf %166 : vector<8x32xf32> to vector<8x32xbf16>
    %c0_92 = arith.constant 0 : index
    %c0_93 = arith.constant 0 : index
    %c0_94 = arith.constant 0 : index
    %204 = vector.load %arg3[%c0_92, %c0_93, %c0_94] : memref<2x32x128xbf16, #tpu.memory_space<vmem>>, vector<1x32x128xbf16>
    %205 = vector.shape_cast %204 : vector<1x32x128xbf16> to vector<32x128xbf16>
    %cst_95 = arith.constant dense<0.000000e+00> : vector<8x128xf32>
    %206 = tpu.matmul %203, %205, %cst_95 {dimension_numbers = #tpu.dot_dimension_numbers<[1], [0], [0], [1], [0, 0, 1, 1], [], []>} : vector<8x32xbf16>, vector<32x128xbf16>, vector<8x128xf32> -> vector<8x128xf32>
    %207 = arith.addf %206, %202 : vector<8x128xf32>
    %208 = math.tanh %207 : vector<8x128xf32>
    %209 = vector.extract_strided_slice %208 {offsets = [0, 0], sizes = [8, 32], strides = [1, 1]} : vector<8x128xf32> to vector<8x32xf32>
    %cst_96 = arith.constant 5.000000e-01 : f32
    %210 = vector.broadcast %cst_96 : f32 to vector<8x32xf32>
    %211 = arith.mulf %210, %209 : vector<8x32xf32>
    %cst_97 = arith.constant 5.000000e-01 : f32
    %212 = vector.broadcast %cst_97 : f32 to vector<8x32xf32>
    %213 = arith.addf %211, %212 : vector<8x32xf32>
    %214 = vector.extract_strided_slice %208 {offsets = [0, 32], sizes = [8, 32], strides = [1, 1]} : vector<8x128xf32> to vector<8x32xf32>
    %cst_98 = arith.constant 5.000000e-01 : f32
    %215 = vector.broadcast %cst_98 : f32 to vector<8x32xf32>
    %216 = arith.mulf %215, %214 : vector<8x32xf32>
    %cst_99 = arith.constant 5.000000e-01 : f32
    %217 = vector.broadcast %cst_99 : f32 to vector<8x32xf32>
    %218 = arith.addf %216, %217 : vector<8x32xf32>
    %219 = vector.extract_strided_slice %208 {offsets = [0, 64], sizes = [8, 32], strides = [1, 1]} : vector<8x128xf32> to vector<8x32xf32>
    %220 = vector.extract_strided_slice %208 {offsets = [0, 96], sizes = [8, 32], strides = [1, 1]} : vector<8x128xf32> to vector<8x32xf32>
    %cst_100 = arith.constant 5.000000e-01 : f32
    %221 = vector.broadcast %cst_100 : f32 to vector<8x32xf32>
    %222 = arith.mulf %221, %220 : vector<8x32xf32>
    %cst_101 = arith.constant 5.000000e-01 : f32
    %223 = vector.broadcast %cst_101 : f32 to vector<8x32xf32>
    %224 = arith.addf %222, %223 : vector<8x32xf32>
    %225 = arith.mulf %218, %164 : vector<8x32xf32>
    %226 = arith.mulf %213, %219 : vector<8x32xf32>
    %227 = arith.addf %225, %226 : vector<8x32xf32>
    %228 = math.tanh %227 : vector<8x32xf32>
    %229 = arith.mulf %224, %228 : vector<8x32xf32>
    %230 = arith.truncf %229 : vector<8x32xf32> to vector<8x32xbf16>
    %c1_102 = arith.constant 1 : index
    %c0_103 = arith.constant 0 : index
    %c0_104 = arith.constant 0 : index
    %231 = vector.load %arg2[%c1_102, %c0_103, %c0_104] : memref<2x32x128xbf16, #tpu.memory_space<vmem>>, vector<1x32x128xbf16>
    %232 = vector.shape_cast %231 : vector<1x32x128xbf16> to vector<32x128xbf16>
    %cst_105 = arith.constant dense<0.000000e+00> : vector<8x128xf32>
    %233 = tpu.matmul %230, %232, %cst_105 {dimension_numbers = #tpu.dot_dimension_numbers<[1], [0], [0], [1], [0, 0, 1, 1], [], []>} : vector<8x32xbf16>, vector<32x128xbf16>, vector<8x128xf32> -> vector<8x128xf32>
    %c1_106 = arith.constant 1 : index
    %c0_107 = arith.constant 0 : index
    %c0_108 = arith.constant 0 : index
    %234 = vector.load %arg4[%c1_106, %c0_107, %c0_108] : memref<2x1x128xf32, #tpu.memory_space<vmem>>, vector<1x1x128xf32>
    %235 = vector.shape_cast %234 : vector<1x1x128xf32> to vector<1x128xf32>
    %236 = vector.broadcast %235 : vector<1x128xf32> to vector<8x128xf32>
    %237 = arith.addf %233, %236 : vector<8x128xf32>
    %238 = arith.truncf %201 : vector<8x32xf32> to vector<8x32xbf16>
    %c1_109 = arith.constant 1 : index
    %c0_110 = arith.constant 0 : index
    %c0_111 = arith.constant 0 : index
    %239 = vector.load %arg3[%c1_109, %c0_110, %c0_111] : memref<2x32x128xbf16, #tpu.memory_space<vmem>>, vector<1x32x128xbf16>
    %240 = vector.shape_cast %239 : vector<1x32x128xbf16> to vector<32x128xbf16>
    %cst_112 = arith.constant dense<0.000000e+00> : vector<8x128xf32>
    %241 = tpu.matmul %238, %240, %cst_112 {dimension_numbers = #tpu.dot_dimension_numbers<[1], [0], [0], [1], [0, 0, 1, 1], [], []>} : vector<8x32xbf16>, vector<32x128xbf16>, vector<8x128xf32> -> vector<8x128xf32>
    %242 = arith.addf %241, %237 : vector<8x128xf32>
    %243 = math.tanh %242 : vector<8x128xf32>
    %244 = vector.extract_strided_slice %243 {offsets = [0, 0], sizes = [8, 32], strides = [1, 1]} : vector<8x128xf32> to vector<8x32xf32>
    %cst_113 = arith.constant 5.000000e-01 : f32
    %245 = vector.broadcast %cst_113 : f32 to vector<8x32xf32>
    %246 = arith.mulf %245, %244 : vector<8x32xf32>
    %cst_114 = arith.constant 5.000000e-01 : f32
    %247 = vector.broadcast %cst_114 : f32 to vector<8x32xf32>
    %248 = arith.addf %246, %247 : vector<8x32xf32>
    %249 = vector.extract_strided_slice %243 {offsets = [0, 32], sizes = [8, 32], strides = [1, 1]} : vector<8x128xf32> to vector<8x32xf32>
    %cst_115 = arith.constant 5.000000e-01 : f32
    %250 = vector.broadcast %cst_115 : f32 to vector<8x32xf32>
    %251 = arith.mulf %250, %249 : vector<8x32xf32>
    %cst_116 = arith.constant 5.000000e-01 : f32
    %252 = vector.broadcast %cst_116 : f32 to vector<8x32xf32>
    %253 = arith.addf %251, %252 : vector<8x32xf32>
    %254 = vector.extract_strided_slice %243 {offsets = [0, 64], sizes = [8, 32], strides = [1, 1]} : vector<8x128xf32> to vector<8x32xf32>
    %255 = vector.extract_strided_slice %243 {offsets = [0, 96], sizes = [8, 32], strides = [1, 1]} : vector<8x128xf32> to vector<8x32xf32>
    %cst_117 = arith.constant 5.000000e-01 : f32
    %256 = vector.broadcast %cst_117 : f32 to vector<8x32xf32>
    %257 = arith.mulf %256, %255 : vector<8x32xf32>
    %cst_118 = arith.constant 5.000000e-01 : f32
    %258 = vector.broadcast %cst_118 : f32 to vector<8x32xf32>
    %259 = arith.addf %257, %258 : vector<8x32xf32>
    %260 = arith.mulf %253, %199 : vector<8x32xf32>
    %261 = arith.mulf %248, %254 : vector<8x32xf32>
    %262 = arith.addf %260, %261 : vector<8x32xf32>
    %263 = math.tanh %262 : vector<8x32xf32>
    %264 = arith.mulf %259, %263 : vector<8x32xf32>
    %265 = vector.extract_strided_slice %8 {offsets = [32, 0], sizes = [8, 128], strides = [1, 1]} : vector<64x128xf32> to vector<8x128xf32>
    %266 = arith.truncf %229 : vector<8x32xf32> to vector<8x32xbf16>
    %c0_119 = arith.constant 0 : index
    %c0_120 = arith.constant 0 : index
    %c0_121 = arith.constant 0 : index
    %267 = vector.load %arg3[%c0_119, %c0_120, %c0_121] : memref<2x32x128xbf16, #tpu.memory_space<vmem>>, vector<1x32x128xbf16>
    %268 = vector.shape_cast %267 : vector<1x32x128xbf16> to vector<32x128xbf16>
    %cst_122 = arith.constant dense<0.000000e+00> : vector<8x128xf32>
    %269 = tpu.matmul %266, %268, %cst_122 {dimension_numbers = #tpu.dot_dimension_numbers<[1], [0], [0], [1], [0, 0, 1, 1], [], []>} : vector<8x32xbf16>, vector<32x128xbf16>, vector<8x128xf32> -> vector<8x128xf32>
    %270 = arith.addf %269, %265 : vector<8x128xf32>
    %271 = math.tanh %270 : vector<8x128xf32>
    %272 = vector.extract_strided_slice %271 {offsets = [0, 0], sizes = [8, 32], strides = [1, 1]} : vector<8x128xf32> to vector<8x32xf32>
    %cst_123 = arith.constant 5.000000e-01 : f32
    %273 = vector.broadcast %cst_123 : f32 to vector<8x32xf32>
    %274 = arith.mulf %273, %272 : vector<8x32xf32>
    %cst_124 = arith.constant 5.000000e-01 : f32
    %275 = vector.broadcast %cst_124 : f32 to vector<8x32xf32>
    %276 = arith.addf %274, %275 : vector<8x32xf32>
    %277 = vector.extract_strided_slice %271 {offsets = [0, 32], sizes = [8, 32], strides = [1, 1]} : vector<8x128xf32> to vector<8x32xf32>
    %cst_125 = arith.constant 5.000000e-01 : f32
    %278 = vector.broadcast %cst_125 : f32 to vector<8x32xf32>
    %279 = arith.mulf %278, %277 : vector<8x32xf32>
    %cst_126 = arith.constant 5.000000e-01 : f32
    %280 = vector.broadcast %cst_126 : f32 to vector<8x32xf32>
    %281 = arith.addf %279, %280 : vector<8x32xf32>
    %282 = vector.extract_strided_slice %271 {offsets = [0, 64], sizes = [8, 32], strides = [1, 1]} : vector<8x128xf32> to vector<8x32xf32>
    %283 = vector.extract_strided_slice %271 {offsets = [0, 96], sizes = [8, 32], strides = [1, 1]} : vector<8x128xf32> to vector<8x32xf32>
    %cst_127 = arith.constant 5.000000e-01 : f32
    %284 = vector.broadcast %cst_127 : f32 to vector<8x32xf32>
    %285 = arith.mulf %284, %283 : vector<8x32xf32>
    %cst_128 = arith.constant 5.000000e-01 : f32
    %286 = vector.broadcast %cst_128 : f32 to vector<8x32xf32>
    %287 = arith.addf %285, %286 : vector<8x32xf32>
    %288 = arith.mulf %281, %227 : vector<8x32xf32>
    %289 = arith.mulf %276, %282 : vector<8x32xf32>
    %290 = arith.addf %288, %289 : vector<8x32xf32>
    %291 = math.tanh %290 : vector<8x32xf32>
    %292 = arith.mulf %287, %291 : vector<8x32xf32>
    %293 = arith.truncf %292 : vector<8x32xf32> to vector<8x32xbf16>
    %c1_129 = arith.constant 1 : index
    %c0_130 = arith.constant 0 : index
    %c0_131 = arith.constant 0 : index
    %294 = vector.load %arg2[%c1_129, %c0_130, %c0_131] : memref<2x32x128xbf16, #tpu.memory_space<vmem>>, vector<1x32x128xbf16>
    %295 = vector.shape_cast %294 : vector<1x32x128xbf16> to vector<32x128xbf16>
    %cst_132 = arith.constant dense<0.000000e+00> : vector<8x128xf32>
    %296 = tpu.matmul %293, %295, %cst_132 {dimension_numbers = #tpu.dot_dimension_numbers<[1], [0], [0], [1], [0, 0, 1, 1], [], []>} : vector<8x32xbf16>, vector<32x128xbf16>, vector<8x128xf32> -> vector<8x128xf32>
    %c1_133 = arith.constant 1 : index
    %c0_134 = arith.constant 0 : index
    %c0_135 = arith.constant 0 : index
    %297 = vector.load %arg4[%c1_133, %c0_134, %c0_135] : memref<2x1x128xf32, #tpu.memory_space<vmem>>, vector<1x1x128xf32>
    %298 = vector.shape_cast %297 : vector<1x1x128xf32> to vector<1x128xf32>
    %299 = vector.broadcast %298 : vector<1x128xf32> to vector<8x128xf32>
    %300 = arith.addf %296, %299 : vector<8x128xf32>
    %301 = arith.truncf %264 : vector<8x32xf32> to vector<8x32xbf16>
    %c1_136 = arith.constant 1 : index
    %c0_137 = arith.constant 0 : index
    %c0_138 = arith.constant 0 : index
    %302 = vector.load %arg3[%c1_136, %c0_137, %c0_138] : memref<2x32x128xbf16, #tpu.memory_space<vmem>>, vector<1x32x128xbf16>
    %303 = vector.shape_cast %302 : vector<1x32x128xbf16> to vector<32x128xbf16>
    %cst_139 = arith.constant dense<0.000000e+00> : vector<8x128xf32>
    %304 = tpu.matmul %301, %303, %cst_139 {dimension_numbers = #tpu.dot_dimension_numbers<[1], [0], [0], [1], [0, 0, 1, 1], [], []>} : vector<8x32xbf16>, vector<32x128xbf16>, vector<8x128xf32> -> vector<8x128xf32>
    %305 = arith.addf %304, %300 : vector<8x128xf32>
    %306 = math.tanh %305 : vector<8x128xf32>
    %307 = vector.extract_strided_slice %306 {offsets = [0, 0], sizes = [8, 32], strides = [1, 1]} : vector<8x128xf32> to vector<8x32xf32>
    %cst_140 = arith.constant 5.000000e-01 : f32
    %308 = vector.broadcast %cst_140 : f32 to vector<8x32xf32>
    %309 = arith.mulf %308, %307 : vector<8x32xf32>
    %cst_141 = arith.constant 5.000000e-01 : f32
    %310 = vector.broadcast %cst_141 : f32 to vector<8x32xf32>
    %311 = arith.addf %309, %310 : vector<8x32xf32>
    %312 = vector.extract_strided_slice %306 {offsets = [0, 32], sizes = [8, 32], strides = [1, 1]} : vector<8x128xf32> to vector<8x32xf32>
    %cst_142 = arith.constant 5.000000e-01 : f32
    %313 = vector.broadcast %cst_142 : f32 to vector<8x32xf32>
    %314 = arith.mulf %313, %312 : vector<8x32xf32>
    %cst_143 = arith.constant 5.000000e-01 : f32
    %315 = vector.broadcast %cst_143 : f32 to vector<8x32xf32>
    %316 = arith.addf %314, %315 : vector<8x32xf32>
    %317 = vector.extract_strided_slice %306 {offsets = [0, 64], sizes = [8, 32], strides = [1, 1]} : vector<8x128xf32> to vector<8x32xf32>
    %318 = vector.extract_strided_slice %306 {offsets = [0, 96], sizes = [8, 32], strides = [1, 1]} : vector<8x128xf32> to vector<8x32xf32>
    %cst_144 = arith.constant 5.000000e-01 : f32
    %319 = vector.broadcast %cst_144 : f32 to vector<8x32xf32>
    %320 = arith.mulf %319, %318 : vector<8x32xf32>
    %cst_145 = arith.constant 5.000000e-01 : f32
    %321 = vector.broadcast %cst_145 : f32 to vector<8x32xf32>
    %322 = arith.addf %320, %321 : vector<8x32xf32>
    %323 = arith.mulf %316, %262 : vector<8x32xf32>
    %324 = arith.mulf %311, %317 : vector<8x32xf32>
    %325 = arith.addf %323, %324 : vector<8x32xf32>
    %326 = math.tanh %325 : vector<8x32xf32>
    %327 = arith.mulf %322, %326 : vector<8x32xf32>
    %328 = vector.extract_strided_slice %8 {offsets = [40, 0], sizes = [8, 128], strides = [1, 1]} : vector<64x128xf32> to vector<8x128xf32>
    %329 = arith.truncf %292 : vector<8x32xf32> to vector<8x32xbf16>
    %c0_146 = arith.constant 0 : index
    %c0_147 = arith.constant 0 : index
    %c0_148 = arith.constant 0 : index
    %330 = vector.load %arg3[%c0_146, %c0_147, %c0_148] : memref<2x32x128xbf16, #tpu.memory_space<vmem>>, vector<1x32x128xbf16>
    %331 = vector.shape_cast %330 : vector<1x32x128xbf16> to vector<32x128xbf16>
    %cst_149 = arith.constant dense<0.000000e+00> : vector<8x128xf32>
    %332 = tpu.matmul %329, %331, %cst_149 {dimension_numbers = #tpu.dot_dimension_numbers<[1], [0], [0], [1], [0, 0, 1, 1], [], []>} : vector<8x32xbf16>, vector<32x128xbf16>, vector<8x128xf32> -> vector<8x128xf32>
    %333 = arith.addf %332, %328 : vector<8x128xf32>
    %334 = math.tanh %333 : vector<8x128xf32>
    %335 = vector.extract_strided_slice %334 {offsets = [0, 0], sizes = [8, 32], strides = [1, 1]} : vector<8x128xf32> to vector<8x32xf32>
    %cst_150 = arith.constant 5.000000e-01 : f32
    %336 = vector.broadcast %cst_150 : f32 to vector<8x32xf32>
    %337 = arith.mulf %336, %335 : vector<8x32xf32>
    %cst_151 = arith.constant 5.000000e-01 : f32
    %338 = vector.broadcast %cst_151 : f32 to vector<8x32xf32>
    %339 = arith.addf %337, %338 : vector<8x32xf32>
    %340 = vector.extract_strided_slice %334 {offsets = [0, 32], sizes = [8, 32], strides = [1, 1]} : vector<8x128xf32> to vector<8x32xf32>
    %cst_152 = arith.constant 5.000000e-01 : f32
    %341 = vector.broadcast %cst_152 : f32 to vector<8x32xf32>
    %342 = arith.mulf %341, %340 : vector<8x32xf32>
    %cst_153 = arith.constant 5.000000e-01 : f32
    %343 = vector.broadcast %cst_153 : f32 to vector<8x32xf32>
    %344 = arith.addf %342, %343 : vector<8x32xf32>
    %345 = vector.extract_strided_slice %334 {offsets = [0, 64], sizes = [8, 32], strides = [1, 1]} : vector<8x128xf32> to vector<8x32xf32>
    %346 = vector.extract_strided_slice %334 {offsets = [0, 96], sizes = [8, 32], strides = [1, 1]} : vector<8x128xf32> to vector<8x32xf32>
    %cst_154 = arith.constant 5.000000e-01 : f32
    %347 = vector.broadcast %cst_154 : f32 to vector<8x32xf32>
    %348 = arith.mulf %347, %346 : vector<8x32xf32>
    %cst_155 = arith.constant 5.000000e-01 : f32
    %349 = vector.broadcast %cst_155 : f32 to vector<8x32xf32>
    %350 = arith.addf %348, %349 : vector<8x32xf32>
    %351 = arith.mulf %344, %290 : vector<8x32xf32>
    %352 = arith.mulf %339, %345 : vector<8x32xf32>
    %353 = arith.addf %351, %352 : vector<8x32xf32>
    %354 = math.tanh %353 : vector<8x32xf32>
    %355 = arith.mulf %350, %354 : vector<8x32xf32>
    %356 = arith.truncf %355 : vector<8x32xf32> to vector<8x32xbf16>
    %c1_156 = arith.constant 1 : index
    %c0_157 = arith.constant 0 : index
    %c0_158 = arith.constant 0 : index
    %357 = vector.load %arg2[%c1_156, %c0_157, %c0_158] : memref<2x32x128xbf16, #tpu.memory_space<vmem>>, vector<1x32x128xbf16>
    %358 = vector.shape_cast %357 : vector<1x32x128xbf16> to vector<32x128xbf16>
    %cst_159 = arith.constant dense<0.000000e+00> : vector<8x128xf32>
    %359 = tpu.matmul %356, %358, %cst_159 {dimension_numbers = #tpu.dot_dimension_numbers<[1], [0], [0], [1], [0, 0, 1, 1], [], []>} : vector<8x32xbf16>, vector<32x128xbf16>, vector<8x128xf32> -> vector<8x128xf32>
    %c1_160 = arith.constant 1 : index
    %c0_161 = arith.constant 0 : index
    %c0_162 = arith.constant 0 : index
    %360 = vector.load %arg4[%c1_160, %c0_161, %c0_162] : memref<2x1x128xf32, #tpu.memory_space<vmem>>, vector<1x1x128xf32>
    %361 = vector.shape_cast %360 : vector<1x1x128xf32> to vector<1x128xf32>
    %362 = vector.broadcast %361 : vector<1x128xf32> to vector<8x128xf32>
    %363 = arith.addf %359, %362 : vector<8x128xf32>
    %364 = arith.truncf %327 : vector<8x32xf32> to vector<8x32xbf16>
    %c1_163 = arith.constant 1 : index
    %c0_164 = arith.constant 0 : index
    %c0_165 = arith.constant 0 : index
    %365 = vector.load %arg3[%c1_163, %c0_164, %c0_165] : memref<2x32x128xbf16, #tpu.memory_space<vmem>>, vector<1x32x128xbf16>
    %366 = vector.shape_cast %365 : vector<1x32x128xbf16> to vector<32x128xbf16>
    %cst_166 = arith.constant dense<0.000000e+00> : vector<8x128xf32>
    %367 = tpu.matmul %364, %366, %cst_166 {dimension_numbers = #tpu.dot_dimension_numbers<[1], [0], [0], [1], [0, 0, 1, 1], [], []>} : vector<8x32xbf16>, vector<32x128xbf16>, vector<8x128xf32> -> vector<8x128xf32>
    %368 = arith.addf %367, %363 : vector<8x128xf32>
    %369 = math.tanh %368 : vector<8x128xf32>
    %370 = vector.extract_strided_slice %369 {offsets = [0, 0], sizes = [8, 32], strides = [1, 1]} : vector<8x128xf32> to vector<8x32xf32>
    %cst_167 = arith.constant 5.000000e-01 : f32
    %371 = vector.broadcast %cst_167 : f32 to vector<8x32xf32>
    %372 = arith.mulf %371, %370 : vector<8x32xf32>
    %cst_168 = arith.constant 5.000000e-01 : f32
    %373 = vector.broadcast %cst_168 : f32 to vector<8x32xf32>
    %374 = arith.addf %372, %373 : vector<8x32xf32>
    %375 = vector.extract_strided_slice %369 {offsets = [0, 32], sizes = [8, 32], strides = [1, 1]} : vector<8x128xf32> to vector<8x32xf32>
    %cst_169 = arith.constant 5.000000e-01 : f32
    %376 = vector.broadcast %cst_169 : f32 to vector<8x32xf32>
    %377 = arith.mulf %376, %375 : vector<8x32xf32>
    %cst_170 = arith.constant 5.000000e-01 : f32
    %378 = vector.broadcast %cst_170 : f32 to vector<8x32xf32>
    %379 = arith.addf %377, %378 : vector<8x32xf32>
    %380 = vector.extract_strided_slice %369 {offsets = [0, 64], sizes = [8, 32], strides = [1, 1]} : vector<8x128xf32> to vector<8x32xf32>
    %381 = vector.extract_strided_slice %369 {offsets = [0, 96], sizes = [8, 32], strides = [1, 1]} : vector<8x128xf32> to vector<8x32xf32>
    %cst_171 = arith.constant 5.000000e-01 : f32
    %382 = vector.broadcast %cst_171 : f32 to vector<8x32xf32>
    %383 = arith.mulf %382, %381 : vector<8x32xf32>
    %cst_172 = arith.constant 5.000000e-01 : f32
    %384 = vector.broadcast %cst_172 : f32 to vector<8x32xf32>
    %385 = arith.addf %383, %384 : vector<8x32xf32>
    %386 = arith.mulf %379, %325 : vector<8x32xf32>
    %387 = arith.mulf %374, %380 : vector<8x32xf32>
    %388 = arith.addf %386, %387 : vector<8x32xf32>
    %389 = math.tanh %388 : vector<8x32xf32>
    %390 = arith.mulf %385, %389 : vector<8x32xf32>
    %391 = vector.extract_strided_slice %8 {offsets = [48, 0], sizes = [8, 128], strides = [1, 1]} : vector<64x128xf32> to vector<8x128xf32>
    %392 = arith.truncf %355 : vector<8x32xf32> to vector<8x32xbf16>
    %c0_173 = arith.constant 0 : index
    %c0_174 = arith.constant 0 : index
    %c0_175 = arith.constant 0 : index
    %393 = vector.load %arg3[%c0_173, %c0_174, %c0_175] : memref<2x32x128xbf16, #tpu.memory_space<vmem>>, vector<1x32x128xbf16>
    %394 = vector.shape_cast %393 : vector<1x32x128xbf16> to vector<32x128xbf16>
    %cst_176 = arith.constant dense<0.000000e+00> : vector<8x128xf32>
    %395 = tpu.matmul %392, %394, %cst_176 {dimension_numbers = #tpu.dot_dimension_numbers<[1], [0], [0], [1], [0, 0, 1, 1], [], []>} : vector<8x32xbf16>, vector<32x128xbf16>, vector<8x128xf32> -> vector<8x128xf32>
    %396 = arith.addf %395, %391 : vector<8x128xf32>
    %397 = math.tanh %396 : vector<8x128xf32>
    %398 = vector.extract_strided_slice %397 {offsets = [0, 0], sizes = [8, 32], strides = [1, 1]} : vector<8x128xf32> to vector<8x32xf32>
    %cst_177 = arith.constant 5.000000e-01 : f32
    %399 = vector.broadcast %cst_177 : f32 to vector<8x32xf32>
    %400 = arith.mulf %399, %398 : vector<8x32xf32>
    %cst_178 = arith.constant 5.000000e-01 : f32
    %401 = vector.broadcast %cst_178 : f32 to vector<8x32xf32>
    %402 = arith.addf %400, %401 : vector<8x32xf32>
    %403 = vector.extract_strided_slice %397 {offsets = [0, 32], sizes = [8, 32], strides = [1, 1]} : vector<8x128xf32> to vector<8x32xf32>
    %cst_179 = arith.constant 5.000000e-01 : f32
    %404 = vector.broadcast %cst_179 : f32 to vector<8x32xf32>
    %405 = arith.mulf %404, %403 : vector<8x32xf32>
    %cst_180 = arith.constant 5.000000e-01 : f32
    %406 = vector.broadcast %cst_180 : f32 to vector<8x32xf32>
    %407 = arith.addf %405, %406 : vector<8x32xf32>
    %408 = vector.extract_strided_slice %397 {offsets = [0, 64], sizes = [8, 32], strides = [1, 1]} : vector<8x128xf32> to vector<8x32xf32>
    %409 = vector.extract_strided_slice %397 {offsets = [0, 96], sizes = [8, 32], strides = [1, 1]} : vector<8x128xf32> to vector<8x32xf32>
    %cst_181 = arith.constant 5.000000e-01 : f32
    %410 = vector.broadcast %cst_181 : f32 to vector<8x32xf32>
    %411 = arith.mulf %410, %409 : vector<8x32xf32>
    %cst_182 = arith.constant 5.000000e-01 : f32
    %412 = vector.broadcast %cst_182 : f32 to vector<8x32xf32>
    %413 = arith.addf %411, %412 : vector<8x32xf32>
    %414 = arith.mulf %407, %353 : vector<8x32xf32>
    %415 = arith.mulf %402, %408 : vector<8x32xf32>
    %416 = arith.addf %414, %415 : vector<8x32xf32>
    %417 = math.tanh %416 : vector<8x32xf32>
    %418 = arith.mulf %413, %417 : vector<8x32xf32>
    %419 = arith.truncf %418 : vector<8x32xf32> to vector<8x32xbf16>
    %c1_183 = arith.constant 1 : index
    %c0_184 = arith.constant 0 : index
    %c0_185 = arith.constant 0 : index
    %420 = vector.load %arg2[%c1_183, %c0_184, %c0_185] : memref<2x32x128xbf16, #tpu.memory_space<vmem>>, vector<1x32x128xbf16>
    %421 = vector.shape_cast %420 : vector<1x32x128xbf16> to vector<32x128xbf16>
    %cst_186 = arith.constant dense<0.000000e+00> : vector<8x128xf32>
    %422 = tpu.matmul %419, %421, %cst_186 {dimension_numbers = #tpu.dot_dimension_numbers<[1], [0], [0], [1], [0, 0, 1, 1], [], []>} : vector<8x32xbf16>, vector<32x128xbf16>, vector<8x128xf32> -> vector<8x128xf32>
    %c1_187 = arith.constant 1 : index
    %c0_188 = arith.constant 0 : index
    %c0_189 = arith.constant 0 : index
    %423 = vector.load %arg4[%c1_187, %c0_188, %c0_189] : memref<2x1x128xf32, #tpu.memory_space<vmem>>, vector<1x1x128xf32>
    %424 = vector.shape_cast %423 : vector<1x1x128xf32> to vector<1x128xf32>
    %425 = vector.broadcast %424 : vector<1x128xf32> to vector<8x128xf32>
    %426 = arith.addf %422, %425 : vector<8x128xf32>
    %427 = arith.truncf %390 : vector<8x32xf32> to vector<8x32xbf16>
    %c1_190 = arith.constant 1 : index
    %c0_191 = arith.constant 0 : index
    %c0_192 = arith.constant 0 : index
    %428 = vector.load %arg3[%c1_190, %c0_191, %c0_192] : memref<2x32x128xbf16, #tpu.memory_space<vmem>>, vector<1x32x128xbf16>
    %429 = vector.shape_cast %428 : vector<1x32x128xbf16> to vector<32x128xbf16>
    %cst_193 = arith.constant dense<0.000000e+00> : vector<8x128xf32>
    %430 = tpu.matmul %427, %429, %cst_193 {dimension_numbers = #tpu.dot_dimension_numbers<[1], [0], [0], [1], [0, 0, 1, 1], [], []>} : vector<8x32xbf16>, vector<32x128xbf16>, vector<8x128xf32> -> vector<8x128xf32>
    %431 = arith.addf %430, %426 : vector<8x128xf32>
    %432 = math.tanh %431 : vector<8x128xf32>
    %433 = vector.extract_strided_slice %432 {offsets = [0, 0], sizes = [8, 32], strides = [1, 1]} : vector<8x128xf32> to vector<8x32xf32>
    %cst_194 = arith.constant 5.000000e-01 : f32
    %434 = vector.broadcast %cst_194 : f32 to vector<8x32xf32>
    %435 = arith.mulf %434, %433 : vector<8x32xf32>
    %cst_195 = arith.constant 5.000000e-01 : f32
    %436 = vector.broadcast %cst_195 : f32 to vector<8x32xf32>
    %437 = arith.addf %435, %436 : vector<8x32xf32>
    %438 = vector.extract_strided_slice %432 {offsets = [0, 32], sizes = [8, 32], strides = [1, 1]} : vector<8x128xf32> to vector<8x32xf32>
    %cst_196 = arith.constant 5.000000e-01 : f32
    %439 = vector.broadcast %cst_196 : f32 to vector<8x32xf32>
    %440 = arith.mulf %439, %438 : vector<8x32xf32>
    %cst_197 = arith.constant 5.000000e-01 : f32
    %441 = vector.broadcast %cst_197 : f32 to vector<8x32xf32>
    %442 = arith.addf %440, %441 : vector<8x32xf32>
    %443 = vector.extract_strided_slice %432 {offsets = [0, 64], sizes = [8, 32], strides = [1, 1]} : vector<8x128xf32> to vector<8x32xf32>
    %444 = vector.extract_strided_slice %432 {offsets = [0, 96], sizes = [8, 32], strides = [1, 1]} : vector<8x128xf32> to vector<8x32xf32>
    %cst_198 = arith.constant 5.000000e-01 : f32
    %445 = vector.broadcast %cst_198 : f32 to vector<8x32xf32>
    %446 = arith.mulf %445, %444 : vector<8x32xf32>
    %cst_199 = arith.constant 5.000000e-01 : f32
    %447 = vector.broadcast %cst_199 : f32 to vector<8x32xf32>
    %448 = arith.addf %446, %447 : vector<8x32xf32>
    %449 = arith.mulf %442, %388 : vector<8x32xf32>
    %450 = arith.mulf %437, %443 : vector<8x32xf32>
    %451 = arith.addf %449, %450 : vector<8x32xf32>
    %452 = math.tanh %451 : vector<8x32xf32>
    %453 = arith.mulf %448, %452 : vector<8x32xf32>
    %454 = vector.extract_strided_slice %8 {offsets = [56, 0], sizes = [8, 128], strides = [1, 1]} : vector<64x128xf32> to vector<8x128xf32>
    %455 = arith.truncf %418 : vector<8x32xf32> to vector<8x32xbf16>
    %c0_200 = arith.constant 0 : index
    %c0_201 = arith.constant 0 : index
    %c0_202 = arith.constant 0 : index
    %456 = vector.load %arg3[%c0_200, %c0_201, %c0_202] : memref<2x32x128xbf16, #tpu.memory_space<vmem>>, vector<1x32x128xbf16>
    %457 = vector.shape_cast %456 : vector<1x32x128xbf16> to vector<32x128xbf16>
    %cst_203 = arith.constant dense<0.000000e+00> : vector<8x128xf32>
    %458 = tpu.matmul %455, %457, %cst_203 {dimension_numbers = #tpu.dot_dimension_numbers<[1], [0], [0], [1], [0, 0, 1, 1], [], []>} : vector<8x32xbf16>, vector<32x128xbf16>, vector<8x128xf32> -> vector<8x128xf32>
    %459 = arith.addf %458, %454 : vector<8x128xf32>
    %460 = math.tanh %459 : vector<8x128xf32>
    %461 = vector.extract_strided_slice %460 {offsets = [0, 0], sizes = [8, 32], strides = [1, 1]} : vector<8x128xf32> to vector<8x32xf32>
    %cst_204 = arith.constant 5.000000e-01 : f32
    %462 = vector.broadcast %cst_204 : f32 to vector<8x32xf32>
    %463 = arith.mulf %462, %461 : vector<8x32xf32>
    %cst_205 = arith.constant 5.000000e-01 : f32
    %464 = vector.broadcast %cst_205 : f32 to vector<8x32xf32>
    %465 = arith.addf %463, %464 : vector<8x32xf32>
    %466 = vector.extract_strided_slice %460 {offsets = [0, 32], sizes = [8, 32], strides = [1, 1]} : vector<8x128xf32> to vector<8x32xf32>
    %cst_206 = arith.constant 5.000000e-01 : f32
    %467 = vector.broadcast %cst_206 : f32 to vector<8x32xf32>
    %468 = arith.mulf %467, %466 : vector<8x32xf32>
    %cst_207 = arith.constant 5.000000e-01 : f32
    %469 = vector.broadcast %cst_207 : f32 to vector<8x32xf32>
    %470 = arith.addf %468, %469 : vector<8x32xf32>
    %471 = vector.extract_strided_slice %460 {offsets = [0, 64], sizes = [8, 32], strides = [1, 1]} : vector<8x128xf32> to vector<8x32xf32>
    %472 = vector.extract_strided_slice %460 {offsets = [0, 96], sizes = [8, 32], strides = [1, 1]} : vector<8x128xf32> to vector<8x32xf32>
    %cst_208 = arith.constant 5.000000e-01 : f32
    %473 = vector.broadcast %cst_208 : f32 to vector<8x32xf32>
    %474 = arith.mulf %473, %472 : vector<8x32xf32>
    %cst_209 = arith.constant 5.000000e-01 : f32
    %475 = vector.broadcast %cst_209 : f32 to vector<8x32xf32>
    %476 = arith.addf %474, %475 : vector<8x32xf32>
    %477 = arith.mulf %470, %416 : vector<8x32xf32>
    %478 = arith.mulf %465, %471 : vector<8x32xf32>
    %479 = arith.addf %477, %478 : vector<8x32xf32>
    %480 = math.tanh %479 : vector<8x32xf32>
    %481 = arith.mulf %476, %480 : vector<8x32xf32>
    %482 = arith.truncf %481 : vector<8x32xf32> to vector<8x32xbf16>
    %c1_210 = arith.constant 1 : index
    %c0_211 = arith.constant 0 : index
    %c0_212 = arith.constant 0 : index
    %483 = vector.load %arg2[%c1_210, %c0_211, %c0_212] : memref<2x32x128xbf16, #tpu.memory_space<vmem>>, vector<1x32x128xbf16>
    %484 = vector.shape_cast %483 : vector<1x32x128xbf16> to vector<32x128xbf16>
    %cst_213 = arith.constant dense<0.000000e+00> : vector<8x128xf32>
    %485 = tpu.matmul %482, %484, %cst_213 {dimension_numbers = #tpu.dot_dimension_numbers<[1], [0], [0], [1], [0, 0, 1, 1], [], []>} : vector<8x32xbf16>, vector<32x128xbf16>, vector<8x128xf32> -> vector<8x128xf32>
    %c1_214 = arith.constant 1 : index
    %c0_215 = arith.constant 0 : index
    %c0_216 = arith.constant 0 : index
    %486 = vector.load %arg4[%c1_214, %c0_215, %c0_216] : memref<2x1x128xf32, #tpu.memory_space<vmem>>, vector<1x1x128xf32>
    %487 = vector.shape_cast %486 : vector<1x1x128xf32> to vector<1x128xf32>
    %488 = vector.broadcast %487 : vector<1x128xf32> to vector<8x128xf32>
    %489 = arith.addf %485, %488 : vector<8x128xf32>
    %490 = arith.truncf %453 : vector<8x32xf32> to vector<8x32xbf16>
    %c1_217 = arith.constant 1 : index
    %c0_218 = arith.constant 0 : index
    %c0_219 = arith.constant 0 : index
    %491 = vector.load %arg3[%c1_217, %c0_218, %c0_219] : memref<2x32x128xbf16, #tpu.memory_space<vmem>>, vector<1x32x128xbf16>
    %492 = vector.shape_cast %491 : vector<1x32x128xbf16> to vector<32x128xbf16>
    %cst_220 = arith.constant dense<0.000000e+00> : vector<8x128xf32>
    %493 = tpu.matmul %490, %492, %cst_220 {dimension_numbers = #tpu.dot_dimension_numbers<[1], [0], [0], [1], [0, 0, 1, 1], [], []>} : vector<8x32xbf16>, vector<32x128xbf16>, vector<8x128xf32> -> vector<8x128xf32>
    %494 = arith.addf %493, %489 : vector<8x128xf32>
    %495 = math.tanh %494 : vector<8x128xf32>
    %496 = vector.extract_strided_slice %495 {offsets = [0, 0], sizes = [8, 32], strides = [1, 1]} : vector<8x128xf32> to vector<8x32xf32>
    %cst_221 = arith.constant 5.000000e-01 : f32
    %497 = vector.broadcast %cst_221 : f32 to vector<8x32xf32>
    %498 = arith.mulf %497, %496 : vector<8x32xf32>
    %cst_222 = arith.constant 5.000000e-01 : f32
    %499 = vector.broadcast %cst_222 : f32 to vector<8x32xf32>
    %500 = arith.addf %498, %499 : vector<8x32xf32>
    %501 = vector.extract_strided_slice %495 {offsets = [0, 32], sizes = [8, 32], strides = [1, 1]} : vector<8x128xf32> to vector<8x32xf32>
    %cst_223 = arith.constant 5.000000e-01 : f32
    %502 = vector.broadcast %cst_223 : f32 to vector<8x32xf32>
    %503 = arith.mulf %502, %501 : vector<8x32xf32>
    %cst_224 = arith.constant 5.000000e-01 : f32
    %504 = vector.broadcast %cst_224 : f32 to vector<8x32xf32>
    %505 = arith.addf %503, %504 : vector<8x32xf32>
    %506 = vector.extract_strided_slice %495 {offsets = [0, 64], sizes = [8, 32], strides = [1, 1]} : vector<8x128xf32> to vector<8x32xf32>
    %507 = vector.extract_strided_slice %495 {offsets = [0, 96], sizes = [8, 32], strides = [1, 1]} : vector<8x128xf32> to vector<8x32xf32>
    %cst_225 = arith.constant 5.000000e-01 : f32
    %508 = vector.broadcast %cst_225 : f32 to vector<8x32xf32>
    %509 = arith.mulf %508, %507 : vector<8x32xf32>
    %cst_226 = arith.constant 5.000000e-01 : f32
    %510 = vector.broadcast %cst_226 : f32 to vector<8x32xf32>
    %511 = arith.addf %509, %510 : vector<8x32xf32>
    %512 = arith.mulf %505, %451 : vector<8x32xf32>
    %513 = arith.mulf %500, %506 : vector<8x32xf32>
    %514 = arith.addf %512, %513 : vector<8x32xf32>
    %515 = math.tanh %514 : vector<8x32xf32>
    %516 = arith.mulf %511, %515 : vector<8x32xf32>
    %517 = arith.truncf %516 : vector<8x32xf32> to vector<8x32xbf16>
    %c0_227 = arith.constant 0 : index
    %c0_228 = arith.constant 0 : index
    %518 = vector.load %arg5[%c0_227, %c0_228] : memref<32x256xbf16, #tpu.memory_space<vmem>>, vector<32x256xbf16>
    %cst_229 = arith.constant dense<0.000000e+00> : vector<8x256xf32>
    %519 = tpu.matmul %517, %518, %cst_229 {dimension_numbers = #tpu.dot_dimension_numbers<[1], [0], [0], [1], [0, 0, 1, 1], [], []>} : vector<8x32xbf16>, vector<32x256xbf16>, vector<8x256xf32> -> vector<8x256xf32>
    %c0_230 = arith.constant 0 : index
    %c0_231 = arith.constant 0 : index
    %520 = vector.load %arg6[%c0_230, %c0_231] : memref<1x256xf32, #tpu.memory_space<vmem>>, vector<1x256xf32>
    %521 = vector.broadcast %520 : vector<1x256xf32> to vector<8x256xf32>
    %522 = arith.addf %519, %521 : vector<8x256xf32>
    %cst_232 = arith.constant 0.000000e+00 : f32
    %523 = vector.broadcast %cst_232 : f32 to vector<8x256xf32>
    %524 = arith.maximumf %522, %523 : vector<8x256xf32>
    %525 = arith.truncf %524 : vector<8x256xf32> to vector<8x256xbf16>
    %c0_233 = arith.constant 0 : index
    %c0_234 = arith.constant 0 : index
    %526 = vector.load %arg7[%c0_233, %c0_234] : memref<256x128xbf16, #tpu.memory_space<vmem>>, vector<256x128xbf16>
    %cst_235 = arith.constant dense<0.000000e+00> : vector<8x128xf32>
    %527 = tpu.matmul %525, %526, %cst_235 {dimension_numbers = #tpu.dot_dimension_numbers<[1], [0], [0], [1], [0, 0, 1, 1], [], []>} : vector<8x256xbf16>, vector<256x128xbf16>, vector<8x128xf32> -> vector<8x128xf32>
    %c0_236 = arith.constant 0 : index
    %c0_237 = arith.constant 0 : index
    %528 = vector.load %arg8[%c0_236, %c0_237] : memref<1x128xf32, #tpu.memory_space<vmem>>, vector<1x128xf32>
    %529 = vector.broadcast %528 : vector<1x128xf32> to vector<8x128xf32>
    %530 = arith.addf %527, %529 : vector<8x128xf32>
    %cst_238 = arith.constant 0.000000e+00 : f32
    %531 = vector.broadcast %cst_238 : f32 to vector<8x128xf32>
    %532 = arith.maximumf %530, %531 : vector<8x128xf32>
    %533 = arith.truncf %532 : vector<8x128xf32> to vector<8x128xbf16>
    %c0_239 = arith.constant 0 : index
    %c0_240 = arith.constant 0 : index
    %534 = vector.load %arg9[%c0_239, %c0_240] : memref<128x64xbf16, #tpu.memory_space<vmem>>, vector<128x64xbf16>
    %cst_241 = arith.constant dense<0.000000e+00> : vector<8x64xf32>
    %535 = tpu.matmul %533, %534, %cst_241 {dimension_numbers = #tpu.dot_dimension_numbers<[1], [0], [0], [1], [0, 0, 1, 1], [], []>} : vector<8x128xbf16>, vector<128x64xbf16>, vector<8x64xf32> -> vector<8x64xf32>
    %c0_242 = arith.constant 0 : index
    %c0_243 = arith.constant 0 : index
    %536 = vector.load %arg10[%c0_242, %c0_243] : memref<1x64xf32, #tpu.memory_space<vmem>>, vector<1x64xf32>
    %537 = vector.broadcast %536 : vector<1x64xf32> to vector<8x64xf32>
    %538 = arith.addf %535, %537 : vector<8x64xf32>
    %cst_244 = arith.constant 0.000000e+00 : f32
    %539 = vector.broadcast %cst_244 : f32 to vector<8x64xf32>
    %540 = arith.maximumf %538, %539 : vector<8x64xf32>
    %541 = arith.truncf %540 : vector<8x64xf32> to vector<8x64xbf16>
    %c0_245 = arith.constant 0 : index
    %c0_246 = arith.constant 0 : index
    %542 = vector.load %arg11[%c0_245, %c0_246] : memref<64x128xbf16, #tpu.memory_space<vmem>>, vector<64x128xbf16>
    %cst_247 = arith.constant dense<0.000000e+00> : vector<8x128xf32>
    %543 = tpu.matmul %541, %542, %cst_247 {dimension_numbers = #tpu.dot_dimension_numbers<[1], [0], [0], [1], [0, 0, 1, 1], [], []>} : vector<8x64xbf16>, vector<64x128xbf16>, vector<8x128xf32> -> vector<8x128xf32>
    %c0_248 = arith.constant 0 : index
    %c0_249 = arith.constant 0 : index
    %544 = vector.load %arg12[%c0_248, %c0_249] : memref<1x128xf32, #tpu.memory_space<vmem>>, vector<1x128xf32>
    %545 = vector.broadcast %544 : vector<1x128xf32> to vector<8x128xf32>
    %546 = arith.addf %543, %545 : vector<8x128xf32>
    %547 = arith.negf %546 : vector<8x128xf32>
    %548 = math.exp %547 : vector<8x128xf32>
    %cst_250 = arith.constant 1.000000e+00 : f32
    %549 = vector.broadcast %cst_250 : f32 to vector<8x128xf32>
    %550 = arith.addf %549, %548 : vector<8x128xf32>
    %551 = arith.divf %549, %550 : vector<8x128xf32>
    %c0_251 = arith.constant 0 : index
    %c0_252 = arith.constant 0 : index
    %c0_253 = arith.constant 0 : index
    %552 = vector.load %arg13[%c0_251, %c0_252, %c0_253] : memref<1x8x128xf32, #tpu.memory_space<vmem>>, vector<1x8x128xf32>
    %553 = vector.shape_cast %552 : vector<1x8x128xf32> to vector<8x128xf32>
    %554 = vector.shape_cast %551 : vector<8x128xf32> to vector<1x8x128xf32>
    tpu.vector_store %arg13[%c0_251, %c0_252, %c0_253], %554 {strides = array<i32>} : memref<1x8x128xf32, #tpu.memory_space<vmem>>, vector<1x8x128xf32>,
    return
  }
  func.func @transform_0(%arg0: i32) -> (i32, i32, i32) {
    %c0_i32 = arith.constant 0 : i32
    %c0_i32_0 = arith.constant 0 : i32
    %c0_i32_1 = arith.constant 0 : i32
    return %arg0, %c0_i32, %c0_i32_0 : i32, i32, i32
  }
  func.func @transform_1(%arg0: i32) -> (i32, i32, i32) {
    %c0_i32 = arith.constant 0 : i32
    %c0_i32_0 = arith.constant 0 : i32
    %c0_i32_1 = arith.constant 0 : i32
    %c0_i32_2 = arith.constant 0 : i32
    return %c0_i32, %c0_i32_0, %c0_i32_1 : i32, i32, i32
  }
  func.func @transform_2(%arg0: i32) -> (i32, i32, i32) {
    %c0_i32 = arith.constant 0 : i32
    %c0_i32_0 = arith.constant 0 : i32
    %c0_i32_1 = arith.constant 0 : i32
    %c0_i32_2 = arith.constant 0 : i32
    return %c0_i32, %c0_i32_0, %c0_i32_1 : i32, i32, i32
  }
  func.func @transform_3(%arg0: i32) -> (i32, i32, i32) {
    %c0_i32 = arith.constant 0 : i32
    %c0_i32_0 = arith.constant 0 : i32
    %c0_i32_1 = arith.constant 0 : i32
    %c0_i32_2 = arith.constant 0 : i32
    return %c0_i32, %c0_i32_0, %c0_i32_1 : i32, i32, i32
  }
  func.func @transform_4(%arg0: i32) -> (i32, i32) {
    %c0_i32 = arith.constant 0 : i32
    %c0_i32_0 = arith.constant 0 : i32
    %c0_i32_1 = arith.constant 0 : i32
    return %c0_i32, %c0_i32_0 : i32, i32
  }
  func.func @transform_5(%arg0: i32) -> (i32, i32) {
    %c0_i32 = arith.constant 0 : i32
    %c0_i32_0 = arith.constant 0 : i32
    %c0_i32_1 = arith.constant 0 : i32
    return %c0_i32, %c0_i32_0 : i32, i32
  }
  func.func @transform_6(%arg0: i32) -> (i32, i32) {
    %c0_i32 = arith.constant 0 : i32
    %c0_i32_0 = arith.constant 0 : i32
    %c0_i32_1 = arith.constant 0 : i32
    return %c0_i32, %c0_i32_0 : i32, i32
  }
  func.func @transform_7(%arg0: i32) -> (i32, i32) {
    %c0_i32 = arith.constant 0 : i32
    %c0_i32_0 = arith.constant 0 : i32
    %c0_i32_1 = arith.constant 0 : i32
    return %c0_i32, %c0_i32_0 : i32, i32
  }
  func.func @transform_8(%arg0: i32) -> (i32, i32) {
    %c0_i32 = arith.constant 0 : i32
    %c0_i32_0 = arith.constant 0 : i32
    %c0_i32_1 = arith.constant 0 : i32
    return %c0_i32, %c0_i32_0 : i32, i32
  }
  func.func @transform_9(%arg0: i32) -> (i32, i32) {
    %c0_i32 = arith.constant 0 : i32
    %c0_i32_0 = arith.constant 0 : i32
    %c0_i32_1 = arith.constant 0 : i32
    return %c0_i32, %c0_i32_0 : i32, i32
  }
  func.func @transform_10(%arg0: i32) -> (i32, i32) {
    %c0_i32 = arith.constant 0 : i32
    %c0_i32_0 = arith.constant 0 : i32
    %c0_i32_1 = arith.constant 0 : i32
    return %c0_i32, %c0_i32_0 : i32, i32
  }
  func.func @transform_11(%arg0: i32) -> (i32, i32) {
    %c0_i32 = arith.constant 0 : i32
    %c0_i32_0 = arith.constant 0 : i32
    %c0_i32_1 = arith.constant 0 : i32
    return %c0_i32, %c0_i32_0 : i32, i32
  }
  func.func @transform_12(%arg0: i32) -> (i32, i32, i32) {
    %c0_i32 = arith.constant 0 : i32
    %c0_i32_0 = arith.constant 0 : i32
    %c0_i32_1 = arith.constant 0 : i32
    return %arg0, %c0_i32, %c0_i32_0 : i32, i32, i32
  }
}

</mosaic_0001>

<llo_original>
// kernel: squeeze.1
$region0: #{squeeze.1}
  %s0 = inlined_call_operand.vmem [shape: f32[4,8], index: 0, kind: input, shape index: {}]
  %s1 = inlined_call_operand.hbm [shape: f32[32,1], index: 1, kind: output, shape index: {}]
  $region1: #{squeeze.1} parent=0
    #allocation0 [shape = 'u8[512]{0}', space=vmem, size = 0x400, scoped, tag = 'operand span for operand 1']
    #allocation1 [shape = 's32[1]{0}', space=sflag, size = 0x4, scoped, tag = 'scoped memory for squeeze.1']
    #allocation2 [shape = 'u8[4096]{0}', space=vmem, size = 0x1000, scoped, tag = 'scoped mem for output reshape']
    #allocation3 [shape = 'u8[4096]{0}', space=vmem, size = 0x1000, scoped, tag = 'scoped mem for input reshape']
    %2 = vsyncpa [#allocation1], 0
    %s4 = sshllo.u32 0, 4
    %v5 = vld [vmem:[%s0] sm:%s4]
    %6 = vst [vmem:[#allocation3] sm:%s4] %v5
    %v7 = vld [vmem:[#allocation3] sm:$0x1]
    %vm8 = vcmask 64512
    %9 = vst.msk [vmem:[#allocation2] sm:$0x1] %vm8, %v7
    %s10 = scalar_lea.vmem [#allocation3], 3
    %v11 = vld [vmem:[%s10] sm:$0x1]
    %12 = vrot.lane.b32.xlu0 %v11, 24
    %v13 = vpop.permute.xlu0 %12
    %vm14 = vcmask 261312
    %15 = vst.msk [vmem:[#allocation2] sm:$0x1] %vm14, %v13
    %s16 = scalar_lea.vmem [#allocation3], 2
    %v17 = vld [vmem:[%s16] sm:$0x1]
    %18 = vrot.lane.b32.xlu0 %v17, 16
    %v19 = vpop.permute.xlu0 %18
    %vm20 = vcmask 195712
    %21 = vst.msk [vmem:[#allocation2] sm:$0x1] %vm20, %v19
    %s22 = scalar_lea.vmem [#allocation3], 1
    %v23 = vld [vmem:[%s22] sm:$0x1]
    %24 = vrot.lane.b32.xlu0 %v23, 8
    %v25 = vpop.permute.xlu0 %24
    %vm26 = vcmask 130112
    %27 = vst.msk [vmem:[#allocation2] sm:$0x1] %vm26, %v25
    %s29 = sshllo.u32 0, 1
    %v31 = vld [vmem:[#allocation2] sm:%s29]
    %s32 = sshllo.u32 0, 1
    %33 = vst [vmem:[#allocation0] sm:%s32] %v31
    %s35 = ssub.s32 16, 16
    %36 = vsyncadd [#allocation1], %s35
    %s38 = sshll.u32 [#allocation0], 4
    %s39 = int_to_ptr.vmem [resolvable:$true] %s38
    %41 = dma.vmem_to_hbm [thread:$0]  %s39, 16, %s1, [#allocation1]
    %42 = dma.done [#allocation1], 16
    %43 = vsyncpa [#allocation1], 1

// kernel: bayesian_lstm_forward.1
$region0: #{bayesian_lstm_forward.1}
  #allocation0 [shape = 'u32[]', space=smem, size = 0x4, offset = 0x4, fixed_abs, tag = 'smem constant byte address 0x4 - core index']
  #allocation1 [shape = 'u32[144,128]{1,0:T(1,128)}', space=vmem, size = 0x12000, scoped, tag = 'internal scratch']
  %s0 = inlined_call_operand.vmem [shape: bf16[4,64,32], index: 0, kind: input, shape index: {}]
  %s1 = inlined_call_operand.vmem [shape: bf16[2,32,128], index: 1, kind: input, shape index: {}]
  %s2 = inlined_call_operand.vmem [shape: bf16[2,32,128], index: 2, kind: input, shape index: {}]
  %s3 = inlined_call_operand.vmem [shape: f32[2,1,128], index: 3, kind: input, shape index: {}]
  %s4 = inlined_call_operand.vmem [shape: bf16[32,256], index: 4, kind: input, shape index: {}]
  %s5 = inlined_call_operand.vmem [shape: f32[1,256], index: 5, kind: input, shape index: {}]
  %s6 = inlined_call_operand.vmem [shape: bf16[256,128], index: 6, kind: input, shape index: {}]
  %s7 = inlined_call_operand.vmem [shape: f32[1,128], index: 7, kind: input, shape index: {}]
  %s8 = inlined_call_operand.vmem [shape: bf16[128,64], index: 8, kind: input, shape index: {}]
  %s9 = inlined_call_operand.vmem [shape: f32[1,64], index: 9, kind: input, shape index: {}]
  %s10 = inlined_call_operand.vmem [shape: bf16[64,128], index: 10, kind: input, shape index: {}]
  %s11 = inlined_call_operand.vmem [shape: f32[1,128], index: 11, kind: input, shape index: {}]
  %s12 = inlined_call_operand.vmem [shape: f32[4,8,128], index: 12, kind: output, shape index: {}]
  %s13 = sld [smem:[#allocation0]]
  $region81: #{bayesian_lstm_forward.1} parent=0
    _
  %s15 = ssub.s32 1, %s13
  %s16 = scalar_select 0, %s15, %s13
  loop: start=0, step=1, limit=6
  $region2: #{bayesian_lstm_forward.1} parent=0 // loop_pre_header
    _
  $region3: #{bayesian_lstm_forward.1} parent=0 // loop_header
    %s18 = sphi 0, %s22
    %p19 = scmp.ge.s32.totalorder %s18, 6
    %s28 = sphi 0, %s30
    %s31 = sphi 0, %s28
    %s32 = sphi 0, %s31
    %s48 = sphi 0, %s32
    %s52 = sphi 0, %s52
    %s54 = sphi 0, %s52
    %s55 = sphi 0, %s54
    %s69 = sphi 0, %s55
    %s73 = sphi 0, %s73
    %s75 = sphi 0, %s73
    %s76 = sphi 0, %s75
    %s90 = sphi 0, %s76
    %s94 = sphi 0, %s94
    %s96 = sphi 0, %s94
    %s97 = sphi 0, %s96
    %s111 = sphi 0, %s97
    %s115 = sphi 0, %s115
    %s117 = sphi 0, %s115
    %s118 = sphi 0, %s117
    %s132 = sphi 0, %s118
    %s136 = sphi 0, %s136
    %s138 = sphi 0, %s136
    %s139 = sphi 0, %s138
    %s153 = sphi 0, %s139
    %s157 = sphi 0, %s157
    %s159 = sphi 0, %s157
    %s160 = sphi 0, %s159
    %s174 = sphi 0, %s160
    %s178 = sphi 0, %s178
    %s180 = sphi 0, %s178
    %s181 = sphi 0, %s180
    %s195 = sphi 0, %s181
    %s199 = sphi 0, %s199
    %s201 = sphi 0, %s199
    %s202 = sphi 0, %s201
    %s216 = sphi 0, %s202
    %s220 = sphi 0, %s220
    %s222 = sphi 0, %s220
    %s223 = sphi 0, %s222
    %s237 = sphi 0, %s223
    %s241 = sphi 0, %s241
    %s243 = sphi 0, %s241
    %s244 = sphi 0, %s243
    %s258 = sphi 0, %s244
    %s262 = sphi 0, %s262
    %s264 = sphi 0, %s262
    %s265 = sphi 0, %s264
    %s279 = sphi 0, %s265
    %s285 = sphi 0, %s287
    %s288 = sphi 0, %s285
    %s289 = sphi 0, %s288
    %s305 = sphi 0, %s289
  $region4: #{bayesian_lstm_forward.1} parent=0 // loop_header_branch
    %21 = sbr.rel (%p19) target = $region8
  $region5: #{bayesian_lstm_forward.1} parent=0 // loop_body
    %s23 = ssub.s32 %s18, 1
    %s24 = ssub.s32 %s18, 2
    %s25 = sadd.s32 %s18, 1
    %s26 = ssub.s32 %s18, %s25
    %p27 = scmp.eq.s32.totalorder %s26, 0
    %s29 = sadd.s32 %s28, 1
    %s30 = scalar_select %p27, %s28, %s29
    %p33 = pneg %p27
    %p34 = scmp.eq.s32.totalorder %s18, 3
    %p35 = por %p33, %p34
    %p36 = scmp.ne.s32.totalorder %s28, %s31
    %p37 = scmp.eq.s32.totalorder %s18, 0
    %p38 = por %p36, %p37
    %p39 = scmp.ne.s32.totalorder %s28, %s31
    %p40 = scmp.eq.s32.totalorder %s23, 3
    %p41 = por %p39, %p40
    %p42 = scmp.ne.s32.totalorder %s31, %s32
    %p43 = scmp.eq.s32.totalorder %s23, 0
    %p44 = por %p42, %p43
    %p45 = scmp.ne.s32.totalorder %s31, %s32
    %p46 = scmp.eq.s32.totalorder %s24, 3
    %p47 = por %p45, %p46
    %p49 = scmp.ne.s32.totalorder %s32, %s48
    %p50 = scmp.eq.s32.totalorder %s24, 0
    %p51 = por %p49, %p50
    %s53 = sadd.s32 %s52, 1
    %p56 = scmp.eq.s32.totalorder %s18, 3
    %p57 = scmp.ne.s32.totalorder %s52, %s54
    %p58 = scmp.eq.s32.totalorder %s18, 0
    %p59 = por %p57, %p58
    %p60 = scmp.ne.s32.totalorder %s52, %s54
    %p61 = scmp.eq.s32.totalorder %s23, 3
    %p62 = por %p60, %p61
    %p63 = scmp.ne.s32.totalorder %s54, %s55
    %p64 = scmp.eq.s32.totalorder %s23, 0
    %p65 = por %p63, %p64
    %p66 = scmp.ne.s32.totalorder %s54, %s55
    %p67 = scmp.eq.s32.totalorder %s24, 3
    %p68 = por %p66, %p67
    %p70 = scmp.ne.s32.totalorder %s55, %s69
    %p71 = scmp.eq.s32.totalorder %s24, 0
    %p72 = por %p70, %p71
    %s74 = sadd.s32 %s73, 1
    %p77 = scmp.eq.s32.totalorder %s18, 3
    %p78 = scmp.ne.s32.totalorder %s73, %s75
    %p79 = scmp.eq.s32.totalorder %s18, 0
    %p80 = por %p78, %p79
    %p81 = scmp.ne.s32.totalorder %s73, %s75
    %p82 = scmp.eq.s32.totalorder %s23, 3
    %p83 = por %p81, %p82
    %p84 = scmp.ne.s32.totalorder %s75, %s76
    %p85 = scmp.eq.s32.totalorder %s23, 0
    %p86 = por %p84, %p85
    %p87 = scmp.ne.s32.totalorder %s75, %s76
    %p88 = scmp.eq.s32.totalorder %s24, 3
    %p89 = por %p87, %p88
    %p91 = scmp.ne.s32.totalorder %s76, %s90
    %p92 = scmp.eq.s32.totalorder %s24, 0
    %p93 = por %p91, %p92
    %s95 = sadd.s32 %s94, 1
    %p98 = scmp.eq.s32.totalorder %s18, 3
    %p99 = scmp.ne.s32.totalorder %s94, %s96
    %p100 = scmp.eq.s32.totalorder %s18, 0
    %p101 = por %p99, %p100
    %p102 = scmp.ne.s32.totalorder %s94, %s96
    %p103 = scmp.eq.s32.totalorder %s23, 3
    %p104 = por %p102, %p103
    %p105 = scmp.ne.s32.totalorder %s96, %s97
    %p106 = scmp.eq.s32.totalorder %s23, 0
    %p107 = por %p105, %p106
    %p108 = scmp.ne.s32.totalorder %s96, %s97
    %p109 = scmp.eq.s32.totalorder %s24, 3
    %p110 = por %p108, %p109
    %p112 = scmp.ne.s32.totalorder %s97, %s111
    %p113 = scmp.eq.s32.totalorder %s24, 0
    %p114 = por %p112, %p113
    %s116 = sadd.s32 %s115, 1
    %p119 = scmp.eq.s32.totalorder %s18, 3
    %p120 = scmp.ne.s32.totalorder %s115, %s117
    %p121 = scmp.eq.s32.totalorder %s18, 0
    %p122 = por %p120, %p121
    %p123 = scmp.ne.s32.totalorder %s115, %s117
    %p124 = scmp.eq.s32.totalorder %s23, 3
    %p125 = por %p123, %p124
    %p126 = scmp.ne.s32.totalorder %s117, %s118
    %p127 = scmp.eq.s32.totalorder %s23, 0
    %p128 = por %p126, %p127
    %p129 = scmp.ne.s32.totalorder %s117, %s118
    %p130 = scmp.eq.s32.totalorder %s24, 3
    %p131 = por %p129, %p130
    %p133 = scmp.ne.s32.totalorder %s118, %s132
    %p134 = scmp.eq.s32.totalorder %s24, 0
    %p135 = por %p133, %p134
    %s137 = sadd.s32 %s136, 1
    %p140 = scmp.eq.s32.totalorder %s18, 3
    %p141 = scmp.ne.s32.totalorder %s136, %s138
    %p142 = scmp.eq.s32.totalorder %s18, 0
    %p143 = por %p141, %p142
    %p144 = scmp.ne.s32.totalorder %s136, %s138
    %p145 = scmp.eq.s32.totalorder %s23, 3
    %p146 = por %p144, %p145
    %p147 = scmp.ne.s32.totalorder %s138, %s139
    %p148 = scmp.eq.s32.totalorder %s23, 0
    %p149 = por %p147, %p148
    %p150 = scmp.ne.s32.totalorder %s138, %s139
    %p151 = scmp.eq.s32.totalorder %s24, 3
    %p152 = por %p150, %p151
    %p154 = scmp.ne.s32.totalorder %s139, %s153
    %p155 = scmp.eq.s32.totalorder %s24, 0
    %p156 = por %p154, %p155
    %s158 = sadd.s32 %s157, 1
    %p161 = scmp.eq.s32.totalorder %s18, 3
    %p162 = scmp.ne.s32.totalorder %s157, %s159
    %p163 = scmp.eq.s32.totalorder %s18, 0
    %p164 = por %p162, %p163
    %p165 = scmp.ne.s32.totalorder %s157, %s159
    %p166 = scmp.eq.s32.totalorder %s23, 3
    %p167 = por %p165, %p166
    %p168 = scmp.ne.s32.totalorder %s159, %s160
    %p169 = scmp.eq.s32.totalorder %s23, 0
    %p170 = por %p168, %p169
    %p171 = scmp.ne.s32.totalorder %s159, %s160
    %p172 = scmp.eq.s32.totalorder %s24, 3
    %p173 = por %p171, %p172
    %p175 = scmp.ne.s32.totalorder %s160, %s174
    %p176 = scmp.eq.s32.totalorder %s24, 0
    %p177 = por %p175, %p176
    %s179 = sadd.s32 %s178, 1
    %p182 = scmp.eq.s32.totalorder %s18, 3
    %p183 = scmp.ne.s32.totalorder %s178, %s180
    %p184 = scmp.eq.s32.totalorder %s18, 0
    %p185 = por %p183, %p184
    %p186 = scmp.ne.s32.totalorder %s178, %s180
    %p187 = scmp.eq.s32.totalorder %s23, 3
    %p188 = por %p186, %p187
    %p189 = scmp.ne.s32.totalorder %s180, %s181
    %p190 = scmp.eq.s32.totalorder %s23, 0
    %p191 = por %p189, %p190
    %p192 = scmp.ne.s32.totalorder %s180, %s181
    %p193 = scmp.eq.s32.totalorder %s24, 3
    %p194 = por %p192, %p193
    %p196 = scmp.ne.s32.totalorder %s181, %s195
    %p197 = scmp.eq.s32.totalorder %s24, 0
    %p198 = por %p196, %p197
    %s200 = sadd.s32 %s199, 1
    %p203 = scmp.eq.s32.totalorder %s18, 3
    %p204 = scmp.ne.s32.totalorder %s199, %s201
    %p205 = scmp.eq.s32.totalorder %s18, 0
    %p206 = por %p204, %p205
    %p207 = scmp.ne.s32.totalorder %s199, %s201
    %p208 = scmp.eq.s32.totalorder %s23, 3
    %p209 = por %p207, %p208
    %p210 = scmp.ne.s32.totalorder %s201, %s202
    %p211 = scmp.eq.s32.totalorder %s23, 0
    %p212 = por %p210, %p211
    %p213 = scmp.ne.s32.totalorder %s201, %s202
    %p214 = scmp.eq.s32.totalorder %s24, 3
    %p215 = por %p213, %p214
    %p217 = scmp.ne.s32.totalorder %s202, %s216
    %p218 = scmp.eq.s32.totalorder %s24, 0
    %p219 = por %p217, %p218
    %s221 = sadd.s32 %s220, 1
    %p224 = scmp.eq.s32.totalorder %s18, 3
    %p225 = scmp.ne.s32.totalorder %s220, %s222
    %p226 = scmp.eq.s32.totalorder %s18, 0
    %p227 = por %p225, %p226
    %p228 = scmp.ne.s32.totalorder %s220, %s222
    %p229 = scmp.eq.s32.totalorder %s23, 3
    %p230 = por %p228, %p229
    %p231 = scmp.ne.s32.totalorder %s222, %s223
    %p232 = scmp.eq.s32.totalorder %s23, 0
    %p233 = por %p231, %p232
    %p234 = scmp.ne.s32.totalorder %s222, %s223
    %p235 = scmp.eq.s32.totalorder %s24, 3
    %p236 = por %p234, %p235
    %p238 = scmp.ne.s32.totalorder %s223, %s237
    %p239 = scmp.eq.s32.totalorder %s24, 0
    %p240 = por %p238, %p239
    %s242 = sadd.s32 %s241, 1
    %p245 = scmp.eq.s32.totalorder %s18, 3
    %p246 = scmp.ne.s32.totalorder %s241, %s243
    %p247 = scmp.eq.s32.totalorder %s18, 0
    %p248 = por %p246, %p247
    %p249 = scmp.ne.s32.totalorder %s241, %s243
    %p250 = scmp.eq.s32.totalorder %s23, 3
    %p251 = por %p249, %p250
    %p252 = scmp.ne.s32.totalorder %s243, %s244
    %p253 = scmp.eq.s32.totalorder %s23, 0
    %p254 = por %p252, %p253
    %p255 = scmp.ne.s32.totalorder %s243, %s244
    %p256 = scmp.eq.s32.totalorder %s24, 3
    %p257 = por %p255, %p256
    %p259 = scmp.ne.s32.totalorder %s244, %s258
    %p260 = scmp.eq.s32.totalorder %s24, 0
    %p261 = por %p259, %p260
    %s263 = sadd.s32 %s262, 1
    %p266 = scmp.eq.s32.totalorder %s18, 3
    %p267 = scmp.ne.s32.totalorder %s262, %s264
    %p268 = scmp.eq.s32.totalorder %s18, 0
    %p269 = por %p267, %p268
    %p270 = scmp.ne.s32.totalorder %s262, %s264
    %p271 = scmp.eq.s32.totalorder %s23, 3
    %p272 = por %p270, %p271
    %p273 = scmp.ne.s32.totalorder %s264, %s265
    %p274 = scmp.eq.s32.totalorder %s23, 0
    %p275 = por %p273, %p274
    %p276 = scmp.ne.s32.totalorder %s264, %s265
    %p277 = scmp.eq.s32.totalorder %s24, 3
    %p278 = por %p276, %p277
    %p280 = scmp.ne.s32.totalorder %s265, %s279
    %p281 = scmp.eq.s32.totalorder %s24, 0
    %p282 = por %p280, %p281
    %s283 = ssub.s32 %s18, %s25
    %p284 = scmp.eq.s32.totalorder %s283, 0
    %s286 = sadd.s32 %s285, 1
    %s287 = scalar_select %p284, %s285, %s286
    %p290 = pneg %p284
    %p291 = scmp.eq.s32.totalorder %s18, 3
    %p292 = por %p290, %p291
    %p293 = scmp.ne.s32.totalorder %s285, %s288
    %p294 = scmp.eq.s32.totalorder %s18, 0
    %p295 = por %p293, %p294
    %p296 = scmp.ne.s32.totalorder %s285, %s288
    %p297 = scmp.eq.s32.totalorder %s23, 3
    %p298 = por %p296, %p297
    %p299 = scmp.ne.s32.totalorder %s288, %s289
    %p300 = scmp.eq.s32.totalorder %s23, 0
    %p301 = por %p299, %p300
    %p302 = scmp.ne.s32.totalorder %s288, %s289
    %p303 = scmp.eq.s32.totalorder %s24, 3
    %p304 = por %p302, %p303
    %p306 = scmp.ne.s32.totalorder %s289, %s305
    %p307 = scmp.eq.s32.totalorder %s24, 0
    %p308 = por %p306, %p307
    %p309 = scmp.le.s32.totalorder 1, %s18
    %p310 = scmp.lt.s32.totalorder %s18, 5
    %p311 = pnand %p309, %p310
    %p312 = pneg %p311
    // Predicated region
    $region9: #{bayesian_lstm_forward.1} parent=5 // pred_check
      _
    $region10: #{bayesian_lstm_forward.1} parent=5 // pred_check_branch
      %314 = sbr.rel (%p311) target = $region12
    $region11: #{bayesian_lstm_forward.1} parent=5 // pred_region
      %s315 = ssub.s32 %s18, 1
      // Predicated region
      $region13: #{bayesian_lstm_forward.1} parent=11 // pred_check
        %p316 = pneg %p65
      $region14: #{bayesian_lstm_forward.1} parent=11 // pred_check_branch
        %318 = sbr.rel (%p316) target = $region16
      $region15: #{bayesian_lstm_forward.1} parent=11 // pred_region
        _
      $region16: #{bayesian_lstm_forward.1} parent=11 // pred_fallthru
        _
      // Predicated region
      $region17: #{bayesian_lstm_forward.1} parent=11 // pred_check
        %p319 = pneg %p86
      $region18: #{bayesian_lstm_forward.1} parent=11 // pred_check_branch
        %321 = sbr.rel (%p319) target = $region20
      $region19: #{bayesian_lstm_forward.1} parent=11 // pred_region
        _
      $region20: #{bayesian_lstm_forward.1} parent=11 // pred_fallthru
        _
      // Predicated region
      $region21: #{bayesian_lstm_forward.1} parent=11 // pred_check
        %p322 = pneg %p107
      $region22: #{bayesian_lstm_forward.1} parent=11 // pred_check_branch
        %324 = sbr.rel (%p322) target = $region24
      $region23: #{bayesian_lstm_forward.1} parent=11 // pred_region
        _
      $region24: #{bayesian_lstm_forward.1} parent=11 // pred_fallthru
        _
      // Predicated region
      $region25: #{bayesian_lstm_forward.1} parent=11 // pred_check
        %p325 = pneg %p128
      $region26: #{bayesian_lstm_forward.1} parent=11 // pred_check_branch
        %327 = sbr.rel (%p325) target = $region28
      $region27: #{bayesian_lstm_forward.1} parent=11 // pred_region
        _
      $region28: #{bayesian_lstm_forward.1} parent=11 // pred_fallthru
        _
      // Predicated region
      $region29: #{bayesian_lstm_forward.1} parent=11 // pred_check
        %p328 = pneg %p149
      $region30: #{bayesian_lstm_forward.1} parent=11 // pred_check_branch
        %330 = sbr.rel (%p328) target = $region32
      $region31: #{bayesian_lstm_forward.1} parent=11 // pred_region
        _
      $region32: #{bayesian_lstm_forward.1} parent=11 // pred_fallthru
        _
      // Predicated region
      $region33: #{bayesian_lstm_forward.1} parent=11 // pred_check
        %p331 = pneg %p170
      $region34: #{bayesian_lstm_forward.1} parent=11 // pred_check_branch
        %333 = sbr.rel (%p331) target = $region36
      $region35: #{bayesian_lstm_forward.1} parent=11 // pred_region
        _
      $region36: #{bayesian_lstm_forward.1} parent=11 // pred_fallthru
        _
      // Predicated region
      $region37: #{bayesian_lstm_forward.1} parent=11 // pred_check
        %p334 = pneg %p191
      $region38: #{bayesian_lstm_forward.1} parent=11 // pred_check_branch
        %336 = sbr.rel (%p334) target = $region40
      $region39: #{bayesian_lstm_forward.1} parent=11 // pred_region
        _
      $region40: #{bayesian_lstm_forward.1} parent=11 // pred_fallthru
        _
      // Predicated region
      $region41: #{bayesian_lstm_forward.1} parent=11 // pred_check
        %p337 = pneg %p212
      $region42: #{bayesian_lstm_forward.1} parent=11 // pred_check_branch
        %339 = sbr.rel (%p337) target = $region44
      $region43: #{bayesian_lstm_forward.1} parent=11 // pred_region
        _
      $region44: #{bayesian_lstm_forward.1} parent=11 // pred_fallthru
        _
      // Predicated region
      $region45: #{bayesian_lstm_forward.1} parent=11 // pred_check
        %p340 = pneg %p233
      $region46: #{bayesian_lstm_forward.1} parent=11 // pred_check_branch
        %342 = sbr.rel (%p340) target = $region48
      $region47: #{bayesian_lstm_forward.1} parent=11 // pred_region
        _
      $region48: #{bayesian_lstm_forward.1} parent=11 // pred_fallthru
        _
      // Predicated region
      $region49: #{bayesian_lstm_forward.1} parent=11 // pred_check
        %p343 = pneg %p254
      $region50: #{bayesian_lstm_forward.1} parent=11 // pred_check_branch
        %345 = sbr.rel (%p343) target = $region52
      $region51: #{bayesian_lstm_forward.1} parent=11 // pred_region
        _
      $region52: #{bayesian_lstm_forward.1} parent=11 // pred_fallthru
        _
      // Predicated region
      $region53: #{bayesian_lstm_forward.1} parent=11 // pred_check
        %p346 = pneg %p275
      $region54: #{bayesian_lstm_forward.1} parent=11 // pred_check_branch
        %348 = sbr.rel (%p346) target = $region56
      $region55: #{bayesian_lstm_forward.1} parent=11 // pred_region
        _
      $region56: #{bayesian_lstm_forward.1} parent=11 // pred_fallthru
        _
    $region12: #{bayesian_lstm_forward.1} parent=5 // pred_fallthru
      _
    %p349 = scmp.lt.s32.totalorder %s18, 4
    // Predicated region
    $region57: #{bayesian_lstm_forward.1} parent=5 // pred_check
      %p350 = pneg %p349
    $region58: #{bayesian_lstm_forward.1} parent=5 // pred_check_branch
      %352 = sbr.rel (%p350) target = $region60
    $region59: #{bayesian_lstm_forward.1} parent=5 // pred_region
      // Predicated region
      $region61: #{bayesian_lstm_forward.1} parent=59 // pred_check
        %p353 = pneg %p38
      $region62: #{bayesian_lstm_forward.1} parent=59 // pred_check_branch
        %355 = sbr.rel (%p353) target = $region64
      $region63: #{bayesian_lstm_forward.1} parent=59 // pred_region
        %p356 = scmp.lt.s32.totalorder %s18, 3
        %s357 = scalar_select %p356, %s18, 3
        %s358 = smul.addr %s357, 8
        %s359 = smul.addr %s358, 4
        %s360 = scalar_lea.vmem %s0, %s359
      $region64: #{bayesian_lstm_forward.1} parent=59 // pred_fallthru
        _
    $region60: #{bayesian_lstm_forward.1} parent=5 // pred_fallthru
      _
    %p361 = scmp.le.s32.totalorder 1, %s18
    %p362 = scmp.lt.s32.totalorder %s18, 5
    %p363 = pnand %p361, %p362
    %p364 = pneg %p363
    // Predicated region
    $region65: #{bayesian_lstm_forward.1} parent=5 // pred_check
      _
    $region66: #{bayesian_lstm_forward.1} parent=5 // pred_check_branch
      %366 = sbr.rel (%p363) target = $region68
    $region67: #{bayesian_lstm_forward.1} parent=5 // pred_region
      %s367 = ssub.s32 %s18, 1
      %p368 = scmp.lt.s32.totalorder %s23, 3
      %s369 = scalar_select %p368, %s23, 3
      %s370 = smul.addr %s369, 8
      %s371 = smul.addr %s370, 4
      %s372 = scalar_lea.vmem %s0, %s371
      %p373 = pneg %p44
      %p374 = pneg %p41
      %p375 = pneg %p65
      %p376 = pneg %p62
      %p377 = pneg %p86
      %p378 = pneg %p83
      %p379 = pneg %p107
      %p380 = pneg %p104
      %p381 = pneg %p128
      %p382 = pneg %p125
      %p383 = pneg %p149
      %p384 = pneg %p146
      %p385 = pneg %p170
      %p386 = pneg %p167
      %p387 = pneg %p191
      %p388 = pneg %p188
      %p389 = pneg %p212
      %p390 = pneg %p209
      %p391 = pneg %p233
      %p392 = pneg %p230
      %p393 = pneg %p254
      %p394 = pneg %p251
      %p395 = pneg %p275
      %p396 = pneg %p272
      %p397 = pneg %p301
      %p398 = pneg %p298
      %p399 = scmp.lt.s32.totalorder %s23, 3
      %s400 = scalar_select %p399, %s23, 3
      %s401 = smul.addr %s400, 8
      %s402 = scalar_lea.vmem %s12, %s401
      %p403 = scmp.lt.s32.totalorder %s23, 3
      %s404 = scalar_select %p403, %s23, 3
      %s405 = smul.addr %s404, 8
      %s406 = smul.addr %s405, 4
      %s407 = scalar_lea.vmem %s0, %s406
      %p408 = scmp.lt.s32.totalorder %s23, 3
      %s409 = scalar_select %p408, %s23, 3
      %s410 = smul.addr %s409, 8
      %s411 = scalar_lea.vmem %s12, %s410
      %v413 = vld [vmem:[%s407] sm:$0xf]
      %v414 = vld [vmem:[%s407 + $0x4] sm:$0xf]
      %v415 = vld [vmem:[%s407 + $0x8] sm:$0xf]
      %v416 = vld [vmem:[%s407 + $0xc] sm:$0xf]
      %v417 = vld [vmem:[%s407 + $0x10] sm:$0xf]
      %v418 = vld [vmem:[%s407 + $0x14] sm:$0xf]
      %v419 = vld [vmem:[%s407 + $0x18] sm:$0xf]
      %v420 = vld [vmem:[%s407 + $0x1c] sm:$0xf]
      %v421 = vld [vmem:[%s1] sm:$0xf]
      %v422 = vld [vmem:[%s1 + $0x4] sm:$0xf]
      %v423 = vld [vmem:[%s1 + $0x8] sm:$0xf]
      %v424 = vld [vmem:[%s1 + $0xc] sm:$0xf]
      %v425 = vld [vmem:[%s3] sm:$0x1]
      %v427 = vlaneseq
      %v428 = vshrl.u32 %v427, 7
      %v429 = vsub.s32 0, %v428
      %v430 = vrot.slane %v425, %v429
      %v440 = vunpack.c.l.b16 %v413
      %v441 = vunpack.c.l.b16 %v414
      %v442 = vunpack.c.l.b16 %v415
      %v443 = vunpack.c.l.b16 %v416
      %v444 = vunpack.c.l.b16 %v417
      %v445 = vunpack.c.l.b16 %v418
      %v446 = vunpack.c.l.b16 %v419
      %v447 = vunpack.c.l.b16 %v420
      %v448 = vpack.c.b16 %v441, %v440
      %v449 = vpack.c.b16 %v443, %v442
      %v450 = vpack.c.b16 %v445, %v444
      %v451 = vpack.c.b16 %v447, %v446
      %v456 = vunpack.c.l.b16 %v421
      %v457 = vunpack.c.l.b16 %v422
      %v458 = vunpack.c.l.b16 %v423
      %v459 = vunpack.c.l.b16 %v424
      %v460 = vpack.c.b16 %v457, %v456
      %v461 = vpack.c.b16 %v459, %v458
      %vm464 = vcmask 261120
      %v466 = vsel %vm464, %v448, 0
      %v469 = vsel %vm464, %v449, 0
      %v472 = vsel %vm464, %v450, 0
      %v475 = vsel %vm464, %v451, 0
      %477 = vmatprep.subr.bf16.mxu0 0
      %478 = vmatpush1.bf16.msra.mxu0 %v460
      %479 = vmatprep.subr.bf16.mxu0 0
      %480 = vmatpush1.bf16.msra.mxu0 %v461
      %481 = vmatprep.subr.bf16.mxu0 0
      %482 = vmatpush1.bf16.msra.mxu0 0
      %483 = vmatprep.subr.bf16.mxu0 0
      %484 = vmatpush1.bf16.msra.mxu0 0
      %485 = vmatprep.subr.bf16.mxu0 0
      %486 = vmatpush1.bf16.msra.mxu0 0
      %487 = vmatprep.subr.bf16.mxu0 0
      %488 = vmatpush1.bf16.msra.mxu0 0
      %489 = vmatprep.subr.bf16.mxu0 0
      %490 = vmatpush1.bf16.msra.mxu0 0
      %491 = vmatprep.subr.bf16.mxu0 0
      %492 = vmatpush1.bf16.msra.mxu0 0
      %493 = vmatprep.subr.bf16.mxu0 0
      %494 = vmatpush1.bf16.msra.mxu0 0
      %495 = vmatprep.subr.bf16.mxu0 0
      %496 = vmatpush1.bf16.msra.mxu0 0
      %497 = vmatprep.subr.bf16.mxu0 0
      %498 = vmatpush1.bf16.msra.mxu0 0
      %499 = vmatprep.subr.bf16.mxu0 0
      %500 = vmatpush1.bf16.msra.mxu0 0
      %501 = vmatprep.subr.bf16.mxu0 0
      %502 = vmatpush1.bf16.msra.mxu0 0
      %503 = vmatprep.subr.bf16.mxu0 0
      %504 = vmatpush1.bf16.msra.mxu0 0
      %505 = vmatprep.subr.bf16.mxu0 0
      %506 = vmatpush1.bf16.msra.mxu0 0
      %507 = vmatprep.subr.bf16.mxu0 0
      %508 = vmatpush1.bf16.msra.mxu0 0
      %509 = vmatprep.mubr.bf16.mxu0 0
      %510 = vmatmul.mubr.bf16.gmra.mrb[0].mxu0 %v466
      %v511 = vpop.f32.mrb[0].mxu0
      %v512 = vadd.f32 %v430, %v511
      %v513 = vpop.f32.mrb[0].mxu0
      %v514 = vpop.f32.mrb[0].mxu0
      %v515 = vadd.f32 %v430, %v514
      %v516 = vpop.f32.mrb[0].mxu0
      %517 = vmatprep.mubr.bf16.mxu0 0
      %518 = vmatmul.mubr.bf16.gmra.mrb[0].mxu0 %v469
      %v519 = vpop.f32.mrb[0].mxu0
      %v520 = vadd.f32 %v430, %v519
      %v521 = vpop.f32.mrb[0].mxu0
      %v522 = vpop.f32.mrb[0].mxu0
      %v523 = vadd.f32 %v430, %v522
      %v524 = vpop.f32.mrb[0].mxu0
      %525 = vmatprep.mubr.bf16.mxu0 0
      %526 = vmatmul.mubr.bf16.gmra.mrb[0].mxu0 %v472
      %v527 = vpop.f32.mrb[0].mxu0
      %v528 = vadd.f32 %v430, %v527
      %v529 = vpop.f32.mrb[0].mxu0
      %v530 = vpop.f32.mrb[0].mxu0
      %v531 = vadd.f32 %v430, %v530
      %v532 = vpop.f32.mrb[0].mxu0
      %533 = vmatprep.mubr.bf16.mxu0 0
      %534 = vmatmul.mubr.bf16.gmra.mrb[0].mxu0 %v475
      %v535 = vpop.f32.mrb[0].mxu0
      %v536 = vadd.f32 %v430, %v535
      %v537 = vpop.f32.mrb[0].mxu0
      %v538 = vpop.f32.mrb[0].mxu0
      %v539 = vadd.f32 %v430, %v538
      %v540 = vpop.f32.mrb[0].mxu0
      %541 = vdwg.mxu0
      %v542 = vld [vmem:[%s2] sm:$0xf]
      %v543 = vld [vmem:[%s2 + $0x4] sm:$0xf]
      %v544 = vld [vmem:[%s2 + $0x8] sm:$0xf]
      %v545 = vld [vmem:[%s2 + $0xc] sm:$0xf]
      %v550 = vunpack.c.l.b16 %v542
      %v551 = vunpack.c.l.b16 %v543
      %v552 = vunpack.c.l.b16 %v544
      %v553 = vunpack.c.l.b16 %v545
      %v554 = vpack.c.b16 %v551, %v550
      %v555 = vpack.c.b16 %v553, %v552
      %v559 = vsel %vm464, 0, 0
      %561 = vmatprep.subr.bf16.mxu0 0
      %562 = vmatpush1.bf16.msra.mxu0 %v554
      %563 = vmatprep.subr.bf16.mxu0 0
      %564 = vmatpush1.bf16.msra.mxu0 %v555
      %565 = vmatprep.subr.bf16.mxu0 0
      %566 = vmatpush1.bf16.msra.mxu0 0
      %567 = vmatprep.subr.bf16.mxu0 0
      %568 = vmatpush1.bf16.msra.mxu0 0
      %569 = vmatprep.subr.bf16.mxu0 0
      %570 = vmatpush1.bf16.msra.mxu0 0
      %571 = vmatprep.subr.bf16.mxu0 0
      %572 = vmatpush1.bf16.msra.mxu0 0
      %573 = vmatprep.subr.bf16.mxu0 0
      %574 = vmatpush1.bf16.msra.mxu0 0
      %575 = vmatprep.subr.bf16.mxu0 0
      %576 = vmatpush1.bf16.msra.mxu0 0
      %577 = vmatprep.subr.bf16.mxu0 0
      %578 = vmatpush1.bf16.msra.mxu0 0
      %579 = vmatprep.subr.bf16.mxu0 0
      %580 = vmatpush1.bf16.msra.mxu0 0
      %581 = vmatprep.subr.bf16.mxu0 0
      %582 = vmatpush1.bf16.msra.mxu0 0
      %583 = vmatprep.subr.bf16.mxu0 0
      %584 = vmatpush1.bf16.msra.mxu0 0
      %585 = vmatprep.subr.bf16.mxu0 0
      %586 = vmatpush1.bf16.msra.mxu0 0
      %587 = vmatprep.subr.bf16.mxu0 0
      %588 = vmatpush1.bf16.msra.mxu0 0
      %589 = vmatprep.subr.bf16.mxu0 0
      %590 = vmatpush1.bf16.msra.mxu0 0
      %591 = vmatprep.subr.bf16.mxu0 0
      %592 = vmatpush1.bf16.msra.mxu0 0
      %593 = vmatprep.mubr.bf16.mxu0 0
      %594 = vmatmul.mubr.bf16.gmra.mrb[0].mxu0 %v559
      %v595 = vpop.f32.mrb[0].mxu0
      %v596 = vadd.f32 %v512, %v595
      %v597 = vpop.f32.mrb[0].mxu0
      %v598 = vpop.f32.mrb[0].mxu0
      %v599 = vpop.f32.mrb[0].mxu0
      %600 = vdwg.mxu0
      %v601 = vtanh.pop %v596
      %v602 = vmul.f32 %v601, 0.5
      %v603 = vadd.f32 %v602, 0.5
      %v604 = vmul.f32 %v603, 0.0
      %606 = vrot.lane.b32.xlu0 %v601, 64
      %v607 = vpop.permute.xlu0 %606
      %v609 = vmul.f32 %v603, %v607
      %611 = vrot.lane.b32.xlu0 %v609, 32
      %v612 = vpop.permute.xlu0 %611
      %v614 = vadd.f32 %v604, %v612
      %v615 = vtanh.pop %v614
      %617 = vrot.lane.b32.xlu0 %v615, 64
      %v618 = vpop.permute.xlu0 %617
      %v620 = vmul.f32 %v603, %v618
      %v621 = vpack.c.bf16 %v620, %v620
      %s622 = scalar_lea.vmem %s1, 16
      %v623 = vld [vmem:[%s622] sm:$0xf]
      %v624 = vld [vmem:[%s622 + $0x4] sm:$0xf]
      %v625 = vld [vmem:[%s622 + $0x8] sm:$0xf]
      %v626 = vld [vmem:[%s622 + $0xc] sm:$0xf]
      %s627 = scalar_lea.vmem %s3, 1
      %v628 = vld [vmem:[%s627] sm:$0x1]
      %v630 = vlaneseq
      %v631 = vshrl.u32 %v630, 7
      %v632 = vsub.s32 0, %v631
      %v633 = vrot.slane %v628, %v632
      %636 = vrot.lane.b32.xlu0 %v621, 32
      %v637 = vpop.permute.xlu0 %636
      %v642 = vunpack.c.l.b16 %v623
      %v643 = vunpack.c.l.b16 %v624
      %v644 = vunpack.c.l.b16 %v625
      %v645 = vunpack.c.l.b16 %v626
      %v646 = vpack.c.b16 %v643, %v642
      %v647 = vpack.c.b16 %v645, %v644
      %v651 = vsel %vm464, %v637, 0
      %653 = vmatprep.subr.bf16.mxu0 0
      %654 = vmatpush1.bf16.msra.mxu0 %v646
      %655 = vmatprep.subr.bf16.mxu0 0
      %656 = vmatpush1.bf16.msra.mxu0 %v647
      %657 = vmatprep.subr.bf16.mxu0 0
      %658 = vmatpush1.bf16.msra.mxu0 0
      %659 = vmatprep.subr.bf16.mxu0 0
      %660 = vmatpush1.bf16.msra.mxu0 0
      %661 = vmatprep.subr.bf16.mxu0 0
      %662 = vmatpush1.bf16.msra.mxu0 0
      %663 = vmatprep.subr.bf16.mxu0 0
      %664 = vmatpush1.bf16.msra.mxu0 0
      %665 = vmatprep.subr.bf16.mxu0 0
      %666 = vmatpush1.bf16.msra.mxu0 0
      %667 = vmatprep.subr.bf16.mxu0 0
      %668 = vmatpush1.bf16.msra.mxu0 0
      %669 = vmatprep.subr.bf16.mxu0 0
      %670 = vmatpush1.bf16.msra.mxu0 0
      %671 = vmatprep.subr.bf16.mxu0 0
      %672 = vmatpush1.bf16.msra.mxu0 0
      %673 = vmatprep.subr.bf16.mxu0 0
      %674 = vmatpush1.bf16.msra.mxu0 0
      %675 = vmatprep.subr.bf16.mxu0 0
      %676 = vmatpush1.bf16.msra.mxu0 0
      %677 = vmatprep.subr.bf16.mxu0 0
      %678 = vmatpush1.bf16.msra.mxu0 0
      %679 = vmatprep.subr.bf16.mxu0 0
      %680 = vmatpush1.bf16.msra.mxu0 0
      %681 = vmatprep.subr.bf16.mxu0 0
      %682 = vmatpush1.bf16.msra.mxu0 0
      %683 = vmatprep.subr.bf16.mxu0 0
      %684 = vmatpush1.bf16.msra.mxu0 0
      %685 = vmatprep.mubr.bf16.mxu0 0
      %686 = vmatmul.mubr.bf16.gmra.mrb[0].mxu0 %v651
      %v687 = vpop.f32.mrb[0].mxu0
      %v688 = vadd.f32 %v633, %v687
      %v689 = vpop.f32.mrb[0].mxu0
      %v690 = vpop.f32.mrb[0].mxu0
      %v691 = vpop.f32.mrb[0].mxu0
      %692 = vdwg.mxu0
      %s693 = scalar_lea.vmem %s2, 16
      %v694 = vld [vmem:[%s693] sm:$0xf]
      %v695 = vld [vmem:[%s693 + $0x4] sm:$0xf]
      %v696 = vld [vmem:[%s693 + $0x8] sm:$0xf]
      %v697 = vld [vmem:[%s693 + $0xc] sm:$0xf]
      %v702 = vunpack.c.l.b16 %v694
      %v703 = vunpack.c.l.b16 %v695
      %v704 = vunpack.c.l.b16 %v696
      %v705 = vunpack.c.l.b16 %v697
      %v706 = vpack.c.b16 %v703, %v702
      %v707 = vpack.c.b16 %v705, %v704
      %710 = vmatprep.subr.bf16.mxu0 0
      %711 = vmatpush1.bf16.msra.mxu0 %v706
      %712 = vmatprep.subr.bf16.mxu0 0
      %713 = vmatpush1.bf16.msra.mxu0 %v707
      %714 = vmatprep.subr.bf16.mxu0 0
      %715 = vmatpush1.bf16.msra.mxu0 0
      %716 = vmatprep.subr.bf16.mxu0 0
      %717 = vmatpush1.bf16.msra.mxu0 0
      %718 = vmatprep.subr.bf16.mxu0 0
      %719 = vmatpush1.bf16.msra.mxu0 0
      %720 = vmatprep.subr.bf16.mxu0 0
      %721 = vmatpush1.bf16.msra.mxu0 0
      %722 = vmatprep.subr.bf16.mxu0 0
      %723 = vmatpush1.bf16.msra.mxu0 0
      %724 = vmatprep.subr.bf16.mxu0 0
      %725 = vmatpush1.bf16.msra.mxu0 0
      %726 = vmatprep.subr.bf16.mxu0 0
      %727 = vmatpush1.bf16.msra.mxu0 0
      %728 = vmatprep.subr.bf16.mxu0 0
      %729 = vmatpush1.bf16.msra.mxu0 0
      %730 = vmatprep.subr.bf16.mxu0 0
      %731 = vmatpush1.bf16.msra.mxu0 0
      %732 = vmatprep.subr.bf16.mxu0 0
      %733 = vmatpush1.bf16.msra.mxu0 0
      %734 = vmatprep.subr.bf16.mxu0 0
      %735 = vmatpush1.bf16.msra.mxu0 0
      %736 = vmatprep.subr.bf16.mxu0 0
      %737 = vmatpush1.bf16.msra.mxu0 0
      %738 = vmatprep.subr.bf16.mxu0 0
      %739 = vmatpush1.bf16.msra.mxu0 0
      %740 = vmatprep.subr.bf16.mxu0 0
      %741 = vmatpush1.bf16.msra.mxu0 0
      %742 = vmatprep.mubr.bf16.mxu0 0
      %743 = vmatmul.mubr.bf16.gmra.mrb[0].mxu0 %v559
      %v744 = vpop.f32.mrb[0].mxu0
      %v745 = vadd.f32 %v688, %v744
      %v746 = vpop.f32.mrb[0].mxu0
      %v747 = vpop.f32.mrb[0].mxu0
      %v748 = vpop.f32.mrb[0].mxu0
      %749 = vdwg.mxu0
      %v750 = vtanh.pop %v745
      %v751 = vmul.f32 %v750, 0.5
      %v752 = vadd.f32 %v751, 0.5
      %v753 = vmul.f32 %v752, 0.0
      %755 = vrot.lane.b32.xlu0 %v750, 64
      %v756 = vpop.permute.xlu0 %755
      %v758 = vmul.f32 %v752, %v756
      %760 = vrot.lane.b32.xlu0 %v758, 32
      %v761 = vpop.permute.xlu0 %760
      %v763 = vadd.f32 %v753, %v761
      %v764 = vtanh.pop %v763
      %766 = vrot.lane.b32.xlu0 %v764, 64
      %v767 = vpop.permute.xlu0 %766
      %v769 = vmul.f32 %v752, %v767
      %770 = vmatprep.subr.bf16.mxu0 0
      %771 = vmatpush1.bf16.msra.mxu0 %v554
      %772 = vmatprep.subr.bf16.mxu0 0
      %773 = vmatpush1.bf16.msra.mxu0 %v555
      %774 = vmatprep.subr.bf16.mxu0 0
      %775 = vmatpush1.bf16.msra.mxu0 0
      %776 = vmatprep.subr.bf16.mxu0 0
      %777 = vmatpush1.bf16.msra.mxu0 0
      %778 = vmatprep.subr.bf16.mxu0 0
      %779 = vmatpush1.bf16.msra.mxu0 0
      %780 = vmatprep.subr.bf16.mxu0 0
      %781 = vmatpush1.bf16.msra.mxu0 0
      %782 = vmatprep.subr.bf16.mxu0 0
      %783 = vmatpush1.bf16.msra.mxu0 0
      %784 = vmatprep.subr.bf16.mxu0 0
      %785 = vmatpush1.bf16.msra.mxu0 0
      %786 = vmatprep.subr.bf16.mxu0 0
      %787 = vmatpush1.bf16.msra.mxu0 0
      %788 = vmatprep.subr.bf16.mxu0 0
      %789 = vmatpush1.bf16.msra.mxu0 0
      %790 = vmatprep.subr.bf16.mxu0 0
      %791 = vmatpush1.bf16.msra.mxu0 0
      %792 = vmatprep.subr.bf16.mxu0 0
      %793 = vmatpush1.bf16.msra.mxu0 0
      %794 = vmatprep.subr.bf16.mxu0 0
      %795 = vmatpush1.bf16.msra.mxu0 0
      %796 = vmatprep.subr.bf16.mxu0 0
      %797 = vmatpush1.bf16.msra.mxu0 0
      %798 = vmatprep.subr.bf16.mxu0 0
      %799 = vmatpush1.bf16.msra.mxu0 0
      %800 = vmatprep.subr.bf16.mxu0 0
      %801 = vmatpush1.bf16.msra.mxu0 0
      %802 = vmatprep.mubr.bf16.mxu0 0
      %803 = vmatmul.mubr.bf16.gmra.mrb[0].mxu0 %v651
      %v804 = vpop.f32.mrb[0].mxu0
      %v805 = vadd.f32 %v515, %v804
      %v806 = vpop.f32.mrb[0].mxu0
      %v807 = vpop.f32.mrb[0].mxu0
      %v808 = vpop.f32.mrb[0].mxu0
      %809 = vdwg.mxu0
      %v810 = vtanh.pop %v805
      %v811 = vmul.f32 %v810, 0.5
      %v812 = vadd.f32 %v811, 0.5
      %v813 = vmul.f32 %v812, %v614
      %815 = vrot.lane.b32.xlu0 %v810, 64
      %v816 = vpop.permute.xlu0 %815
      %v818 = vmul.f32 %v812, %v816
      %820 = vrot.lane.b32.xlu0 %v818, 32
      %v821 = vpop.permute.xlu0 %820
      %v823 = vadd.f32 %v813, %v821
      %v824 = vtanh.pop %v823
      %826 = vrot.lane.b32.xlu0 %v824, 64
      %v827 = vpop.permute.xlu0 %826
      %v829 = vmul.f32 %v812, %v827
      %v830 = vpack.c.bf16 %v829, %v829
      %832 = vrot.lane.b32.xlu0 %v830, 32
      %v833 = vpop.permute.xlu0 %832
      %v835 = vsel %vm464, %v833, 0
      %837 = vmatprep.subr.bf16.mxu0 0
      %838 = vmatpush1.bf16.msra.mxu0 %v646
      %839 = vmatprep.subr.bf16.mxu0 0
      %840 = vmatpush1.bf16.msra.mxu0 %v647
      %841 = vmatprep.subr.bf16.mxu0 0
      %842 = vmatpush1.bf16.msra.mxu0 0
      %843 = vmatprep.subr.bf16.mxu0 0
      %844 = vmatpush1.bf16.msra.mxu0 0
      %845 = vmatprep.subr.bf16.mxu0 0
      %846 = vmatpush1.bf16.msra.mxu0 0
      %847 = vmatprep.subr.bf16.mxu0 0
      %848 = vmatpush1.bf16.msra.mxu0 0
      %849 = vmatprep.subr.bf16.mxu0 0
      %850 = vmatpush1.bf16.msra.mxu0 0
      %851 = vmatprep.subr.bf16.mxu0 0
      %852 = vmatpush1.bf16.msra.mxu0 0
      %853 = vmatprep.subr.bf16.mxu0 0
      %854 = vmatpush1.bf16.msra.mxu0 0
      %855 = vmatprep.subr.bf16.mxu0 0
      %856 = vmatpush1.bf16.msra.mxu0 0
      %857 = vmatprep.subr.bf16.mxu0 0
      %858 = vmatpush1.bf16.msra.mxu0 0
      %859 = vmatprep.subr.bf16.mxu0 0
      %860 = vmatpush1.bf16.msra.mxu0 0
      %861 = vmatprep.subr.bf16.mxu0 0
      %862 = vmatpush1.bf16.msra.mxu0 0
      %863 = vmatprep.subr.bf16.mxu0 0
      %864 = vmatpush1.bf16.msra.mxu0 0
      %865 = vmatprep.subr.bf16.mxu0 0
      %866 = vmatpush1.bf16.msra.mxu0 0
      %867 = vmatprep.subr.bf16.mxu0 0
      %868 = vmatpush1.bf16.msra.mxu0 0
      %869 = vmatprep.mubr.bf16.mxu0 0
      %870 = vmatmul.mubr.bf16.gmra.mrb[0].mxu0 %v835
      %v871 = vpop.f32.mrb[0].mxu0
      %v872 = vadd.f32 %v633, %v871
      %v873 = vpop.f32.mrb[0].mxu0
      %v874 = vpop.f32.mrb[0].mxu0
      %v875 = vpop.f32.mrb[0].mxu0
      %876 = vdwg.mxu0
      %v877 = vpack.c.bf16 %v769, %v769
      %879 = vrot.lane.b32.xlu0 %v877, 32
      %v880 = vpop.permute.xlu0 %879
      %v882 = vsel %vm464, %v880, 0
      %884 = vmatprep.subr.bf16.mxu0 0
      %885 = vmatpush1.bf16.msra.mxu0 %v706
      %886 = vmatprep.subr.bf16.mxu0 0
      %887 = vmatpush1.bf16.msra.mxu0 %v707
      %888 = vmatprep.subr.bf16.mxu0 0
      %889 = vmatpush1.bf16.msra.mxu0 0
      %890 = vmatprep.subr.bf16.mxu0 0
      %891 = vmatpush1.bf16.msra.mxu0 0
      %892 = vmatprep.subr.bf16.mxu0 0
      %893 = vmatpush1.bf16.msra.mxu0 0
      %894 = vmatprep.subr.bf16.mxu0 0
      %895 = vmatpush1.bf16.msra.mxu0 0
      %896 = vmatprep.subr.bf16.mxu0 0
      %897 = vmatpush1.bf16.msra.mxu0 0
      %898 = vmatprep.subr.bf16.mxu0 0
      %899 = vmatpush1.bf16.msra.mxu0 0
      %900 = vmatprep.subr.bf16.mxu0 0
      %901 = vmatpush1.bf16.msra.mxu0 0
      %902 = vmatprep.subr.bf16.mxu0 0
      %903 = vmatpush1.bf16.msra.mxu0 0
      %904 = vmatprep.subr.bf16.mxu0 0
      %905 = vmatpush1.bf16.msra.mxu0 0
      %906 = vmatprep.subr.bf16.mxu0 0
      %907 = vmatpush1.bf16.msra.mxu0 0
      %908 = vmatprep.subr.bf16.mxu0 0
      %909 = vmatpush1.bf16.msra.mxu0 0
      %910 = vmatprep.subr.bf16.mxu0 0
      %911 = vmatpush1.bf16.msra.mxu0 0
      %912 = vmatprep.subr.bf16.mxu0 0
      %913 = vmatpush1.bf16.msra.mxu0 0
      %914 = vmatprep.subr.bf16.mxu0 0
      %915 = vmatpush1.bf16.msra.mxu0 0
      %916 = vmatprep.mubr.bf16.mxu0 0
      %917 = vmatmul.mubr.bf16.gmra.mrb[0].mxu0 %v882
      %v918 = vpop.f32.mrb[0].mxu0
      %v919 = vadd.f32 %v872, %v918
      %v920 = vpop.f32.mrb[0].mxu0
      %v921 = vpop.f32.mrb[0].mxu0
      %v922 = vpop.f32.mrb[0].mxu0
      %923 = vdwg.mxu0
      %v924 = vtanh.pop %v919
      %v925 = vmul.f32 %v924, 0.5
      %v926 = vadd.f32 %v925, 0.5
      %v927 = vmul.f32 %v926, %v763
      %929 = vrot.lane.b32.xlu0 %v924, 64
      %v930 = vpop.permute.xlu0 %929
      %v932 = vmul.f32 %v926, %v930
      %934 = vrot.lane.b32.xlu0 %v932, 32
      %v935 = vpop.permute.xlu0 %934
      %v937 = vadd.f32 %v927, %v935
      %v938 = vtanh.pop %v937
      %940 = vrot.lane.b32.xlu0 %v938, 64
      %v941 = vpop.permute.xlu0 %940
      %v943 = vmul.f32 %v926, %v941
      %944 = vmatprep.subr.bf16.mxu0 0
      %945 = vmatpush1.bf16.msra.mxu0 %v554
      %946 = vmatprep.subr.bf16.mxu0 0
      %947 = vmatpush1.bf16.msra.mxu0 %v555
      %948 = vmatprep.subr.bf16.mxu0 0
      %949 = vmatpush1.bf16.msra.mxu0 0
      %950 = vmatprep.subr.bf16.mxu0 0
      %951 = vmatpush1.bf16.msra.mxu0 0
      %952 = vmatprep.subr.bf16.mxu0 0
      %953 = vmatpush1.bf16.msra.mxu0 0
      %954 = vmatprep.subr.bf16.mxu0 0
      %955 = vmatpush1.bf16.msra.mxu0 0
      %956 = vmatprep.subr.bf16.mxu0 0
      %957 = vmatpush1.bf16.msra.mxu0 0
      %958 = vmatprep.subr.bf16.mxu0 0
      %959 = vmatpush1.bf16.msra.mxu0 0
      %960 = vmatprep.subr.bf16.mxu0 0
      %961 = vmatpush1.bf16.msra.mxu0 0
      %962 = vmatprep.subr.bf16.mxu0 0
      %963 = vmatpush1.bf16.msra.mxu0 0
      %964 = vmatprep.subr.bf16.mxu0 0
      %965 = vmatpush1.bf16.msra.mxu0 0
      %966 = vmatprep.subr.bf16.mxu0 0
      %967 = vmatpush1.bf16.msra.mxu0 0
      %968 = vmatprep.subr.bf16.mxu0 0
      %969 = vmatpush1.bf16.msra.mxu0 0
      %970 = vmatprep.subr.bf16.mxu0 0
      %971 = vmatpush1.bf16.msra.mxu0 0
      %972 = vmatprep.subr.bf16.mxu0 0
      %973 = vmatpush1.bf16.msra.mxu0 0
      %974 = vmatprep.subr.bf16.mxu0 0
      %975 = vmatpush1.bf16.msra.mxu0 0
      %976 = vmatprep.mubr.bf16.mxu0 0
      %977 = vmatmul.mubr.bf16.gmra.mrb[0].mxu0 %v835
      %v978 = vpop.f32.mrb[0].mxu0
      %v979 = vadd.f32 %v520, %v978
      %v980 = vpop.f32.mrb[0].mxu0
      %v981 = vpop.f32.mrb[0].mxu0
      %v982 = vpop.f32.mrb[0].mxu0
      %983 = vdwg.mxu0
      %v984 = vtanh.pop %v979
      %v985 = vmul.f32 %v984, 0.5
      %v986 = vadd.f32 %v985, 0.5
      %v987 = vmul.f32 %v986, %v823
      %989 = vrot.lane.b32.xlu0 %v984, 64
      %v990 = vpop.permute.xlu0 %989
      %v992 = vmul.f32 %v986, %v990
      %994 = vrot.lane.b32.xlu0 %v992, 32
      %v995 = vpop.permute.xlu0 %994
      %v997 = vadd.f32 %v987, %v995
      %v998 = vtanh.pop %v997
      %1000 = vrot.lane.b32.xlu0 %v998, 64
      %v1001 = vpop.permute.xlu0 %1000
      %v1003 = vmul.f32 %v986, %v1001
      %v1004 = vpack.c.bf16 %v1003, %v1003
      %1006 = vrot.lane.b32.xlu0 %v1004, 32
      %v1007 = vpop.permute.xlu0 %1006
      %v1009 = vsel %vm464, %v1007, 0
      %1011 = vmatprep.subr.bf16.mxu0 0
      %1012 = vmatpush1.bf16.msra.mxu0 %v646
      %1013 = vmatprep.subr.bf16.mxu0 0
      %1014 = vmatpush1.bf16.msra.mxu0 %v647
      %1015 = vmatprep.subr.bf16.mxu0 0
      %1016 = vmatpush1.bf16.msra.mxu0 0
      %1017 = vmatprep.subr.bf16.mxu0 0
      %1018 = vmatpush1.bf16.msra.mxu0 0
      %1019 = vmatprep.subr.bf16.mxu0 0
      %1020 = vmatpush1.bf16.msra.mxu0 0
      %1021 = vmatprep.subr.bf16.mxu0 0
      %1022 = vmatpush1.bf16.msra.mxu0 0
      %1023 = vmatprep.subr.bf16.mxu0 0
      %1024 = vmatpush1.bf16.msra.mxu0 0
      %1025 = vmatprep.subr.bf16.mxu0 0
      %1026 = vmatpush1.bf16.msra.mxu0 0
      %1027 = vmatprep.subr.bf16.mxu0 0
      %1028 = vmatpush1.bf16.msra.mxu0 0
      %1029 = vmatprep.subr.bf16.mxu0 0
      %1030 = vmatpush1.bf16.msra.mxu0 0
      %1031 = vmatprep.subr.bf16.mxu0 0
      %1032 = vmatpush1.bf16.msra.mxu0 0
      %1033 = vmatprep.subr.bf16.mxu0 0
      %1034 = vmatpush1.bf16.msra.mxu0 0
      %1035 = vmatprep.subr.bf16.mxu0 0
      %1036 = vmatpush1.bf16.msra.mxu0 0
      %1037 = vmatprep.subr.bf16.mxu0 0
      %1038 = vmatpush1.bf16.msra.mxu0 0
      %1039 = vmatprep.subr.bf16.mxu0 0
      %1040 = vmatpush1.bf16.msra.mxu0 0
      %1041 = vmatprep.subr.bf16.mxu0 0
      %1042 = vmatpush1.bf16.msra.mxu0 0
      %1043 = vmatprep.mubr.bf16.mxu0 0
      %1044 = vmatmul.mubr.bf16.gmra.mrb[0].mxu0 %v1009
      %v1045 = vpop.f32.mrb[0].mxu0
      %v1046 = vadd.f32 %v633, %v1045
      %v1047 = vpop.f32.mrb[0].mxu0
      %v1048 = vpop.f32.mrb[0].mxu0
      %v1049 = vpop.f32.mrb[0].mxu0
      %1050 = vdwg.mxu0
      %v1051 = vpack.c.bf16 %v943, %v943
      %1053 = vrot.lane.b32.xlu0 %v1051, 32
      %v1054 = vpop.permute.xlu0 %1053
      %v1056 = vsel %vm464, %v1054, 0
      %1058 = vmatprep.subr.bf16.mxu0 0
      %1059 = vmatpush1.bf16.msra.mxu0 %v706
      %1060 = vmatprep.subr.bf16.mxu0 0
      %1061 = vmatpush1.bf16.msra.mxu0 %v707
      %1062 = vmatprep.subr.bf16.mxu0 0
      %1063 = vmatpush1.bf16.msra.mxu0 0
      %1064 = vmatprep.subr.bf16.mxu0 0
      %1065 = vmatpush1.bf16.msra.mxu0 0
      %1066 = vmatprep.subr.bf16.mxu0 0
      %1067 = vmatpush1.bf16.msra.mxu0 0
      %1068 = vmatprep.subr.bf16.mxu0 0
      %1069 = vmatpush1.bf16.msra.mxu0 0
      %1070 = vmatprep.subr.bf16.mxu0 0
      %1071 = vmatpush1.bf16.msra.mxu0 0
      %1072 = vmatprep.subr.bf16.mxu0 0
      %1073 = vmatpush1.bf16.msra.mxu0 0
      %1074 = vmatprep.subr.bf16.mxu0 0
      %1075 = vmatpush1.bf16.msra.mxu0 0
      %1076 = vmatprep.subr.bf16.mxu0 0
      %1077 = vmatpush1.bf16.msra.mxu0 0
      %1078 = vmatprep.subr.bf16.mxu0 0
      %1079 = vmatpush1.bf16.msra.mxu0 0
      %1080 = vmatprep.subr.bf16.mxu0 0
      %1081 = vmatpush1.bf16.msra.mxu0 0
      %1082 = vmatprep.subr.bf16.mxu0 0
      %1083 = vmatpush1.bf16.msra.mxu0 0
      %1084 = vmatprep.subr.bf16.mxu0 0
      %1085 = vmatpush1.bf16.msra.mxu0 0
      %1086 = vmatprep.subr.bf16.mxu0 0
      %1087 = vmatpush1.bf16.msra.mxu0 0
      %1088 = vmatprep.subr.bf16.mxu0 0
      %1089 = vmatpush1.bf16.msra.mxu0 0
      %1090 = vmatprep.mubr.bf16.mxu0 0
      %1091 = vmatmul.mubr.bf16.gmra.mrb[0].mxu0 %v1056
      %v1092 = vpop.f32.mrb[0].mxu0
      %v1093 = vadd.f32 %v1046, %v1092
      %v1094 = vpop.f32.mrb[0].mxu0
      %v1095 = vpop.f32.mrb[0].mxu0
      %v1096 = vpop.f32.mrb[0].mxu0
      %1097 = vdwg.mxu0
      %v1098 = vtanh.pop %v1093
      %v1099 = vmul.f32 %v1098, 0.5
      %v1100 = vadd.f32 %v1099, 0.5
      %v1101 = vmul.f32 %v1100, %v937
      %1103 = vrot.lane.b32.xlu0 %v1098, 64
      %v1104 = vpop.permute.xlu0 %1103
      %v1106 = vmul.f32 %v1100, %v1104
      %1108 = vrot.lane.b32.xlu0 %v1106, 32
      %v1109 = vpop.permute.xlu0 %1108
      %v1111 = vadd.f32 %v1101, %v1109
      %v1112 = vtanh.pop %v1111
      %1114 = vrot.lane.b32.xlu0 %v1112, 64
      %v1115 = vpop.permute.xlu0 %1114
      %v1117 = vmul.f32 %v1100, %v1115
      %1118 = vmatprep.subr.bf16.mxu0 0
      %1119 = vmatpush1.bf16.msra.mxu0 %v554
      %1120 = vmatprep.subr.bf16.mxu0 0
      %1121 = vmatpush1.bf16.msra.mxu0 %v555
      %1122 = vmatprep.subr.bf16.mxu0 0
      %1123 = vmatpush1.bf16.msra.mxu0 0
      %1124 = vmatprep.subr.bf16.mxu0 0
      %1125 = vmatpush1.bf16.msra.mxu0 0
      %1126 = vmatprep.subr.bf16.mxu0 0
      %1127 = vmatpush1.bf16.msra.mxu0 0
      %1128 = vmatprep.subr.bf16.mxu0 0
      %1129 = vmatpush1.bf16.msra.mxu0 0
      %1130 = vmatprep.subr.bf16.mxu0 0
      %1131 = vmatpush1.bf16.msra.mxu0 0
      %1132 = vmatprep.subr.bf16.mxu0 0
      %1133 = vmatpush1.bf16.msra.mxu0 0
      %1134 = vmatprep.subr.bf16.mxu0 0
      %1135 = vmatpush1.bf16.msra.mxu0 0
      %1136 = vmatprep.subr.bf16.mxu0 0
      %1137 = vmatpush1.bf16.msra.mxu0 0
      %1138 = vmatprep.subr.bf16.mxu0 0
      %1139 = vmatpush1.bf16.msra.mxu0 0
      %1140 = vmatprep.subr.bf16.mxu0 0
      %1141 = vmatpush1.bf16.msra.mxu0 0
      %1142 = vmatprep.subr.bf16.mxu0 0
      %1143 = vmatpush1.bf16.msra.mxu0 0
      %1144 = vmatprep.subr.bf16.mxu0 0
      %1145 = vmatpush1.bf16.msra.mxu0 0
      %1146 = vmatprep.subr.bf16.mxu0 0
      %1147 = vmatpush1.bf16.msra.mxu0 0
      %1148 = vmatprep.subr.bf16.mxu0 0
      %1149 = vmatpush1.bf16.msra.mxu0 0
      %1150 = vmatprep.mubr.bf16.mxu0 0
      %1151 = vmatmul.mubr.bf16.gmra.mrb[0].mxu0 %v1009
      %v1152 = vpop.f32.mrb[0].mxu0
      %v1153 = vadd.f32 %v523, %v1152
      %v1154 = vpop.f32.mrb[0].mxu0
      %v1155 = vpop.f32.mrb[0].mxu0
      %v1156 = vpop.f32.mrb[0].mxu0
      %1157 = vdwg.mxu0
      %v1158 = vtanh.pop %v1153
      %v1159 = vmul.f32 %v1158, 0.5
      %v1160 = vadd.f32 %v1159, 0.5
      %v1161 = vmul.f32 %v1160, %v997
      %1163 = vrot.lane.b32.xlu0 %v1158, 64
      %v1164 = vpop.permute.xlu0 %1163
      %v1166 = vmul.f32 %v1160, %v1164
      %1168 = vrot.lane.b32.xlu0 %v1166, 32
      %v1169 = vpop.permute.xlu0 %1168
      %v1171 = vadd.f32 %v1161, %v1169
      %v1172 = vtanh.pop %v1171
      %1174 = vrot.lane.b32.xlu0 %v1172, 64
      %v1175 = vpop.permute.xlu0 %1174
      %v1177 = vmul.f32 %v1160, %v1175
      %v1178 = vpack.c.bf16 %v1177, %v1177
      %1180 = vrot.lane.b32.xlu0 %v1178, 32
      %v1181 = vpop.permute.xlu0 %1180
      %v1183 = vsel %vm464, %v1181, 0
      %1185 = vmatprep.subr.bf16.mxu0 0
      %1186 = vmatpush1.bf16.msra.mxu0 %v646
      %1187 = vmatprep.subr.bf16.mxu0 0
      %1188 = vmatpush1.bf16.msra.mxu0 %v647
      %1189 = vmatprep.subr.bf16.mxu0 0
      %1190 = vmatpush1.bf16.msra.mxu0 0
      %1191 = vmatprep.subr.bf16.mxu0 0
      %1192 = vmatpush1.bf16.msra.mxu0 0
      %1193 = vmatprep.subr.bf16.mxu0 0
      %1194 = vmatpush1.bf16.msra.mxu0 0
      %1195 = vmatprep.subr.bf16.mxu0 0
      %1196 = vmatpush1.bf16.msra.mxu0 0
      %1197 = vmatprep.subr.bf16.mxu0 0
      %1198 = vmatpush1.bf16.msra.mxu0 0
      %1199 = vmatprep.subr.bf16.mxu0 0
      %1200 = vmatpush1.bf16.msra.mxu0 0
      %1201 = vmatprep.subr.bf16.mxu0 0
      %1202 = vmatpush1.bf16.msra.mxu0 0
      %1203 = vmatprep.subr.bf16.mxu0 0
      %1204 = vmatpush1.bf16.msra.mxu0 0
      %1205 = vmatprep.subr.bf16.mxu0 0
      %1206 = vmatpush1.bf16.msra.mxu0 0
      %1207 = vmatprep.subr.bf16.mxu0 0
      %1208 = vmatpush1.bf16.msra.mxu0 0
      %1209 = vmatprep.subr.bf16.mxu0 0
      %1210 = vmatpush1.bf16.msra.mxu0 0
      %1211 = vmatprep.subr.bf16.mxu0 0
      %1212 = vmatpush1.bf16.msra.mxu0 0
      %1213 = vmatprep.subr.bf16.mxu0 0
      %1214 = vmatpush1.bf16.msra.mxu0 0
      %1215 = vmatprep.subr.bf16.mxu0 0
      %1216 = vmatpush1.bf16.msra.mxu0 0
      %1217 = vmatprep.mubr.bf16.mxu0 0
      %1218 = vmatmul.mubr.bf16.gmra.mrb[0].mxu0 %v1183
      %v1219 = vpop.f32.mrb[0].mxu0
      %v1220 = vadd.f32 %v633, %v1219
      %v1221 = vpop.f32.mrb[0].mxu0
      %v1222 = vpop.f32.mrb[0].mxu0
      %v1223 = vpop.f32.mrb[0].mxu0
      %1224 = vdwg.mxu0
      %v1225 = vpack.c.bf16 %v1117, %v1117
      %1227 = vrot.lane.b32.xlu0 %v1225, 32
      %v1228 = vpop.permute.xlu0 %1227
      %v1230 = vsel %vm464, %v1228, 0
      %1232 = vmatprep.subr.bf16.mxu0 0
      %1233 = vmatpush1.bf16.msra.mxu0 %v706
      %1234 = vmatprep.subr.bf16.mxu0 0
      %1235 = vmatpush1.bf16.msra.mxu0 %v707
      %1236 = vmatprep.subr.bf16.mxu0 0
      %1237 = vmatpush1.bf16.msra.mxu0 0
      %1238 = vmatprep.subr.bf16.mxu0 0
      %1239 = vmatpush1.bf16.msra.mxu0 0
      %1240 = vmatprep.subr.bf16.mxu0 0
      %1241 = vmatpush1.bf16.msra.mxu0 0
      %1242 = vmatprep.subr.bf16.mxu0 0
      %1243 = vmatpush1.bf16.msra.mxu0 0
      %1244 = vmatprep.subr.bf16.mxu0 0
      %1245 = vmatpush1.bf16.msra.mxu0 0
      %1246 = vmatprep.subr.bf16.mxu0 0
      %1247 = vmatpush1.bf16.msra.mxu0 0
      %1248 = vmatprep.subr.bf16.mxu0 0
      %1249 = vmatpush1.bf16.msra.mxu0 0
      %1250 = vmatprep.subr.bf16.mxu0 0
      %1251 = vmatpush1.bf16.msra.mxu0 0
      %1252 = vmatprep.subr.bf16.mxu0 0
      %1253 = vmatpush1.bf16.msra.mxu0 0
      %1254 = vmatprep.subr.bf16.mxu0 0
      %1255 = vmatpush1.bf16.msra.mxu0 0
      %1256 = vmatprep.subr.bf16.mxu0 0
      %1257 = vmatpush1.bf16.msra.mxu0 0
      %1258 = vmatprep.subr.bf16.mxu0 0
      %1259 = vmatpush1.bf16.msra.mxu0 0
      %1260 = vmatprep.subr.bf16.mxu0 0
      %1261 = vmatpush1.bf16.msra.mxu0 0
      %1262 = vmatprep.subr.bf16.mxu0 0
      %1263 = vmatpush1.bf16.msra.mxu0 0
      %1264 = vmatprep.mubr.bf16.mxu0 0
      %1265 = vmatmul.mubr.bf16.gmra.mrb[0].mxu0 %v1230
      %v1266 = vpop.f32.mrb[0].mxu0
      %v1267 = vadd.f32 %v1220, %v1266
      %v1268 = vpop.f32.mrb[0].mxu0
      %v1269 = vpop.f32.mrb[0].mxu0
      %v1270 = vpop.f32.mrb[0].mxu0
      %1271 = vdwg.mxu0
      %v1272 = vtanh.pop %v1267
      %v1273 = vmul.f32 %v1272, 0.5
      %v1274 = vadd.f32 %v1273, 0.5
      %v1275 = vmul.f32 %v1274, %v1111
      %1277 = vrot.lane.b32.xlu0 %v1272, 64
      %v1278 = vpop.permute.xlu0 %1277
      %v1280 = vmul.f32 %v1274, %v1278
      %1282 = vrot.lane.b32.xlu0 %v1280, 32
      %v1283 = vpop.permute.xlu0 %1282
      %v1285 = vadd.f32 %v1275, %v1283
      %v1286 = vtanh.pop %v1285
      %1288 = vrot.lane.b32.xlu0 %v1286, 64
      %v1289 = vpop.permute.xlu0 %1288
      %v1291 = vmul.f32 %v1274, %v1289
      %1292 = vmatprep.subr.bf16.mxu0 0
      %1293 = vmatpush1.bf16.msra.mxu0 %v554
      %1294 = vmatprep.subr.bf16.mxu0 0
      %1295 = vmatpush1.bf16.msra.mxu0 %v555
      %1296 = vmatprep.subr.bf16.mxu0 0
      %1297 = vmatpush1.bf16.msra.mxu0 0
      %1298 = vmatprep.subr.bf16.mxu0 0
      %1299 = vmatpush1.bf16.msra.mxu0 0
      %1300 = vmatprep.subr.bf16.mxu0 0
      %1301 = vmatpush1.bf16.msra.mxu0 0
      %1302 = vmatprep.subr.bf16.mxu0 0
      %1303 = vmatpush1.bf16.msra.mxu0 0
      %1304 = vmatprep.subr.bf16.mxu0 0
      %1305 = vmatpush1.bf16.msra.mxu0 0
      %1306 = vmatprep.subr.bf16.mxu0 0
      %1307 = vmatpush1.bf16.msra.mxu0 0
      %1308 = vmatprep.subr.bf16.mxu0 0
      %1309 = vmatpush1.bf16.msra.mxu0 0
      %1310 = vmatprep.subr.bf16.mxu0 0
      %1311 = vmatpush1.bf16.msra.mxu0 0
      %1312 = vmatprep.subr.bf16.mxu0 0
      %1313 = vmatpush1.bf16.msra.mxu0 0
      %1314 = vmatprep.subr.bf16.mxu0 0
      %1315 = vmatpush1.bf16.msra.mxu0 0
      %1316 = vmatprep.subr.bf16.mxu0 0
      %1317 = vmatpush1.bf16.msra.mxu0 0
      %1318 = vmatprep.subr.bf16.mxu0 0
      %1319 = vmatpush1.bf16.msra.mxu0 0
      %1320 = vmatprep.subr.bf16.mxu0 0
      %1321 = vmatpush1.bf16.msra.mxu0 0
      %1322 = vmatprep.subr.bf16.mxu0 0
      %1323 = vmatpush1.bf16.msra.mxu0 0
      %1324 = vmatprep.mubr.bf16.mxu0 0
      %1325 = vmatmul.mubr.bf16.gmra.mrb[0].mxu0 %v1183
      %v1326 = vpop.f32.mrb[0].mxu0
      %v1327 = vadd.f32 %v528, %v1326
      %v1328 = vpop.f32.mrb[0].mxu0
      %v1329 = vpop.f32.mrb[0].mxu0
      %v1330 = vpop.f32.mrb[0].mxu0
      %1331 = vdwg.mxu0
      %v1332 = vtanh.pop %v1327
      %v1333 = vmul.f32 %v1332, 0.5
      %v1334 = vadd.f32 %v1333, 0.5
      %v1335 = vmul.f32 %v1334, %v1171
      %1337 = vrot.lane.b32.xlu0 %v1332, 64
      %v1338 = vpop.permute.xlu0 %1337
      %v1340 = vmul.f32 %v1334, %v1338
      %1342 = vrot.lane.b32.xlu0 %v1340, 32
      %v1343 = vpop.permute.xlu0 %1342
      %v1345 = vadd.f32 %v1335, %v1343
      %v1346 = vtanh.pop %v1345
      %1348 = vrot.lane.b32.xlu0 %v1346, 64
      %v1349 = vpop.permute.xlu0 %1348
      %v1351 = vmul.f32 %v1334, %v1349
      %v1352 = vpack.c.bf16 %v1351, %v1351
      %1354 = vrot.lane.b32.xlu0 %v1352, 32
      %v1355 = vpop.permute.xlu0 %1354
      %v1357 = vsel %vm464, %v1355, 0
      %1359 = vmatprep.subr.bf16.mxu0 0
      %1360 = vmatpush1.bf16.msra.mxu0 %v646
      %1361 = vmatprep.subr.bf16.mxu0 0
      %1362 = vmatpush1.bf16.msra.mxu0 %v647
      %1363 = vmatprep.subr.bf16.mxu0 0
      %1364 = vmatpush1.bf16.msra.mxu0 0
      %1365 = vmatprep.subr.bf16.mxu0 0
      %1366 = vmatpush1.bf16.msra.mxu0 0
      %1367 = vmatprep.subr.bf16.mxu0 0
      %1368 = vmatpush1.bf16.msra.mxu0 0
      %1369 = vmatprep.subr.bf16.mxu0 0
      %1370 = vmatpush1.bf16.msra.mxu0 0
      %1371 = vmatprep.subr.bf16.mxu0 0
      %1372 = vmatpush1.bf16.msra.mxu0 0
      %1373 = vmatprep.subr.bf16.mxu0 0
      %1374 = vmatpush1.bf16.msra.mxu0 0
      %1375 = vmatprep.subr.bf16.mxu0 0
      %1376 = vmatpush1.bf16.msra.mxu0 0
      %1377 = vmatprep.subr.bf16.mxu0 0
      %1378 = vmatpush1.bf16.msra.mxu0 0
      %1379 = vmatprep.subr.bf16.mxu0 0
      %1380 = vmatpush1.bf16.msra.mxu0 0
      %1381 = vmatprep.subr.bf16.mxu0 0
      %1382 = vmatpush1.bf16.msra.mxu0 0
      %1383 = vmatprep.subr.bf16.mxu0 0
      %1384 = vmatpush1.bf16.msra.mxu0 0
      %1385 = vmatprep.subr.bf16.mxu0 0
      %1386 = vmatpush1.bf16.msra.mxu0 0
      %1387 = vmatprep.subr.bf16.mxu0 0
      %1388 = vmatpush1.bf16.msra.mxu0 0
      %1389 = vmatprep.subr.bf16.mxu0 0
      %1390 = vmatpush1.bf16.msra.mxu0 0
      %1391 = vmatprep.mubr.bf16.mxu0 0
      %1392 = vmatmul.mubr.bf16.gmra.mrb[0].mxu0 %v1357
      %v1393 = vpop.f32.mrb[0].mxu0
      %v1394 = vadd.f32 %v633, %v1393
      %v1395 = vpop.f32.mrb[0].mxu0
      %v1396 = vpop.f32.mrb[0].mxu0
      %v1397 = vpop.f32.mrb[0].mxu0
      %1398 = vdwg.mxu0
      %v1399 = vpack.c.bf16 %v1291, %v1291
      %1401 = vrot.lane.b32.xlu0 %v1399, 32
      %v1402 = vpop.permute.xlu0 %1401
      %v1404 = vsel %vm464, %v1402, 0
      %1406 = vmatprep.subr.bf16.mxu0 0
      %1407 = vmatpush1.bf16.msra.mxu0 %v706
      %1408 = vmatprep.subr.bf16.mxu0 0
      %1409 = vmatpush1.bf16.msra.mxu0 %v707
      %1410 = vmatprep.subr.bf16.mxu0 0
      %1411 = vmatpush1.bf16.msra.mxu0 0
      %1412 = vmatprep.subr.bf16.mxu0 0
      %1413 = vmatpush1.bf16.msra.mxu0 0
      %1414 = vmatprep.subr.bf16.mxu0 0
      %1415 = vmatpush1.bf16.msra.mxu0 0
      %1416 = vmatprep.subr.bf16.mxu0 0
      %1417 = vmatpush1.bf16.msra.mxu0 0
      %1418 = vmatprep.subr.bf16.mxu0 0
      %1419 = vmatpush1.bf16.msra.mxu0 0
      %1420 = vmatprep.subr.bf16.mxu0 0
      %1421 = vmatpush1.bf16.msra.mxu0 0
      %1422 = vmatprep.subr.bf16.mxu0 0
      %1423 = vmatpush1.bf16.msra.mxu0 0
      %1424 = vmatprep.subr.bf16.mxu0 0
      %1425 = vmatpush1.bf16.msra.mxu0 0
      %1426 = vmatprep.subr.bf16.mxu0 0
      %1427 = vmatpush1.bf16.msra.mxu0 0
      %1428 = vmatprep.subr.bf16.mxu0 0
      %1429 = vmatpush1.bf16.msra.mxu0 0
      %1430 = vmatprep.subr.bf16.mxu0 0
      %1431 = vmatpush1.bf16.msra.mxu0 0
      %1432 = vmatprep.subr.bf16.mxu0 0
      %1433 = vmatpush1.bf16.msra.mxu0 0
      %1434 = vmatprep.subr.bf16.mxu0 0
      %1435 = vmatpush1.bf16.msra.mxu0 0
      %1436 = vmatprep.subr.bf16.mxu0 0
      %1437 = vmatpush1.bf16.msra.mxu0 0
      %1438 = vmatprep.mubr.bf16.mxu0 0
      %1439 = vmatmul.mubr.bf16.gmra.mrb[0].mxu0 %v1404
      %v1440 = vpop.f32.mrb[0].mxu0
      %v1441 = vadd.f32 %v1394, %v1440
      %v1442 = vpop.f32.mrb[0].mxu0
      %v1443 = vpop.f32.mrb[0].mxu0
      %v1444 = vpop.f32.mrb[0].mxu0
      %1445 = vdwg.mxu0
      %v1446 = vtanh.pop %v1441
      %v1447 = vmul.f32 %v1446, 0.5
      %v1448 = vadd.f32 %v1447, 0.5
      %v1449 = vmul.f32 %v1448, %v1285
      %1451 = vrot.lane.b32.xlu0 %v1446, 64
      %v1452 = vpop.permute.xlu0 %1451
      %v1454 = vmul.f32 %v1448, %v1452
      %1456 = vrot.lane.b32.xlu0 %v1454, 32
      %v1457 = vpop.permute.xlu0 %1456
      %v1459 = vadd.f32 %v1449, %v1457
      %v1460 = vtanh.pop %v1459
      %1462 = vrot.lane.b32.xlu0 %v1460, 64
      %v1463 = vpop.permute.xlu0 %1462
      %v1465 = vmul.f32 %v1448, %v1463
      %1466 = vmatprep.subr.bf16.mxu0 0
      %1467 = vmatpush1.bf16.msra.mxu0 %v554
      %1468 = vmatprep.subr.bf16.mxu0 0
      %1469 = vmatpush1.bf16.msra.mxu0 %v555
      %1470 = vmatprep.subr.bf16.mxu0 0
      %1471 = vmatpush1.bf16.msra.mxu0 0
      %1472 = vmatprep.subr.bf16.mxu0 0
      %1473 = vmatpush1.bf16.msra.mxu0 0
      %1474 = vmatprep.subr.bf16.mxu0 0
      %1475 = vmatpush1.bf16.msra.mxu0 0
      %1476 = vmatprep.subr.bf16.mxu0 0
      %1477 = vmatpush1.bf16.msra.mxu0 0
      %1478 = vmatprep.subr.bf16.mxu0 0
      %1479 = vmatpush1.bf16.msra.mxu0 0
      %1480 = vmatprep.subr.bf16.mxu0 0
      %1481 = vmatpush1.bf16.msra.mxu0 0
      %1482 = vmatprep.subr.bf16.mxu0 0
      %1483 = vmatpush1.bf16.msra.mxu0 0
      %1484 = vmatprep.subr.bf16.mxu0 0
      %1485 = vmatpush1.bf16.msra.mxu0 0
      %1486 = vmatprep.subr.bf16.mxu0 0
      %1487 = vmatpush1.bf16.msra.mxu0 0
      %1488 = vmatprep.subr.bf16.mxu0 0
      %1489 = vmatpush1.bf16.msra.mxu0 0
      %1490 = vmatprep.subr.bf16.mxu0 0
      %1491 = vmatpush1.bf16.msra.mxu0 0
      %1492 = vmatprep.subr.bf16.mxu0 0
      %1493 = vmatpush1.bf16.msra.mxu0 0
      %1494 = vmatprep.subr.bf16.mxu0 0
      %1495 = vmatpush1.bf16.msra.mxu0 0
      %1496 = vmatprep.subr.bf16.mxu0 0
      %1497 = vmatpush1.bf16.msra.mxu0 0
      %1498 = vmatprep.mubr.bf16.mxu0 0
      %1499 = vmatmul.mubr.bf16.gmra.mrb[0].mxu0 %v1357
      %v1500 = vpop.f32.mrb[0].mxu0
      %v1501 = vadd.f32 %v531, %v1500
      %v1502 = vpop.f32.mrb[0].mxu0
      %v1503 = vpop.f32.mrb[0].mxu0
      %v1504 = vpop.f32.mrb[0].mxu0
      %1505 = vdwg.mxu0
      %v1506 = vtanh.pop %v1501
      %v1507 = vmul.f32 %v1506, 0.5
      %v1508 = vadd.f32 %v1507, 0.5
      %v1509 = vmul.f32 %v1508, %v1345
      %1511 = vrot.lane.b32.xlu0 %v1506, 64
      %v1512 = vpop.permute.xlu0 %1511
      %v1514 = vmul.f32 %v1508, %v1512
      %1516 = vrot.lane.b32.xlu0 %v1514, 32
      %v1517 = vpop.permute.xlu0 %1516
      %v1519 = vadd.f32 %v1509, %v1517
      %v1520 = vtanh.pop %v1519
      %1522 = vrot.lane.b32.xlu0 %v1520, 64
      %v1523 = vpop.permute.xlu0 %1522
      %v1525 = vmul.f32 %v1508, %v1523
      %v1526 = vpack.c.bf16 %v1525, %v1525
      %1528 = vrot.lane.b32.xlu0 %v1526, 32
      %v1529 = vpop.permute.xlu0 %1528
      %v1531 = vsel %vm464, %v1529, 0
      %1533 = vmatprep.subr.bf16.mxu0 0
      %1534 = vmatpush1.bf16.msra.mxu0 %v646
      %1535 = vmatprep.subr.bf16.mxu0 0
      %1536 = vmatpush1.bf16.msra.mxu0 %v647
      %1537 = vmatprep.subr.bf16.mxu0 0
      %1538 = vmatpush1.bf16.msra.mxu0 0
      %1539 = vmatprep.subr.bf16.mxu0 0
      %1540 = vmatpush1.bf16.msra.mxu0 0
      %1541 = vmatprep.subr.bf16.mxu0 0
      %1542 = vmatpush1.bf16.msra.mxu0 0
      %1543 = vmatprep.subr.bf16.mxu0 0
      %1544 = vmatpush1.bf16.msra.mxu0 0
      %1545 = vmatprep.subr.bf16.mxu0 0
      %1546 = vmatpush1.bf16.msra.mxu0 0
      %1547 = vmatprep.subr.bf16.mxu0 0
      %1548 = vmatpush1.bf16.msra.mxu0 0
      %1549 = vmatprep.subr.bf16.mxu0 0
      %1550 = vmatpush1.bf16.msra.mxu0 0
      %1551 = vmatprep.subr.bf16.mxu0 0
      %1552 = vmatpush1.bf16.msra.mxu0 0
      %1553 = vmatprep.subr.bf16.mxu0 0
      %1554 = vmatpush1.bf16.msra.mxu0 0
      %1555 = vmatprep.subr.bf16.mxu0 0
      %1556 = vmatpush1.bf16.msra.mxu0 0
      %1557 = vmatprep.subr.bf16.mxu0 0
      %1558 = vmatpush1.bf16.msra.mxu0 0
      %1559 = vmatprep.subr.bf16.mxu0 0
      %1560 = vmatpush1.bf16.msra.mxu0 0
      %1561 = vmatprep.subr.bf16.mxu0 0
      %1562 = vmatpush1.bf16.msra.mxu0 0
      %1563 = vmatprep.subr.bf16.mxu0 0
      %1564 = vmatpush1.bf16.msra.mxu0 0
      %1565 = vmatprep.mubr.bf16.mxu0 0
      %1566 = vmatmul.mubr.bf16.gmra.mrb[0].mxu0 %v1531
      %v1567 = vpop.f32.mrb[0].mxu0
      %v1568 = vadd.f32 %v633, %v1567
      %v1569 = vpop.f32.mrb[0].mxu0
      %v1570 = vpop.f32.mrb[0].mxu0
      %v1571 = vpop.f32.mrb[0].mxu0
      %1572 = vdwg.mxu0
      %v1573 = vpack.c.bf16 %v1465, %v1465
      %1575 = vrot.lane.b32.xlu0 %v1573, 32
      %v1576 = vpop.permute.xlu0 %1575
      %v1578 = vsel %vm464, %v1576, 0
      %1580 = vmatprep.subr.bf16.mxu0 0
      %1581 = vmatpush1.bf16.msra.mxu0 %v706
      %1582 = vmatprep.subr.bf16.mxu0 0
      %1583 = vmatpush1.bf16.msra.mxu0 %v707
      %1584 = vmatprep.subr.bf16.mxu0 0
      %1585 = vmatpush1.bf16.msra.mxu0 0
      %1586 = vmatprep.subr.bf16.mxu0 0
      %1587 = vmatpush1.bf16.msra.mxu0 0
      %1588 = vmatprep.subr.bf16.mxu0 0
      %1589 = vmatpush1.bf16.msra.mxu0 0
      %1590 = vmatprep.subr.bf16.mxu0 0
      %1591 = vmatpush1.bf16.msra.mxu0 0
      %1592 = vmatprep.subr.bf16.mxu0 0
      %1593 = vmatpush1.bf16.msra.mxu0 0
      %1594 = vmatprep.subr.bf16.mxu0 0
      %1595 = vmatpush1.bf16.msra.mxu0 0
      %1596 = vmatprep.subr.bf16.mxu0 0
      %1597 = vmatpush1.bf16.msra.mxu0 0
      %1598 = vmatprep.subr.bf16.mxu0 0
      %1599 = vmatpush1.bf16.msra.mxu0 0
      %1600 = vmatprep.subr.bf16.mxu0 0
      %1601 = vmatpush1.bf16.msra.mxu0 0
      %1602 = vmatprep.subr.bf16.mxu0 0
      %1603 = vmatpush1.bf16.msra.mxu0 0
      %1604 = vmatprep.subr.bf16.mxu0 0
      %1605 = vmatpush1.bf16.msra.mxu0 0
      %1606 = vmatprep.subr.bf16.mxu0 0
      %1607 = vmatpush1.bf16.msra.mxu0 0
      %1608 = vmatprep.subr.bf16.mxu0 0
      %1609 = vmatpush1.bf16.msra.mxu0 0
      %1610 = vmatprep.subr.bf16.mxu0 0
      %1611 = vmatpush1.bf16.msra.mxu0 0
      %1612 = vmatprep.mubr.bf16.mxu0 0
      %1613 = vmatmul.mubr.bf16.gmra.mrb[0].mxu0 %v1578
      %v1614 = vpop.f32.mrb[0].mxu0
      %v1615 = vadd.f32 %v1568, %v1614
      %v1616 = vpop.f32.mrb[0].mxu0
      %v1617 = vpop.f32.mrb[0].mxu0
      %v1618 = vpop.f32.mrb[0].mxu0
      %1619 = vdwg.mxu0
      %v1620 = vtanh.pop %v1615
      %v1621 = vmul.f32 %v1620, 0.5
      %v1622 = vadd.f32 %v1621, 0.5
      %v1623 = vmul.f32 %v1622, %v1459
      %1625 = vrot.lane.b32.xlu0 %v1620, 64
      %v1626 = vpop.permute.xlu0 %1625
      %v1628 = vmul.f32 %v1622, %v1626
      %1630 = vrot.lane.b32.xlu0 %v1628, 32
      %v1631 = vpop.permute.xlu0 %1630
      %v1633 = vadd.f32 %v1623, %v1631
      %v1634 = vtanh.pop %v1633
      %1636 = vrot.lane.b32.xlu0 %v1634, 64
      %v1637 = vpop.permute.xlu0 %1636
      %v1639 = vmul.f32 %v1622, %v1637
      %1640 = vmatprep.subr.bf16.mxu0 0
      %1641 = vmatpush1.bf16.msra.mxu0 %v554
      %1642 = vmatprep.subr.bf16.mxu0 0
      %1643 = vmatpush1.bf16.msra.mxu0 %v555
      %1644 = vmatprep.subr.bf16.mxu0 0
      %1645 = vmatpush1.bf16.msra.mxu0 0
      %1646 = vmatprep.subr.bf16.mxu0 0
      %1647 = vmatpush1.bf16.msra.mxu0 0
      %1648 = vmatprep.subr.bf16.mxu0 0
      %1649 = vmatpush1.bf16.msra.mxu0 0
      %1650 = vmatprep.subr.bf16.mxu0 0
      %1651 = vmatpush1.bf16.msra.mxu0 0
      %1652 = vmatprep.subr.bf16.mxu0 0
      %1653 = vmatpush1.bf16.msra.mxu0 0
      %1654 = vmatprep.subr.bf16.mxu0 0
      %1655 = vmatpush1.bf16.msra.mxu0 0
      %1656 = vmatprep.subr.bf16.mxu0 0
      %1657 = vmatpush1.bf16.msra.mxu0 0
      %1658 = vmatprep.subr.bf16.mxu0 0
      %1659 = vmatpush1.bf16.msra.mxu0 0
      %1660 = vmatprep.subr.bf16.mxu0 0
      %1661 = vmatpush1.bf16.msra.mxu0 0
      %1662 = vmatprep.subr.bf16.mxu0 0
      %1663 = vmatpush1.bf16.msra.mxu0 0
      %1664 = vmatprep.subr.bf16.mxu0 0
      %1665 = vmatpush1.bf16.msra.mxu0 0
      %1666 = vmatprep.subr.bf16.mxu0 0
      %1667 = vmatpush1.bf16.msra.mxu0 0
      %1668 = vmatprep.subr.bf16.mxu0 0
      %1669 = vmatpush1.bf16.msra.mxu0 0
      %1670 = vmatprep.subr.bf16.mxu0 0
      %1671 = vmatpush1.bf16.msra.mxu0 0
      %1672 = vmatprep.mubr.bf16.mxu0 0
      %1673 = vmatmul.mubr.bf16.gmra.mrb[0].mxu0 %v1531
      %v1674 = vpop.f32.mrb[0].mxu0
      %v1675 = vadd.f32 %v536, %v1674
      %v1676 = vpop.f32.mrb[0].mxu0
      %v1677 = vpop.f32.mrb[0].mxu0
      %v1678 = vpop.f32.mrb[0].mxu0
      %1679 = vdwg.mxu0
      %v1680 = vtanh.pop %v1675
      %v1681 = vmul.f32 %v1680, 0.5
      %v1682 = vadd.f32 %v1681, 0.5
      %v1683 = vmul.f32 %v1682, %v1519
      %1685 = vrot.lane.b32.xlu0 %v1680, 64
      %v1686 = vpop.permute.xlu0 %1685
      %v1688 = vmul.f32 %v1682, %v1686
      %1690 = vrot.lane.b32.xlu0 %v1688, 32
      %v1691 = vpop.permute.xlu0 %1690
      %v1693 = vadd.f32 %v1683, %v1691
      %v1694 = vtanh.pop %v1693
      %1696 = vrot.lane.b32.xlu0 %v1694, 64
      %v1697 = vpop.permute.xlu0 %1696
      %v1699 = vmul.f32 %v1682, %v1697
      %v1700 = vpack.c.bf16 %v1699, %v1699
      %1702 = vrot.lane.b32.xlu0 %v1700, 32
      %v1703 = vpop.permute.xlu0 %1702
      %v1705 = vsel %vm464, %v1703, 0
      %1707 = vmatprep.subr.bf16.mxu0 0
      %1708 = vmatpush1.bf16.msra.mxu0 %v646
      %1709 = vmatprep.subr.bf16.mxu0 0
      %1710 = vmatpush1.bf16.msra.mxu0 %v647
      %1711 = vmatprep.subr.bf16.mxu0 0
      %1712 = vmatpush1.bf16.msra.mxu0 0
      %1713 = vmatprep.subr.bf16.mxu0 0
      %1714 = vmatpush1.bf16.msra.mxu0 0
      %1715 = vmatprep.subr.bf16.mxu0 0
      %1716 = vmatpush1.bf16.msra.mxu0 0
      %1717 = vmatprep.subr.bf16.mxu0 0
      %1718 = vmatpush1.bf16.msra.mxu0 0
      %1719 = vmatprep.subr.bf16.mxu0 0
      %1720 = vmatpush1.bf16.msra.mxu0 0
      %1721 = vmatprep.subr.bf16.mxu0 0
      %1722 = vmatpush1.bf16.msra.mxu0 0
      %1723 = vmatprep.subr.bf16.mxu0 0
      %1724 = vmatpush1.bf16.msra.mxu0 0
      %1725 = vmatprep.subr.bf16.mxu0 0
      %1726 = vmatpush1.bf16.msra.mxu0 0
      %1727 = vmatprep.subr.bf16.mxu0 0
      %1728 = vmatpush1.bf16.msra.mxu0 0
      %1729 = vmatprep.subr.bf16.mxu0 0
      %1730 = vmatpush1.bf16.msra.mxu0 0
      %1731 = vmatprep.subr.bf16.mxu0 0
      %1732 = vmatpush1.bf16.msra.mxu0 0
      %1733 = vmatprep.subr.bf16.mxu0 0
      %1734 = vmatpush1.bf16.msra.mxu0 0
      %1735 = vmatprep.subr.bf16.mxu0 0
      %1736 = vmatpush1.bf16.msra.mxu0 0
      %1737 = vmatprep.subr.bf16.mxu0 0
      %1738 = vmatpush1.bf16.msra.mxu0 0
      %1739 = vmatprep.mubr.bf16.mxu0 0
      %1740 = vmatmul.mubr.bf16.gmra.mrb[0].mxu0 %v1705
      %v1741 = vpop.f32.mrb[0].mxu0
      %v1742 = vadd.f32 %v633, %v1741
      %v1743 = vpop.f32.mrb[0].mxu0
      %v1744 = vpop.f32.mrb[0].mxu0
      %v1745 = vpop.f32.mrb[0].mxu0
      %1746 = vdwg.mxu0
      %v1747 = vpack.c.bf16 %v1639, %v1639
      %1749 = vrot.lane.b32.xlu0 %v1747, 32
      %v1750 = vpop.permute.xlu0 %1749
      %v1752 = vsel %vm464, %v1750, 0
      %1754 = vmatprep.subr.bf16.mxu0 0
      %1755 = vmatpush1.bf16.msra.mxu0 %v706
      %1756 = vmatprep.subr.bf16.mxu0 0
      %1757 = vmatpush1.bf16.msra.mxu0 %v707
      %1758 = vmatprep.subr.bf16.mxu0 0
      %1759 = vmatpush1.bf16.msra.mxu0 0
      %1760 = vmatprep.subr.bf16.mxu0 0
      %1761 = vmatpush1.bf16.msra.mxu0 0
      %1762 = vmatprep.subr.bf16.mxu0 0
      %1763 = vmatpush1.bf16.msra.mxu0 0
      %1764 = vmatprep.subr.bf16.mxu0 0
      %1765 = vmatpush1.bf16.msra.mxu0 0
      %1766 = vmatprep.subr.bf16.mxu0 0
      %1767 = vmatpush1.bf16.msra.mxu0 0
      %1768 = vmatprep.subr.bf16.mxu0 0
      %1769 = vmatpush1.bf16.msra.mxu0 0
      %1770 = vmatprep.subr.bf16.mxu0 0
      %1771 = vmatpush1.bf16.msra.mxu0 0
      %1772 = vmatprep.subr.bf16.mxu0 0
      %1773 = vmatpush1.bf16.msra.mxu0 0
      %1774 = vmatprep.subr.bf16.mxu0 0
      %1775 = vmatpush1.bf16.msra.mxu0 0
      %1776 = vmatprep.subr.bf16.mxu0 0
      %1777 = vmatpush1.bf16.msra.mxu0 0
      %1778 = vmatprep.subr.bf16.mxu0 0
      %1779 = vmatpush1.bf16.msra.mxu0 0
      %1780 = vmatprep.subr.bf16.mxu0 0
      %1781 = vmatpush1.bf16.msra.mxu0 0
      %1782 = vmatprep.subr.bf16.mxu0 0
      %1783 = vmatpush1.bf16.msra.mxu0 0
      %1784 = vmatprep.subr.bf16.mxu0 0
      %1785 = vmatpush1.bf16.msra.mxu0 0
      %1786 = vmatprep.mubr.bf16.mxu0 0
      %1787 = vmatmul.mubr.bf16.gmra.mrb[0].mxu0 %v1752
      %v1788 = vpop.f32.mrb[0].mxu0
      %v1789 = vadd.f32 %v1742, %v1788
      %v1790 = vpop.f32.mrb[0].mxu0
      %v1791 = vpop.f32.mrb[0].mxu0
      %v1792 = vpop.f32.mrb[0].mxu0
      %1793 = vdwg.mxu0
      %v1794 = vtanh.pop %v1789
      %v1795 = vmul.f32 %v1794, 0.5
      %v1796 = vadd.f32 %v1795, 0.5
      %v1797 = vmul.f32 %v1796, %v1633
      %1799 = vrot.lane.b32.xlu0 %v1794, 64
      %v1800 = vpop.permute.xlu0 %1799
      %v1802 = vmul.f32 %v1796, %v1800
      %1804 = vrot.lane.b32.xlu0 %v1802, 32
      %v1805 = vpop.permute.xlu0 %1804
      %v1807 = vadd.f32 %v1797, %v1805
      %v1808 = vtanh.pop %v1807
      %1810 = vrot.lane.b32.xlu0 %v1808, 64
      %v1811 = vpop.permute.xlu0 %1810
      %v1813 = vmul.f32 %v1796, %v1811
      %1814 = vmatprep.subr.bf16.mxu0 0
      %1815 = vmatpush1.bf16.msra.mxu0 %v554
      %1816 = vmatprep.subr.bf16.mxu0 0
      %1817 = vmatpush1.bf16.msra.mxu0 %v555
      %1818 = vmatprep.subr.bf16.mxu0 0
      %1819 = vmatpush1.bf16.msra.mxu0 0
      %1820 = vmatprep.subr.bf16.mxu0 0
      %1821 = vmatpush1.bf16.msra.mxu0 0
      %1822 = vmatprep.subr.bf16.mxu0 0
      %1823 = vmatpush1.bf16.msra.mxu0 0
      %1824 = vmatprep.subr.bf16.mxu0 0
      %1825 = vmatpush1.bf16.msra.mxu0 0
      %1826 = vmatprep.subr.bf16.mxu0 0
      %1827 = vmatpush1.bf16.msra.mxu0 0
      %1828 = vmatprep.subr.bf16.mxu0 0
      %1829 = vmatpush1.bf16.msra.mxu0 0
      %1830 = vmatprep.subr.bf16.mxu0 0
      %1831 = vmatpush1.bf16.msra.mxu0 0
      %1832 = vmatprep.subr.bf16.mxu0 0
      %1833 = vmatpush1.bf16.msra.mxu0 0
      %1834 = vmatprep.subr.bf16.mxu0 0
      %1835 = vmatpush1.bf16.msra.mxu0 0
      %1836 = vmatprep.subr.bf16.mxu0 0
      %1837 = vmatpush1.bf16.msra.mxu0 0
      %1838 = vmatprep.subr.bf16.mxu0 0
      %1839 = vmatpush1.bf16.msra.mxu0 0
      %1840 = vmatprep.subr.bf16.mxu0 0
      %1841 = vmatpush1.bf16.msra.mxu0 0
      %1842 = vmatprep.subr.bf16.mxu0 0
      %1843 = vmatpush1.bf16.msra.mxu0 0
      %1844 = vmatprep.subr.bf16.mxu0 0
      %1845 = vmatpush1.bf16.msra.mxu0 0
      %1846 = vmatprep.mubr.bf16.mxu0 0
      %1847 = vmatmul.mubr.bf16.gmra.mrb[0].mxu0 %v1705
      %v1848 = vpop.f32.mrb[0].mxu0
      %v1849 = vadd.f32 %v539, %v1848
      %v1850 = vpop.f32.mrb[0].mxu0
      %v1851 = vpop.f32.mrb[0].mxu0
      %v1852 = vpop.f32.mrb[0].mxu0
      %1853 = vdwg.mxu0
      %v1854 = vtanh.pop %v1849
      %v1855 = vmul.f32 %v1854, 0.5
      %v1856 = vadd.f32 %v1855, 0.5
      %v1857 = vmul.f32 %v1856, %v1693
      %1859 = vrot.lane.b32.xlu0 %v1854, 64
      %v1860 = vpop.permute.xlu0 %1859
      %v1862 = vmul.f32 %v1856, %v1860
      %1864 = vrot.lane.b32.xlu0 %v1862, 32
      %v1865 = vpop.permute.xlu0 %1864
      %v1867 = vadd.f32 %v1857, %v1865
      %v1868 = vtanh.pop %v1867
      %1870 = vrot.lane.b32.xlu0 %v1868, 64
      %v1871 = vpop.permute.xlu0 %1870
      %v1873 = vmul.f32 %v1856, %v1871
      %v1874 = vpack.c.bf16 %v1873, %v1873
      %1876 = vrot.lane.b32.xlu0 %v1874, 32
      %v1877 = vpop.permute.xlu0 %1876
      %v1879 = vsel %vm464, %v1877, 0
      %1881 = vmatprep.subr.bf16.mxu0 0
      %1882 = vmatpush1.bf16.msra.mxu0 %v646
      %1883 = vmatprep.subr.bf16.mxu0 0
      %1884 = vmatpush1.bf16.msra.mxu0 %v647
      %1885 = vmatprep.subr.bf16.mxu0 0
      %1886 = vmatpush1.bf16.msra.mxu0 0
      %1887 = vmatprep.subr.bf16.mxu0 0
      %1888 = vmatpush1.bf16.msra.mxu0 0
      %1889 = vmatprep.subr.bf16.mxu0 0
      %1890 = vmatpush1.bf16.msra.mxu0 0
      %1891 = vmatprep.subr.bf16.mxu0 0
      %1892 = vmatpush1.bf16.msra.mxu0 0
      %1893 = vmatprep.subr.bf16.mxu0 0
      %1894 = vmatpush1.bf16.msra.mxu0 0
      %1895 = vmatprep.subr.bf16.mxu0 0
      %1896 = vmatpush1.bf16.msra.mxu0 0
      %1897 = vmatprep.subr.bf16.mxu0 0
      %1898 = vmatpush1.bf16.msra.mxu0 0
      %1899 = vmatprep.subr.bf16.mxu0 0
      %1900 = vmatpush1.bf16.msra.mxu0 0
      %1901 = vmatprep.subr.bf16.mxu0 0
      %1902 = vmatpush1.bf16.msra.mxu0 0
      %1903 = vmatprep.subr.bf16.mxu0 0
      %1904 = vmatpush1.bf16.msra.mxu0 0
      %1905 = vmatprep.subr.bf16.mxu0 0
      %1906 = vmatpush1.bf16.msra.mxu0 0
      %1907 = vmatprep.subr.bf16.mxu0 0
      %1908 = vmatpush1.bf16.msra.mxu0 0
      %1909 = vmatprep.subr.bf16.mxu0 0
      %1910 = vmatpush1.bf16.msra.mxu0 0
      %1911 = vmatprep.subr.bf16.mxu0 0
      %1912 = vmatpush1.bf16.msra.mxu0 0
      %1913 = vmatprep.mubr.bf16.mxu0 0
      %1914 = vmatmul.mubr.bf16.gmra.mrb[0].mxu0 %v1879
      %v1915 = vpop.f32.mrb[0].mxu0
      %v1916 = vadd.f32 %v633, %v1915
      %v1917 = vpop.f32.mrb[0].mxu0
      %v1918 = vpop.f32.mrb[0].mxu0
      %v1919 = vpop.f32.mrb[0].mxu0
      %1920 = vdwg.mxu0
      %v1921 = vpack.c.bf16 %v1813, %v1813
      %1923 = vrot.lane.b32.xlu0 %v1921, 32
      %v1924 = vpop.permute.xlu0 %1923
      %v1926 = vsel %vm464, %v1924, 0
      %1928 = vmatprep.subr.bf16.mxu0 0
      %1929 = vmatpush1.bf16.msra.mxu0 %v706
      %1930 = vmatprep.subr.bf16.mxu0 0
      %1931 = vmatpush1.bf16.msra.mxu0 %v707
      %1932 = vmatprep.subr.bf16.mxu0 0
      %1933 = vmatpush1.bf16.msra.mxu0 0
      %1934 = vmatprep.subr.bf16.mxu0 0
      %1935 = vmatpush1.bf16.msra.mxu0 0
      %1936 = vmatprep.subr.bf16.mxu0 0
      %1937 = vmatpush1.bf16.msra.mxu0 0
      %1938 = vmatprep.subr.bf16.mxu0 0
      %1939 = vmatpush1.bf16.msra.mxu0 0
      %1940 = vmatprep.subr.bf16.mxu0 0
      %1941 = vmatpush1.bf16.msra.mxu0 0
      %1942 = vmatprep.subr.bf16.mxu0 0
      %1943 = vmatpush1.bf16.msra.mxu0 0
      %1944 = vmatprep.subr.bf16.mxu0 0
      %1945 = vmatpush1.bf16.msra.mxu0 0
      %1946 = vmatprep.subr.bf16.mxu0 0
      %1947 = vmatpush1.bf16.msra.mxu0 0
      %1948 = vmatprep.subr.bf16.mxu0 0
      %1949 = vmatpush1.bf16.msra.mxu0 0
      %1950 = vmatprep.subr.bf16.mxu0 0
      %1951 = vmatpush1.bf16.msra.mxu0 0
      %1952 = vmatprep.subr.bf16.mxu0 0
      %1953 = vmatpush1.bf16.msra.mxu0 0
      %1954 = vmatprep.subr.bf16.mxu0 0
      %1955 = vmatpush1.bf16.msra.mxu0 0
      %1956 = vmatprep.subr.bf16.mxu0 0
      %1957 = vmatpush1.bf16.msra.mxu0 0
      %1958 = vmatprep.subr.bf16.mxu0 0
      %1959 = vmatpush1.bf16.msra.mxu0 0
      %1960 = vmatprep.mubr.bf16.mxu0 0
      %1961 = vmatmul.mubr.bf16.gmra.mrb[0].mxu0 %v1926
      %v1962 = vpop.f32.mrb[0].mxu0
      %v1963 = vadd.f32 %v1916, %v1962
      %v1964 = vpop.f32.mrb[0].mxu0
      %v1965 = vpop.f32.mrb[0].mxu0
      %v1966 = vpop.f32.mrb[0].mxu0
      %1967 = vdwg.mxu0
      %v1968 = vtanh.pop %v1963
      %v1969 = vmul.f32 %v1968, 0.5
      %v1970 = vadd.f32 %v1969, 0.5
      %v1971 = vmul.f32 %v1970, %v1807
      %1973 = vrot.lane.b32.xlu0 %v1968, 64
      %v1974 = vpop.permute.xlu0 %1973
      %v1976 = vmul.f32 %v1970, %v1974
      %1978 = vrot.lane.b32.xlu0 %v1976, 32
      %v1979 = vpop.permute.xlu0 %1978
      %v1981 = vadd.f32 %v1971, %v1979
      %v1982 = vtanh.pop %v1981
      %1984 = vrot.lane.b32.xlu0 %v1982, 64
      %v1985 = vpop.permute.xlu0 %1984
      %v1987 = vmul.f32 %v1970, %v1985
      %v1988 = vpack.c.bf16 %v1987, %v1987
      %v1989 = vld [vmem:[%s4] sm:$0xff]
      %v1990 = vld [vmem:[%s4 + $0x8] sm:$0xff]
      %v1991 = vld [vmem:[%s4 + $0x10] sm:$0xff]
      %v1992 = vld [vmem:[%s4 + $0x18] sm:$0xff]
      %v1993 = vld [vmem:[%s5] sm:$0x3]
      %v1995 = vlaneseq
      %v1996 = vshrl.u32 %v1995, 7
      %v1997 = vsub.s32 0, %v1996
      %v1998 = vrot.slane %v1993, %v1997
      %v1999 = vlaneseq
      %v2000 = vshrl.u32 %v1999, 7
      %v2001 = vsub.s32 1, %v2000
      %v2002 = vrot.slane %v1993, %v2001
      %2006 = vrot.lane.b32.xlu0 %v1988, 32
      %v2007 = vpop.permute.xlu0 %2006
      %v2012 = vunpack.c.l.b16 %v1989
      %v2013 = vunpack.c.h.b16 %v1989
      %v2014 = vunpack.c.l.b16 %v1990
      %v2015 = vunpack.c.h.b16 %v1990
      %v2016 = vunpack.c.l.b16 %v1991
      %v2017 = vunpack.c.h.b16 %v1991
      %v2018 = vunpack.c.l.b16 %v1992
      %v2019 = vunpack.c.h.b16 %v1992
      %v2020 = vpack.c.b16 %v2014, %v2012
      %v2021 = vpack.c.b16 %v2015, %v2013
      %v2022 = vpack.c.b16 %v2018, %v2016
      %v2023 = vpack.c.b16 %v2019, %v2017
      %v2029 = vsel %vm464, %v2007, 0
      %2031 = vmatprep.subr.bf16.mxu0 %v2021
      %2032 = vmatpush1.bf16.msra.mxu0 %v2020
      %2033 = vmatprep.subr.bf16.mxu0 %v2023
      %2034 = vmatpush1.bf16.msra.mxu0 %v2022
      %2035 = vmatprep.subr.bf16.mxu0 0
      %2036 = vmatpush1.bf16.msra.mxu0 0
      %2037 = vmatprep.subr.bf16.mxu0 0
      %2038 = vmatpush1.bf16.msra.mxu0 0
      %2039 = vmatprep.subr.bf16.mxu0 0
      %2040 = vmatpush1.bf16.msra.mxu0 0
      %2041 = vmatprep.subr.bf16.mxu0 0
      %2042 = vmatpush1.bf16.msra.mxu0 0
      %2043 = vmatprep.subr.bf16.mxu0 0
      %2044 = vmatpush1.bf16.msra.mxu0 0
      %2045 = vmatprep.subr.bf16.mxu0 0
      %2046 = vmatpush1.bf16.msra.mxu0 0
      %2047 = vmatprep.subr.bf16.mxu0 0
      %2048 = vmatpush1.bf16.msra.mxu0 0
      %2049 = vmatprep.subr.bf16.mxu0 0
      %2050 = vmatpush1.bf16.msra.mxu0 0
      %2051 = vmatprep.subr.bf16.mxu0 0
      %2052 = vmatpush1.bf16.msra.mxu0 0
      %2053 = vmatprep.subr.bf16.mxu0 0
      %2054 = vmatpush1.bf16.msra.mxu0 0
      %2055 = vmatprep.subr.bf16.mxu0 0
      %2056 = vmatpush1.bf16.msra.mxu0 0
      %2057 = vmatprep.subr.bf16.mxu0 0
      %2058 = vmatpush1.bf16.msra.mxu0 0
      %2059 = vmatprep.subr.bf16.mxu0 0
      %2060 = vmatpush1.bf16.msra.mxu0 0
      %2061 = vmatprep.subr.bf16.mxu0 0
      %2062 = vmatpush1.bf16.msra.mxu0 0
      %2063 = vmatprep.mubr.bf16.mxu0 0
      %2064 = vmatmul.mubr.bf16.gmra.mrb[0].mxu0 %v2029
      %v2065 = vpop.f32.mrb[0].mxu0
      %v2066 = vadd.f32 %v1998, %v2065
      %v2067 = vpop.f32.mrb[0].mxu0
      %v2068 = vadd.f32 %v2002, %v2067
      %v2069 = vpop.f32.mrb[0].mxu0
      %v2070 = vpop.f32.mrb[0].mxu0
      %2071 = vdwg.mxu0
      %v2072 = vmax.f32 %v2066, 0.0
      %v2073 = vmax.f32 %v2068, 0.0
      %v2074 = vpack.c.bf16 %v2072, %v2072
      %v2075 = vpack.c.bf16 %v2073, %v2073
      %v2076 = vld [vmem:[%s6] sm:$0xf]
      %v2077 = vld [vmem:[%s6 + $0x4] sm:$0xf]
      %v2078 = vld [vmem:[%s6 + $0x8] sm:$0xf]
      %v2079 = vld [vmem:[%s6 + $0xc] sm:$0xf]
      %v2080 = vld [vmem:[%s6 + $0x10] sm:$0xf]
      %v2081 = vld [vmem:[%s6 + $0x14] sm:$0xf]
      %v2082 = vld [vmem:[%s6 + $0x18] sm:$0xf]
      %v2083 = vld [vmem:[%s6 + $0x1c] sm:$0xf]
      %v2084 = vld [vmem:[%s6 + $0x20] sm:$0xf]
      %v2085 = vld [vmem:[%s6 + $0x24] sm:$0xf]
      %v2086 = vld [vmem:[%s6 + $0x28] sm:$0xf]
      %v2087 = vld [vmem:[%s6 + $0x2c] sm:$0xf]
      %v2088 = vld [vmem:[%s6 + $0x30] sm:$0xf]
      %v2089 = vld [vmem:[%s6 + $0x34] sm:$0xf]
      %v2090 = vld [vmem:[%s6 + $0x38] sm:$0xf]
      %v2091 = vld [vmem:[%s6 + $0x3c] sm:$0xf]
      %v2092 = vld [vmem:[%s6 + $0x40] sm:$0xf]
      %v2093 = vld [vmem:[%s6 + $0x44] sm:$0xf]
      %v2094 = vld [vmem:[%s6 + $0x48] sm:$0xf]
      %v2095 = vld [vmem:[%s6 + $0x4c] sm:$0xf]
      %v2096 = vld [vmem:[%s6 + $0x50] sm:$0xf]
      %v2097 = vld [vmem:[%s6 + $0x54] sm:$0xf]
      %v2098 = vld [vmem:[%s6 + $0x58] sm:$0xf]
      %v2099 = vld [vmem:[%s6 + $0x5c] sm:$0xf]
      %v2100 = vld [vmem:[%s6 + $0x60] sm:$0xf]
      %v2101 = vld [vmem:[%s6 + $0x64] sm:$0xf]
      %v2102 = vld [vmem:[%s6 + $0x68] sm:$0xf]
      %v2103 = vld [vmem:[%s6 + $0x6c] sm:$0xf]
      %v2104 = vld [vmem:[%s6 + $0x70] sm:$0xf]
      %v2105 = vld [vmem:[%s6 + $0x74] sm:$0xf]
      %v2106 = vld [vmem:[%s6 + $0x78] sm:$0xf]
      %v2107 = vld [vmem:[%s6 + $0x7c] sm:$0xf]
      %v2108 = vld [vmem:[%s7] sm:$0x1]
      %v2110 = vlaneseq
      %v2111 = vshrl.u32 %v2110, 7
      %v2112 = vsub.s32 0, %v2111
      %v2113 = vrot.slane %v2108, %v2112
      %v2147 = vunpack.c.l.b16 %v2076
      %v2148 = vunpack.c.l.b16 %v2077
      %v2149 = vunpack.c.l.b16 %v2078
      %v2150 = vunpack.c.l.b16 %v2079
      %v2151 = vunpack.c.l.b16 %v2080
      %v2152 = vunpack.c.l.b16 %v2081
      %v2153 = vunpack.c.l.b16 %v2082
      %v2154 = vunpack.c.l.b16 %v2083
      %v2155 = vunpack.c.l.b16 %v2084
      %v2156 = vunpack.c.l.b16 %v2085
      %v2157 = vunpack.c.l.b16 %v2086
      %v2158 = vunpack.c.l.b16 %v2087
      %v2159 = vunpack.c.l.b16 %v2088
      %v2160 = vunpack.c.l.b16 %v2089
      %v2161 = vunpack.c.l.b16 %v2090
      %v2162 = vunpack.c.l.b16 %v2091
      %v2163 = vunpack.c.l.b16 %v2092
      %v2164 = vunpack.c.l.b16 %v2093
      %v2165 = vunpack.c.l.b16 %v2094
      %v2166 = vunpack.c.l.b16 %v2095
      %v2167 = vunpack.c.l.b16 %v2096
      %v2168 = vunpack.c.l.b16 %v2097
      %v2169 = vunpack.c.l.b16 %v2098
      %v2170 = vunpack.c.l.b16 %v2099
      %v2171 = vunpack.c.l.b16 %v2100
      %v2172 = vunpack.c.l.b16 %v2101
      %v2173 = vunpack.c.l.b16 %v2102
      %v2174 = vunpack.c.l.b16 %v2103
      %v2175 = vunpack.c.l.b16 %v2104
      %v2176 = vunpack.c.l.b16 %v2105
      %v2177 = vunpack.c.l.b16 %v2106
      %v2178 = vunpack.c.l.b16 %v2107
      %v2179 = vpack.c.b16 %v2148, %v2147
      %v2180 = vpack.c.b16 %v2150, %v2149
      %v2181 = vpack.c.b16 %v2152, %v2151
      %v2182 = vpack.c.b16 %v2154, %v2153
      %v2183 = vpack.c.b16 %v2156, %v2155
      %v2184 = vpack.c.b16 %v2158, %v2157
      %v2185 = vpack.c.b16 %v2160, %v2159
      %v2186 = vpack.c.b16 %v2162, %v2161
      %v2187 = vpack.c.b16 %v2164, %v2163
      %v2188 = vpack.c.b16 %v2166, %v2165
      %v2189 = vpack.c.b16 %v2168, %v2167
      %v2190 = vpack.c.b16 %v2170, %v2169
      %v2191 = vpack.c.b16 %v2172, %v2171
      %v2192 = vpack.c.b16 %v2174, %v2173
      %v2193 = vpack.c.b16 %v2176, %v2175
      %v2194 = vpack.c.b16 %v2178, %v2177
      %2211 = vmatprep.subr.bf16.mxu0 0
      %2212 = vmatpush1.bf16.msra.mxu0 %v2179
      %2213 = vmatprep.subr.bf16.mxu0 0
      %2214 = vmatpush1.bf16.msra.mxu0 %v2180
      %2215 = vmatprep.subr.bf16.mxu0 0
      %2216 = vmatpush1.bf16.msra.mxu0 %v2181
      %2217 = vmatprep.subr.bf16.mxu0 0
      %2218 = vmatpush1.bf16.msra.mxu0 %v2182
      %2219 = vmatprep.subr.bf16.mxu0 0
      %2220 = vmatpush1.bf16.msra.mxu0 %v2183
      %2221 = vmatprep.subr.bf16.mxu0 0
      %2222 = vmatpush1.bf16.msra.mxu0 %v2184
      %2223 = vmatprep.subr.bf16.mxu0 0
      %2224 = vmatpush1.bf16.msra.mxu0 %v2185
      %2225 = vmatprep.subr.bf16.mxu0 0
      %2226 = vmatpush1.bf16.msra.mxu0 %v2186
      %2227 = vmatprep.subr.bf16.mxu0 0
      %2228 = vmatpush1.bf16.msra.mxu0 %v2187
      %2229 = vmatprep.subr.bf16.mxu0 0
      %2230 = vmatpush1.bf16.msra.mxu0 %v2188
      %2231 = vmatprep.subr.bf16.mxu0 0
      %2232 = vmatpush1.bf16.msra.mxu0 %v2189
      %2233 = vmatprep.subr.bf16.mxu0 0
      %2234 = vmatpush1.bf16.msra.mxu0 %v2190
      %2235 = vmatprep.subr.bf16.mxu0 0
      %2236 = vmatpush1.bf16.msra.mxu0 %v2191
      %2237 = vmatprep.subr.bf16.mxu0 0
      %2238 = vmatpush1.bf16.msra.mxu0 %v2192
      %2239 = vmatprep.subr.bf16.mxu0 0
      %2240 = vmatpush1.bf16.msra.mxu0 %v2193
      %2241 = vmatprep.subr.bf16.mxu0 0
      %2242 = vmatpush1.bf16.msra.mxu0 %v2194
      %2243 = vmatprep.mubr.bf16.mxu0 %v2075
      %2244 = vmatmul.mubr.bf16.gmra.mrb[0].mxu0 %v2074
      %v2245 = vpop.f32.mrb[0].mxu0
      %v2246 = vadd.f32 %v2113, %v2245
      %v2247 = vpop.f32.mrb[0].mxu0
      %v2248 = vpop.f32.mrb[0].mxu0
      %v2249 = vpop.f32.mrb[0].mxu0
      %2250 = vdwg.mxu0
      %v2251 = vmax.f32 %v2246, 0.0
      %v2252 = vpack.c.bf16 %v2251, %v2251
      %v2253 = vld [vmem:[%s8] sm:$0xf]
      %v2254 = vld [vmem:[%s8 + $0x4] sm:$0xf]
      %v2255 = vld [vmem:[%s8 + $0x8] sm:$0xf]
      %v2256 = vld [vmem:[%s8 + $0xc] sm:$0xf]
      %v2257 = vld [vmem:[%s8 + $0x10] sm:$0xf]
      %v2258 = vld [vmem:[%s8 + $0x14] sm:$0xf]
      %v2259 = vld [vmem:[%s8 + $0x18] sm:$0xf]
      %v2260 = vld [vmem:[%s8 + $0x1c] sm:$0xf]
      %v2261 = vld [vmem:[%s8 + $0x20] sm:$0xf]
      %v2262 = vld [vmem:[%s8 + $0x24] sm:$0xf]
      %v2263 = vld [vmem:[%s8 + $0x28] sm:$0xf]
      %v2264 = vld [vmem:[%s8 + $0x2c] sm:$0xf]
      %v2265 = vld [vmem:[%s8 + $0x30] sm:$0xf]
      %v2266 = vld [vmem:[%s8 + $0x34] sm:$0xf]
      %v2267 = vld [vmem:[%s8 + $0x38] sm:$0xf]
      %v2268 = vld [vmem:[%s8 + $0x3c] sm:$0xf]
      %v2269 = vld [vmem:[%s9] sm:$0x1]
      %v2271 = vlaneseq
      %v2272 = vshrl.u32 %v2271, 7
      %v2273 = vsub.s32 0, %v2272
      %v2274 = vrot.slane %v2269, %v2273
      %v2292 = vunpack.c.l.b16 %v2253
      %v2293 = vunpack.c.l.b16 %v2254
      %v2294 = vunpack.c.l.b16 %v2255
      %v2295 = vunpack.c.l.b16 %v2256
      %v2296 = vunpack.c.l.b16 %v2257
      %v2297 = vunpack.c.l.b16 %v2258
      %v2298 = vunpack.c.l.b16 %v2259
      %v2299 = vunpack.c.l.b16 %v2260
      %v2300 = vunpack.c.l.b16 %v2261
      %v2301 = vunpack.c.l.b16 %v2262
      %v2302 = vunpack.c.l.b16 %v2263
      %v2303 = vunpack.c.l.b16 %v2264
      %v2304 = vunpack.c.l.b16 %v2265
      %v2305 = vunpack.c.l.b16 %v2266
      %v2306 = vunpack.c.l.b16 %v2267
      %v2307 = vunpack.c.l.b16 %v2268
      %v2308 = vpack.c.b16 %v2293, %v2292
      %v2309 = vpack.c.b16 %v2295, %v2294
      %v2310 = vpack.c.b16 %v2297, %v2296
      %v2311 = vpack.c.b16 %v2299, %v2298
      %v2312 = vpack.c.b16 %v2301, %v2300
      %v2313 = vpack.c.b16 %v2303, %v2302
      %v2314 = vpack.c.b16 %v2305, %v2304
      %v2315 = vpack.c.b16 %v2307, %v2306
      %2324 = vmatprep.subr.bf16.mxu0 0
      %2325 = vmatpush1.bf16.msra.mxu0 %v2308
      %2326 = vmatprep.subr.bf16.mxu0 0
      %2327 = vmatpush1.bf16.msra.mxu0 %v2309
      %2328 = vmatprep.subr.bf16.mxu0 0
      %2329 = vmatpush1.bf16.msra.mxu0 %v2310
      %2330 = vmatprep.subr.bf16.mxu0 0
      %2331 = vmatpush1.bf16.msra.mxu0 %v2311
      %2332 = vmatprep.subr.bf16.mxu0 0
      %2333 = vmatpush1.bf16.msra.mxu0 %v2312
      %2334 = vmatprep.subr.bf16.mxu0 0
      %2335 = vmatpush1.bf16.msra.mxu0 %v2313
      %2336 = vmatprep.subr.bf16.mxu0 0
      %2337 = vmatpush1.bf16.msra.mxu0 %v2314
      %2338 = vmatprep.subr.bf16.mxu0 0
      %2339 = vmatpush1.bf16.msra.mxu0 %v2315
      %2340 = vmatprep.subr.bf16.mxu0 0
      %2341 = vmatpush1.bf16.msra.mxu0 0
      %2342 = vmatprep.subr.bf16.mxu0 0
      %2343 = vmatpush1.bf16.msra.mxu0 0
      %2344 = vmatprep.subr.bf16.mxu0 0
      %2345 = vmatpush1.bf16.msra.mxu0 0
      %2346 = vmatprep.subr.bf16.mxu0 0
      %2347 = vmatpush1.bf16.msra.mxu0 0
      %2348 = vmatprep.subr.bf16.mxu0 0
      %2349 = vmatpush1.bf16.msra.mxu0 0
      %2350 = vmatprep.subr.bf16.mxu0 0
      %2351 = vmatpush1.bf16.msra.mxu0 0
      %2352 = vmatprep.subr.bf16.mxu0 0
      %2353 = vmatpush1.bf16.msra.mxu0 0
      %2354 = vmatprep.subr.bf16.mxu0 0
      %2355 = vmatpush1.bf16.msra.mxu0 0
      %2356 = vmatprep.mubr.bf16.mxu0 0
      %2357 = vmatmul.mubr.bf16.gmra.mrb[0].mxu0 %v2252
      %v2358 = vpop.f32.mrb[0].mxu0
      %v2359 = vadd.f32 %v2274, %v2358
      %v2360 = vpop.f32.mrb[0].mxu0
      %v2361 = vpop.f32.mrb[0].mxu0
      %v2362 = vpop.f32.mrb[0].mxu0
      %2363 = vdwg.mxu0
      %v2364 = vmax.f32 %v2359, 0.0
      %v2365 = vpack.c.bf16 %v2364, %v2364
      %v2366 = vld [vmem:[%s10] sm:$0xf]
      %v2367 = vld [vmem:[%s10 + $0x4] sm:$0xf]
      %v2368 = vld [vmem:[%s10 + $0x8] sm:$0xf]
      %v2369 = vld [vmem:[%s10 + $0xc] sm:$0xf]
      %v2370 = vld [vmem:[%s10 + $0x10] sm:$0xf]
      %v2371 = vld [vmem:[%s10 + $0x14] sm:$0xf]
      %v2372 = vld [vmem:[%s10 + $0x18] sm:$0xf]
      %v2373 = vld [vmem:[%s10 + $0x1c] sm:$0xf]
      %v2374 = vld [vmem:[%s11] sm:$0x1]
      %v2376 = vlaneseq
      %v2377 = vshrl.u32 %v2376, 7
      %v2378 = vsub.s32 0, %v2377
      %v2379 = vrot.slane %v2374, %v2378
      %v2389 = vunpack.c.l.b16 %v2366
      %v2390 = vunpack.c.l.b16 %v2367
      %v2391 = vunpack.c.l.b16 %v2368
      %v2392 = vunpack.c.l.b16 %v2369
      %v2393 = vunpack.c.l.b16 %v2370
      %v2394 = vunpack.c.l.b16 %v2371
      %v2395 = vunpack.c.l.b16 %v2372
      %v2396 = vunpack.c.l.b16 %v2373
      %v2397 = vpack.c.b16 %v2390, %v2389
      %v2398 = vpack.c.b16 %v2392, %v2391
      %v2399 = vpack.c.b16 %v2394, %v2393
      %v2400 = vpack.c.b16 %v2396, %v2395
      %vm2405 = vcmask 523264
      %v2407 = vsel %vm2405, %v2365, 0
      %2409 = vmatprep.subr.bf16.mxu0 0
      %2410 = vmatpush1.bf16.msra.mxu0 %v2397
      %2411 = vmatprep.subr.bf16.mxu0 0
      %2412 = vmatpush1.bf16.msra.mxu0 %v2398
      %2413 = vmatprep.subr.bf16.mxu0 0
      %2414 = vmatpush1.bf16.msra.mxu0 %v2399
      %2415 = vmatprep.subr.bf16.mxu0 0
      %2416 = vmatpush1.bf16.msra.mxu0 %v2400
      %2417 = vmatprep.subr.bf16.mxu0 0
      %2418 = vmatpush1.bf16.msra.mxu0 0
      %2419 = vmatprep.subr.bf16.mxu0 0
      %2420 = vmatpush1.bf16.msra.mxu0 0
      %2421 = vmatprep.subr.bf16.mxu0 0
      %2422 = vmatpush1.bf16.msra.mxu0 0
      %2423 = vmatprep.subr.bf16.mxu0 0
      %2424 = vmatpush1.bf16.msra.mxu0 0
      %2425 = vmatprep.subr.bf16.mxu0 0
      %2426 = vmatpush1.bf16.msra.mxu0 0
      %2427 = vmatprep.subr.bf16.mxu0 0
      %2428 = vmatpush1.bf16.msra.mxu0 0
      %2429 = vmatprep.subr.bf16.mxu0 0
      %2430 = vmatpush1.bf16.msra.mxu0 0
      %2431 = vmatprep.subr.bf16.mxu0 0
      %2432 = vmatpush1.bf16.msra.mxu0 0
      %2433 = vmatprep.subr.bf16.mxu0 0
      %2434 = vmatpush1.bf16.msra.mxu0 0
      %2435 = vmatprep.subr.bf16.mxu0 0
      %2436 = vmatpush1.bf16.msra.mxu0 0
      %2437 = vmatprep.subr.bf16.mxu0 0
      %2438 = vmatpush1.bf16.msra.mxu0 0
      %2439 = vmatprep.subr.bf16.mxu0 0
      %2440 = vmatpush1.bf16.msra.mxu0 0
      %2441 = vmatprep.mubr.bf16.mxu0 0
      %2442 = vmatmul.mubr.bf16.gmra.mrb[0].mxu0 %v2407
      %v2443 = vpop.f32.mrb[0].mxu0
      %v2444 = vadd.f32 %v2379, %v2443
      %v2445 = vpop.f32.mrb[0].mxu0
      %v2446 = vpop.f32.mrb[0].mxu0
      %v2447 = vpop.f32.mrb[0].mxu0
      %2448 = vdwg.mxu0
      %v2449 = vxor.u32 %v2444, 2147483648
      %v2450 = vmul.f32 %v2449, 1.442695
      %v2451 = vpow.pop %v2450
      %v2452 = vadd.f32 %v2451, 1.0
      %v2453 = vrcp.pop %v2452
      %v2454 = vmul.f32 1.0, %v2453
      %2455 = vst [vmem:[%s411] sm:$0xff] %v2454
      %p2456 = scmp.lt.s32.totalorder %s23, 3
      %s2457 = scalar_select %p2456, %s23, 3
      %s2458 = smul.addr %s2457, 8
      %s2459 = scalar_lea.vmem %s12, %s2458
      // Predicated region
      $region69: #{bayesian_lstm_forward.1} parent=67 // pred_check
        %p2460 = pneg %p298
      $region70: #{bayesian_lstm_forward.1} parent=67 // pred_check_branch
        %2462 = sbr.rel (%p2460) target = $region72
      $region71: #{bayesian_lstm_forward.1} parent=67 // pred_region
        _
      $region72: #{bayesian_lstm_forward.1} parent=67 // pred_fallthru
        _
    $region68: #{bayesian_lstm_forward.1} parent=5 // pred_fallthru
      _
    %p2463 = scmp.le.s32.totalorder 2, %s18
    // Predicated region
    $region73: #{bayesian_lstm_forward.1} parent=5 // pred_check
      %p2464 = pneg %p2463
    $region74: #{bayesian_lstm_forward.1} parent=5 // pred_check_branch
      %2466 = sbr.rel (%p2464) target = $region76
    $region75: #{bayesian_lstm_forward.1} parent=5 // pred_region
      %s2467 = ssub.s32 %s18, 2
      // Predicated region
      $region77: #{bayesian_lstm_forward.1} parent=75 // pred_check
        %p2468 = pneg %p304
      $region78: #{bayesian_lstm_forward.1} parent=75 // pred_check_branch
        %2470 = sbr.rel (%p2468) target = $region80
      $region79: #{bayesian_lstm_forward.1} parent=75 // pred_region
        %p2471 = scmp.lt.s32.totalorder %s24, 3
        %s2472 = scalar_select %p2471, %s24, 3
        %s2473 = smul.addr %s2472, 8
        %s2474 = scalar_lea.vmem %s12, %s2473
      $region80: #{bayesian_lstm_forward.1} parent=75 // pred_fallthru
        _
    $region76: #{bayesian_lstm_forward.1} parent=5 // pred_fallthru
      _
  $region6: #{bayesian_lstm_forward.1} parent=0 // loop_footer
    %s22 = sadd.s32 1, %s18
  $region7: #{bayesian_lstm_forward.1} parent=0 // loop_footer_branch
    %17 = sbr.rel target = $region3
  $region8: #{bayesian_lstm_forward.1} parent=0 // loop_exit
    _

</llo_original>
